<compile_context>
chip_gen: v5e
topology: v5e:2x2
jax: 0.10.0
libtpu: 0.0.40
codegen_flags: <defaults>
</compile_context>

<pallas_src>
import functools

import jax
import jax.numpy as jnp
from jax.experimental import pallas as pl
from jax.experimental.pallas import tpu as pltpu


def _round_up(x, m):
    return (x + m - 1) // m * m


def decoder_kernel(z_ref, w1_ref, b1_ref, w2_ref, b2_ref, out_ref, *,
                   approx_sigmoid, precision):
    """Fused linear1 -> relu -> linear2 -> sigmoid on one batch tile."""
    w1 = w1_ref[...]                       # already in matmul dtype (prep step)
    z = z_ref[...].astype(w1.dtype)        # tiny per-tile cast (TB x 20)
    # linear1 (MXU, f32 accumulate) + bias + relu in f32
    h = jnp.dot(z, w1, preferred_element_type=jnp.float32, precision=precision)
    h = jnp.maximum(h + b1_ref[...], 0.0)
    # linear2 (MXU, f32 accumulate) + bias
    w2 = w2_ref[...]
    o = jnp.dot(h.astype(w2.dtype), w2,
                preferred_element_type=jnp.float32, precision=precision)
    o = o + b2_ref[...]
    # sigmoid epilogue: exp on EUP; divide via approx EUP reciprocal on the
    # fast (bf16) path, exact sigmoid on the f32 correctness path.
    if approx_sigmoid:
        out_ref[...] = pl.reciprocal(1.0 + jnp.exp(-o), approx=True).astype(out_ref.dtype)
    else:
        out_ref[...] = jax.nn.sigmoid(o).astype(out_ref.dtype)


def prepare_decoder_params(w1, b1, w2, b2, *, matmul_dtype=jnp.bfloat16):
    """One-time weight prep: pad hidden dim to a 128-multiple, cast matmul inputs.

    Padding is numerically exact: padded w1 columns / b1 entries are zero, so
    relu gives exact zeros there, and the matching padded w2 rows are zero.
    Biases stay f32 (added to the f32 accumulator).
    """
    L, H = w1.shape
    H2, O = w2.shape
    assert H == H2 and b1.shape == (H,) and b2.shape == (O,)
    H_pad = _round_up(H, 128)  # 200 -> 256 (lane-dense hidden activations)
    f32 = jnp.float32
    w1p = jnp.zeros((L, H_pad), matmul_dtype).at[:, :H].set(w1.astype(matmul_dtype))
    b1p = jnp.zeros((1, H_pad), f32).at[:, :H].set(b1.reshape(1, H).astype(f32))
    w2p = jnp.zeros((H_pad, O), matmul_dtype).at[:H, :].set(w2.astype(matmul_dtype))
    b2p = b2.reshape(1, O).astype(f32)
    return (w1p, b1p, w2p, b2p)


def _batch_tiling(B, block_batch):
    """Pick (TB, n_tiles): tiles <= block_batch, >=2 tiles when possible
    (v7x dual-TC sharding), and row padding of at most a few rows."""
    n_tiles = max(pl.cdiv(B, block_batch), 2)   # at least 2 grid steps ...
    n_tiles = min(n_tiles, pl.cdiv(B, 8))       # ... but each tile >= 8 rows
    n_tiles = max(n_tiles, 1)
    TB = _round_up(pl.cdiv(B, n_tiles), 8)
    n_tiles = pl.cdiv(B, TB)
    return TB, n_tiles


def decoder_forward(z, params, *, block_batch=512, vmem_limit_bytes=None):
    """Batch-tiled pallas_call over pre-prepared (padded / pre-cast) params."""
    w1p, b1p, w2p, b2p = params
    B, L = z.shape
    Lw, H_pad = w1p.shape
    H_pad2, O = w2p.shape
    assert L == Lw and H_pad == H_pad2

    TB, n_tiles = _batch_tiling(B, block_batch)
    B_pad = TB * n_tiles

    zf = z.astype(jnp.float32)
    if B_pad != B:  # at most a handful of padded rows
        zf = jnp.zeros((B_pad, L), jnp.float32).at[:B].set(zf)

    matmul_is_f32 = (w1p.dtype == jnp.float32)
    kernel = functools.partial(
        decoder_kernel,
        approx_sigmoid=not matmul_is_f32,
        precision=(jax.lax.Precision.HIGHEST if matmul_is_f32
                   else jax.lax.Precision.DEFAULT),
    )

    out = pl.pallas_call(
        kernel,
        out_shape=jax.ShapeDtypeStruct((B_pad, O), jnp.float32),
        grid=(n_tiles,),
        in_specs=[
            # activations: pipelined per batch tile; last dim = full array dim (20)
            pl.BlockSpec((TB, L), lambda i: (i, 0)),
            # weights/biases: constant block index -> DMA'd once, VMEM-resident
            pl.BlockSpec((L, H_pad), lambda i: (0, 0)),
            pl.BlockSpec((1, H_pad), lambda i: (0, 0)),
            pl.BlockSpec((H_pad, O), lambda i: (0, 0)),
            pl.BlockSpec((1, O), lambda i: (0, 0)),
        ],
        # full-dim (784) output block: no column un-pad slice after the kernel
        out_specs=pl.BlockSpec((TB, O), lambda i: (i, 0)),
        compiler_params=pltpu.CompilerParams(
            dimension_semantics=("parallel",),   # megacore-shard batch on v7x
            vmem_limit_bytes=vmem_limit_bytes,   # only needed if TB >= ~1024 on v5e
        ),
    )(zf, w1p, b1p, w2p, b2p)

    return out[:B] if B_pad != B else out


def init_linear_params(key, in_features, out_features):
    """nn.Linear default init: U(-1/sqrt(fan_in), 1/sqrt(fan_in)); stored as (in, out)."""
    kw, kb = jax.random.split(key)
    bound = 1.0 / jnp.sqrt(jnp.float32(in_features))
    w = jax.random.uniform(kw, (in_features, out_features), jnp.float32,
                           minval=-bound, maxval=bound)
    b = jax.random.uniform(kb, (out_features,), jnp.float32,
                           minval=-bound, maxval=bound)
    return w, b


def decoder_reference(z, w1, b1, w2, b2):
    h = jnp.maximum(z @ w1 + b1, 0.0)
    return jax.nn.sigmoid(h @ w2 + b2)


if __name__ == "__main__":
    # Module-implied sizes: latent_dim=20, hidden_dim=200; output_dim=784 (MNIST).
    latent_dim = 20
    hidden_dim = 200
    output_dim = 784

    key = jax.random.PRNGKey(0)
    k_z, k_l1, k_l2, k_z2 = jax.random.split(key, 4)

    w1, b1 = init_linear_params(k_l1, latent_dim, hidden_dim)
    w2, b2 = init_linear_params(k_l2, hidden_dim, output_dim)

    # --- f32 matmul path (HIGHEST precision), small batch, tight tolerance ---
    params_f32 = prepare_decoder_params(w1, b1, w2, b2, matmul_dtype=jnp.float32)
    batch = 8
    z = jax.random.normal(k_z, (batch, latent_dim), jnp.float32)
    x_hat = jax.block_until_ready(decoder_forward(z, params_f32))
    ref = decoder_reference(z, w1, b1, w2, b2)
    assert x_hat.shape == (batch, output_dim)
    assert jnp.allclose(x_hat, ref, atol=1e-5, rtol=1e-5), "mismatch vs JAX reference (f32)"

    # --- multi-tile batch grid (exercises tiling + resident weights), f32 ---
    batch2 = 600  # not a multiple of the tile -> tests TB selection / row pad
    z2 = jax.random.normal(k_z2, (batch2, latent_dim), jnp.float32)
    x_hat2 = jax.block_until_ready(decoder_forward(z2, params_f32, block_batch=256))
    ref2 = decoder_reference(z2, w1, b1, w2, b2)
    assert x_hat2.shape == (batch2, output_dim)
    assert jnp.allclose(x_hat2, ref2, atol=1e-5, rtol=1e-5), "mismatch vs JAX reference (grid)"

    # --- default bf16 matmul-input path (all generations), relaxed tolerance ---
    params_bf16 = prepare_decoder_params(w1, b1, w2, b2)  # bf16 by default
    x_hat_bf16 = jax.block_until_ready(decoder_forward(z2, params_bf16, block_batch=256))
    assert x_hat_bf16.shape == (batch2, output_dim)
    assert jnp.allclose(x_hat_bf16, ref2, atol=3e-2), "mismatch vs JAX reference (bf16)"

    print("KERNEL_OK")
</pallas_src>

<mosaic_0001>
module attributes {stable_mosaic.version = 11 : i64} {
  func.func @decoder_kernel(%arg0: i32, %arg1: memref<8x20xf32, #tpu.memory_space<vmem>>, %arg2: memref<20x256xf32, #tpu.memory_space<vmem>>, %arg3: memref<1x256xf32, #tpu.memory_space<vmem>>, %arg4: memref<256x784xf32, #tpu.memory_space<vmem>>, %arg5: memref<1x784xf32, #tpu.memory_space<vmem>>, %arg6: memref<8x784xf32, #tpu.memory_space<vmem>>) attributes {dimension_semantics = [#tpu.dimension_semantics<parallel>], iteration_bounds = array<i64: 1>, scalar_prefetch = 0 : i64, scratch_operands = 0 : i64, tpu.core_type = #tpu.core_type<tc>, window_params = [{transform_indices = @transform_0, window_bounds = array<i64: 8, 20>}, {pipeline_mode = #tpu.pipeline_mode<synchronous>, transform_indices = @transform_1, window_bounds = array<i64: 20, 256>}, {pipeline_mode = #tpu.pipeline_mode<synchronous>, transform_indices = @transform_2, window_bounds = array<i64: 1, 256>}, {pipeline_mode = #tpu.pipeline_mode<synchronous>, transform_indices = @transform_3, window_bounds = array<i64: 256, 784>}, {pipeline_mode = #tpu.pipeline_mode<synchronous>, transform_indices = @transform_4, window_bounds = array<i64: 1, 784>}, {transform_indices = @transform_5, window_bounds = array<i64: 8, 784>}]} {
    %c0 = arith.constant 0 : index
    %c0_0 = arith.constant 0 : index
    %0 = vector.load %arg2[%c0, %c0_0] : memref<20x256xf32, #tpu.memory_space<vmem>>, vector<20x256xf32>
    %c0_1 = arith.constant 0 : index
    %c0_2 = arith.constant 0 : index
    %1 = vector.load %arg1[%c0_1, %c0_2] : memref<8x20xf32, #tpu.memory_space<vmem>>, vector<8x20xf32>
    %cst = arith.constant dense<0.000000e+00> : vector<8x256xf32>
    %2 = tpu.matmul %1, %0, %cst {dimension_numbers = #tpu.dot_dimension_numbers<[1], [0], [0], [1], [0, 0, 1, 1], [], []>, precision = #tpu.contract_precision<fp32>} : vector<8x20xf32>, vector<20x256xf32>, vector<8x256xf32> -> vector<8x256xf32>
    %c0_3 = arith.constant 0 : index
    %c0_4 = arith.constant 0 : index
    %3 = vector.load %arg3[%c0_3, %c0_4] : memref<1x256xf32, #tpu.memory_space<vmem>>, vector<1x256xf32>
    %4 = vector.broadcast %3 : vector<1x256xf32> to vector<8x256xf32>
    %5 = arith.addf %2, %4 : vector<8x256xf32>
    %cst_5 = arith.constant 0.000000e+00 : f32
    %6 = vector.broadcast %cst_5 : f32 to vector<8x256xf32>
    %7 = arith.maximumf %5, %6 : vector<8x256xf32>
    %c0_6 = arith.constant 0 : index
    %c0_7 = arith.constant 0 : index
    %8 = vector.load %arg4[%c0_6, %c0_7] : memref<256x784xf32, #tpu.memory_space<vmem>>, vector<256x784xf32>
    %cst_8 = arith.constant dense<0.000000e+00> : vector<8x784xf32>
    %9 = tpu.matmul %7, %8, %cst_8 {dimension_numbers = #tpu.dot_dimension_numbers<[1], [0], [0], [1], [0, 0, 1, 1], [], []>, precision = #tpu.contract_precision<fp32>} : vector<8x256xf32>, vector<256x784xf32>, vector<8x784xf32> -> vector<8x784xf32>
    %c0_9 = arith.constant 0 : index
    %c0_10 = arith.constant 0 : index
    %10 = vector.load %arg5[%c0_9, %c0_10] : memref<1x784xf32, #tpu.memory_space<vmem>>, vector<1x784xf32>
    %11 = vector.broadcast %10 : vector<1x784xf32> to vector<8x784xf32>
    %12 = arith.addf %9, %11 : vector<8x784xf32>
    %13 = arith.negf %12 : vector<8x784xf32>
    %14 = math.exp %13 : vector<8x784xf32>
    %cst_11 = arith.constant 1.000000e+00 : f32
    %15 = vector.broadcast %cst_11 : f32 to vector<8x784xf32>
    %16 = arith.addf %15, %14 : vector<8x784xf32>
    %17 = arith.divf %15, %16 : vector<8x784xf32>
    %c0_12 = arith.constant 0 : index
    %c0_13 = arith.constant 0 : index
    %18 = vector.load %arg6[%c0_12, %c0_13] : memref<8x784xf32, #tpu.memory_space<vmem>>, vector<8x784xf32>
    tpu.vector_store %arg6[%c0_12, %c0_13], %17 {strides = array<i32>} : memref<8x784xf32, #tpu.memory_space<vmem>>, vector<8x784xf32>,
    return
  }
  func.func @transform_0(%arg0: i32) -> (i32, i32) {
    %c0_i32 = arith.constant 0 : i32
    %c0_i32_0 = arith.constant 0 : i32
    return %arg0, %c0_i32 : i32, i32
  }
  func.func @transform_1(%arg0: i32) -> (i32, i32) {
    %c0_i32 = arith.constant 0 : i32
    %c0_i32_0 = arith.constant 0 : i32
    %c0_i32_1 = arith.constant 0 : i32
    return %c0_i32, %c0_i32_0 : i32, i32
  }
  func.func @transform_2(%arg0: i32) -> (i32, i32) {
    %c0_i32 = arith.constant 0 : i32
    %c0_i32_0 = arith.constant 0 : i32
    %c0_i32_1 = arith.constant 0 : i32
    return %c0_i32, %c0_i32_0 : i32, i32
  }
  func.func @transform_3(%arg0: i32) -> (i32, i32) {
    %c0_i32 = arith.constant 0 : i32
    %c0_i32_0 = arith.constant 0 : i32
    %c0_i32_1 = arith.constant 0 : i32
    return %c0_i32, %c0_i32_0 : i32, i32
  }
  func.func @transform_4(%arg0: i32) -> (i32, i32) {
    %c0_i32 = arith.constant 0 : i32
    %c0_i32_0 = arith.constant 0 : i32
    %c0_i32_1 = arith.constant 0 : i32
    return %c0_i32, %c0_i32_0 : i32, i32
  }
  func.func @transform_5(%arg0: i32) -> (i32, i32) {
    %c0_i32 = arith.constant 0 : i32
    %c0_i32_0 = arith.constant 0 : i32
    return %arg0, %c0_i32 : i32, i32
  }
}

</mosaic_0001>

<llo_original>
// kernel: tpu_custom_call.1
$region0: #{tpu_custom_call.1}
  #allocation0 [shape = 'u32[]', space=smem, size = 0x4, offset = 0x4, fixed_abs, tag = 'smem constant byte address 0x4 - core index']
  #allocation1 [shape = 'u32[72,128]{1,0:T(1,128)}', space=vmem, size = 0x9000, scoped, tag = 'internal scratch']
  %s0 = inlined_call_operand.vmem [shape: f32[8,20], index: 0, kind: input, shape index: {}]
  %s1 = inlined_call_operand.vmem [shape: f32[20,256], index: 1, kind: input, shape index: {}]
  %s2 = inlined_call_operand.vmem [shape: f32[1,256], index: 2, kind: input, shape index: {}]
  %s3 = inlined_call_operand.vmem [shape: f32[256,784], index: 3, kind: input, shape index: {}]
  %s4 = inlined_call_operand.vmem [shape: f32[1,784], index: 4, kind: input, shape index: {}]
  %s5 = inlined_call_operand.hbm [shape: f32[8,784], index: 5, kind: output, shape index: {}]
  %s6 = sld [smem:[#allocation0]]
  $region30: #{tpu_custom_call.1} parent=0
    _
  %s8 = ssub.s32 1, %s6
  %s9 = scalar_select 0, %s8, %s6
  $region1: #{tpu_custom_call.1} parent=0
    #allocation2 [shape = 'u8[28672]{0}', space=vmem, size = 0x7000, scoped, tag = 'output window, operand 0, single buffered']
    #allocation3 [shape = 's32[1]{0}', space=sflag, size = 0x4, scoped, tag = 'scoped memory for tpu_custom_call.1']
    %10 = vsyncpa [#allocation3], 0
    // Predicated region
    $region2: #{tpu_custom_call.1} parent=1 // pred_check
      _
    $region3: #{tpu_custom_call.1} parent=1 // pred_check_branch
      %12 = sbr.rel (0) target = $region5
    $region4: #{tpu_custom_call.1} parent=1 // pred_region
      _
    $region5: #{tpu_custom_call.1} parent=1 // pred_fallthru
      _
    // Predicated region
    $region6: #{tpu_custom_call.1} parent=1 // pred_check
      _
    $region7: #{tpu_custom_call.1} parent=1 // pred_check_branch
      %14 = sbr.rel (0) target = $region9
    $region8: #{tpu_custom_call.1} parent=1 // pred_region
      _
    $region9: #{tpu_custom_call.1} parent=1 // pred_fallthru
      _
    // Predicated region
    $region10: #{tpu_custom_call.1} parent=1 // pred_check
      _
    $region11: #{tpu_custom_call.1} parent=1 // pred_check_branch
      %16 = sbr.rel (0) target = $region13
    $region12: #{tpu_custom_call.1} parent=1 // pred_region
      _
    $region13: #{tpu_custom_call.1} parent=1 // pred_fallthru
      _
    // Predicated region
    $region14: #{tpu_custom_call.1} parent=1 // pred_check
      _
    $region15: #{tpu_custom_call.1} parent=1 // pred_check_branch
      %18 = sbr.rel (0) target = $region17
    $region16: #{tpu_custom_call.1} parent=1 // pred_region
      _
    $region17: #{tpu_custom_call.1} parent=1 // pred_fallthru
      _
    // Predicated region
    $region18: #{tpu_custom_call.1} parent=1 // pred_check
      _
    $region19: #{tpu_custom_call.1} parent=1 // pred_check_branch
      %20 = sbr.rel (0) target = $region21
    $region20: #{tpu_custom_call.1} parent=1 // pred_region
      _
    $region21: #{tpu_custom_call.1} parent=1 // pred_fallthru
      _
    %v21 = vld [vmem:[%s1] sm:$0xff]
    %v22 = vld [vmem:[%s1 + $0x8] sm:$0xff]
    %v23 = vld [vmem:[%s1 + $0x10] sm:$0xff]
    %v24 = vld [vmem:[%s1 + $0x18] sm:$0xff]
    %v25 = vld [vmem:[%s1 + $0x20] sm:$0xf]
    %v26 = vld [vmem:[%s1 + $0x28] sm:$0xf]
    %v27 = vld [vmem:[%s0] sm:$0xff]
    %v28 = vld [vmem:[%s2] sm:$0x3]
    %v30 = vperm.slane %v28, 0
    %v31 = vperm.slane %v28, 1
    %vm34 = vcmask 162816
    %v36 = vsel %vm34, %v27, 0
    %vm38 = vcmask 1043456
    %v40 = vsel %vm38, %v25, 0
    %v43 = vsel %vm38, %v26, 0
    %45 = vmatpush.msra.mxu0 0.0
    %46 = vmatpush.msra.mxu0 0.0
    %47 = vmatpush.msra.mxu0 0.0
    %48 = vmatpush.msra.mxu0 0.0
    %49 = vmatpush.msra.mxu0 0.0
    %50 = vmatpush.msra.mxu0 0.0
    %51 = vmatpush.msra.mxu0 0.0
    %52 = vmatpush.msra.mxu0 0.0
    %53 = vmatpush.msra.mxu0 0.0
    %54 = vmatpush.msra.mxu0 0.0
    %55 = vmatpush.msra.mxu0 0.0
    %56 = vmatpush.msra.mxu0 0.0
    %57 = vmatpush.msra.mxu0 0.0
    %v58 = vand.u32 %v40, 4294901760
    %59 = vmatpush.msra.mxu0 %v58
    %v60 = vand.u32 %v23, 4294901760
    %61 = vmatpush.msra.mxu0 %v60
    %v62 = vand.u32 %v21, 4294901760
    %63 = vmatpush.msra.mxu0 %v62
    %v64 = vand.u32 %v36, 4294901760
    %v65 = vsub.f32 %v36, %v64
    %v66 = vand.u32 %v65, 4294901760
    %v67 = vsub.f32 %v65, %v66
    %v68 = vand.u32 %v67, 4294901760
    %69 = vmatmul.f32.gmra.mxu0 %v68
    %v70 = vpop.f32.mrf.mxu0
    %v71 = vadd.f32 %v30, %v70
    %72 = vdwg.mxu0
    %73 = vmatpush.msra.mxu0 0.0
    %74 = vmatpush.msra.mxu0 0.0
    %75 = vmatpush.msra.mxu0 0.0
    %76 = vmatpush.msra.mxu0 0.0
    %77 = vmatpush.msra.mxu0 0.0
    %78 = vmatpush.msra.mxu0 0.0
    %79 = vmatpush.msra.mxu0 0.0
    %80 = vmatpush.msra.mxu0 0.0
    %81 = vmatpush.msra.mxu0 0.0
    %82 = vmatpush.msra.mxu0 0.0
    %83 = vmatpush.msra.mxu0 0.0
    %84 = vmatpush.msra.mxu0 0.0
    %85 = vmatpush.msra.mxu0 0.0
    %v86 = vand.u32 %v40, 4294901760
    %v87 = vsub.f32 %v40, %v86
    %v88 = vand.u32 %v87, 4294901760
    %v89 = vsub.f32 %v87, %v88
    %v90 = vand.u32 %v89, 4294901760
    %91 = vmatpush.msra.mxu0 %v90
    %v92 = vand.u32 %v23, 4294901760
    %v93 = vsub.f32 %v23, %v92
    %v94 = vand.u32 %v93, 4294901760
    %v95 = vsub.f32 %v93, %v94
    %v96 = vand.u32 %v95, 4294901760
    %97 = vmatpush.msra.mxu0 %v96
    %v98 = vand.u32 %v21, 4294901760
    %v99 = vsub.f32 %v21, %v98
    %v100 = vand.u32 %v99, 4294901760
    %v101 = vsub.f32 %v99, %v100
    %v102 = vand.u32 %v101, 4294901760
    %103 = vmatpush.msra.mxu0 %v102
    %v104 = vand.u32 %v36, 4294901760
    %105 = vmatmul.f32.gmra.mxu0 %v104
    %v106 = vpop.f32.mrf.mxu0
    %v107 = vadd.f32 %v71, %v106
    %108 = vdwg.mxu0
    %109 = vmatpush.msra.mxu0 0.0
    %110 = vmatpush.msra.mxu0 0.0
    %111 = vmatpush.msra.mxu0 0.0
    %112 = vmatpush.msra.mxu0 0.0
    %113 = vmatpush.msra.mxu0 0.0
    %114 = vmatpush.msra.mxu0 0.0
    %115 = vmatpush.msra.mxu0 0.0
    %116 = vmatpush.msra.mxu0 0.0
    %117 = vmatpush.msra.mxu0 0.0
    %118 = vmatpush.msra.mxu0 0.0
    %119 = vmatpush.msra.mxu0 0.0
    %120 = vmatpush.msra.mxu0 0.0
    %121 = vmatpush.msra.mxu0 0.0
    %v122 = vand.u32 %v40, 4294901760
    %v123 = vsub.f32 %v40, %v122
    %124 = vmatpush.msra.mxu0 %v123
    %v125 = vand.u32 %v23, 4294901760
    %v126 = vsub.f32 %v23, %v125
    %127 = vmatpush.msra.mxu0 %v126
    %v128 = vand.u32 %v21, 4294901760
    %v129 = vsub.f32 %v21, %v128
    %130 = vmatpush.msra.mxu0 %v129
    %v131 = vand.u32 %v36, 4294901760
    %v132 = vsub.f32 %v36, %v131
    %133 = vmatmul.f32.gmra.mxu0 %v132
    %v134 = vpop.f32.mrf.mxu0
    %v135 = vadd.f32 %v107, %v134
    %136 = vdwg.mxu0
    %137 = vmatpush.msra.mxu0 0.0
    %138 = vmatpush.msra.mxu0 0.0
    %139 = vmatpush.msra.mxu0 0.0
    %140 = vmatpush.msra.mxu0 0.0
    %141 = vmatpush.msra.mxu0 0.0
    %142 = vmatpush.msra.mxu0 0.0
    %143 = vmatpush.msra.mxu0 0.0
    %144 = vmatpush.msra.mxu0 0.0
    %145 = vmatpush.msra.mxu0 0.0
    %146 = vmatpush.msra.mxu0 0.0
    %147 = vmatpush.msra.mxu0 0.0
    %148 = vmatpush.msra.mxu0 0.0
    %149 = vmatpush.msra.mxu0 0.0
    %v150 = vand.u32 %v40, 4294901760
    %151 = vmatpush.msra.mxu0 %v150
    %v152 = vand.u32 %v23, 4294901760
    %153 = vmatpush.msra.mxu0 %v152
    %v154 = vand.u32 %v21, 4294901760
    %155 = vmatpush.msra.mxu0 %v154
    %v156 = vand.u32 %v36, 4294901760
    %v157 = vsub.f32 %v36, %v156
    %v158 = vand.u32 %v157, 4294901760
    %159 = vmatmul.f32.gmra.mxu0 %v158
    %v160 = vpop.f32.mrf.mxu0
    %v161 = vadd.f32 %v135, %v160
    %162 = vdwg.mxu0
    %163 = vmatpush.msra.mxu0 0.0
    %164 = vmatpush.msra.mxu0 0.0
    %165 = vmatpush.msra.mxu0 0.0
    %166 = vmatpush.msra.mxu0 0.0
    %167 = vmatpush.msra.mxu0 0.0
    %168 = vmatpush.msra.mxu0 0.0
    %169 = vmatpush.msra.mxu0 0.0
    %170 = vmatpush.msra.mxu0 0.0
    %171 = vmatpush.msra.mxu0 0.0
    %172 = vmatpush.msra.mxu0 0.0
    %173 = vmatpush.msra.mxu0 0.0
    %174 = vmatpush.msra.mxu0 0.0
    %175 = vmatpush.msra.mxu0 0.0
    %v176 = vand.u32 %v40, 4294901760
    %v177 = vsub.f32 %v40, %v176
    %v178 = vand.u32 %v177, 4294901760
    %179 = vmatpush.msra.mxu0 %v178
    %v180 = vand.u32 %v23, 4294901760
    %v181 = vsub.f32 %v23, %v180
    %v182 = vand.u32 %v181, 4294901760
    %183 = vmatpush.msra.mxu0 %v182
    %v184 = vand.u32 %v21, 4294901760
    %v185 = vsub.f32 %v21, %v184
    %v186 = vand.u32 %v185, 4294901760
    %187 = vmatpush.msra.mxu0 %v186
    %v188 = vand.u32 %v36, 4294901760
    %189 = vmatmul.f32.gmra.mxu0 %v188
    %v190 = vpop.f32.mrf.mxu0
    %v191 = vadd.f32 %v161, %v190
    %192 = vdwg.mxu0
    %193 = vmatpush.msra.mxu0 0.0
    %194 = vmatpush.msra.mxu0 0.0
    %195 = vmatpush.msra.mxu0 0.0
    %196 = vmatpush.msra.mxu0 0.0
    %197 = vmatpush.msra.mxu0 0.0
    %198 = vmatpush.msra.mxu0 0.0
    %199 = vmatpush.msra.mxu0 0.0
    %200 = vmatpush.msra.mxu0 0.0
    %201 = vmatpush.msra.mxu0 0.0
    %202 = vmatpush.msra.mxu0 0.0
    %203 = vmatpush.msra.mxu0 0.0
    %204 = vmatpush.msra.mxu0 0.0
    %205 = vmatpush.msra.mxu0 0.0
    %v206 = vand.u32 %v40, 4294901760
    %207 = vmatpush.msra.mxu0 %v206
    %v208 = vand.u32 %v23, 4294901760
    %209 = vmatpush.msra.mxu0 %v208
    %v210 = vand.u32 %v21, 4294901760
    %211 = vmatpush.msra.mxu0 %v210
    %v212 = vand.u32 %v36, 4294901760
    %213 = vmatmul.f32.gmra.mxu0 %v212
    %v214 = vpop.f32.mrf.mxu0
    %v215 = vadd.f32 %v191, %v214
    %216 = vdwg.mxu0
    %217 = vmatpush.msra.mxu0 0.0
    %218 = vmatpush.msra.mxu0 0.0
    %219 = vmatpush.msra.mxu0 0.0
    %220 = vmatpush.msra.mxu0 0.0
    %221 = vmatpush.msra.mxu0 0.0
    %222 = vmatpush.msra.mxu0 0.0
    %223 = vmatpush.msra.mxu0 0.0
    %224 = vmatpush.msra.mxu0 0.0
    %225 = vmatpush.msra.mxu0 0.0
    %226 = vmatpush.msra.mxu0 0.0
    %227 = vmatpush.msra.mxu0 0.0
    %228 = vmatpush.msra.mxu0 0.0
    %229 = vmatpush.msra.mxu0 0.0
    %v230 = vand.u32 %v43, 4294901760
    %231 = vmatpush.msra.mxu0 %v230
    %v232 = vand.u32 %v24, 4294901760
    %233 = vmatpush.msra.mxu0 %v232
    %v234 = vand.u32 %v22, 4294901760
    %235 = vmatpush.msra.mxu0 %v234
    %v236 = vand.u32 %v36, 4294901760
    %v237 = vsub.f32 %v36, %v236
    %v238 = vand.u32 %v237, 4294901760
    %v239 = vsub.f32 %v237, %v238
    %v240 = vand.u32 %v239, 4294901760
    %241 = vmatmul.f32.gmra.mxu0 %v240
    %v242 = vpop.f32.mrf.mxu0
    %v243 = vadd.f32 %v31, %v242
    %244 = vdwg.mxu0
    %245 = vmatpush.msra.mxu0 0.0
    %246 = vmatpush.msra.mxu0 0.0
    %247 = vmatpush.msra.mxu0 0.0
    %248 = vmatpush.msra.mxu0 0.0
    %249 = vmatpush.msra.mxu0 0.0
    %250 = vmatpush.msra.mxu0 0.0
    %251 = vmatpush.msra.mxu0 0.0
    %252 = vmatpush.msra.mxu0 0.0
    %253 = vmatpush.msra.mxu0 0.0
    %254 = vmatpush.msra.mxu0 0.0
    %255 = vmatpush.msra.mxu0 0.0
    %256 = vmatpush.msra.mxu0 0.0
    %257 = vmatpush.msra.mxu0 0.0
    %v258 = vand.u32 %v43, 4294901760
    %v259 = vsub.f32 %v43, %v258
    %v260 = vand.u32 %v259, 4294901760
    %v261 = vsub.f32 %v259, %v260
    %v262 = vand.u32 %v261, 4294901760
    %263 = vmatpush.msra.mxu0 %v262
    %v264 = vand.u32 %v24, 4294901760
    %v265 = vsub.f32 %v24, %v264
    %v266 = vand.u32 %v265, 4294901760
    %v267 = vsub.f32 %v265, %v266
    %v268 = vand.u32 %v267, 4294901760
    %269 = vmatpush.msra.mxu0 %v268
    %v270 = vand.u32 %v22, 4294901760
    %v271 = vsub.f32 %v22, %v270
    %v272 = vand.u32 %v271, 4294901760
    %v273 = vsub.f32 %v271, %v272
    %v274 = vand.u32 %v273, 4294901760
    %275 = vmatpush.msra.mxu0 %v274
    %v276 = vand.u32 %v36, 4294901760
    %277 = vmatmul.f32.gmra.mxu0 %v276
    %v278 = vpop.f32.mrf.mxu0
    %v279 = vadd.f32 %v243, %v278
    %280 = vdwg.mxu0
    %281 = vmatpush.msra.mxu0 0.0
    %282 = vmatpush.msra.mxu0 0.0
    %283 = vmatpush.msra.mxu0 0.0
    %284 = vmatpush.msra.mxu0 0.0
    %285 = vmatpush.msra.mxu0 0.0
    %286 = vmatpush.msra.mxu0 0.0
    %287 = vmatpush.msra.mxu0 0.0
    %288 = vmatpush.msra.mxu0 0.0
    %289 = vmatpush.msra.mxu0 0.0
    %290 = vmatpush.msra.mxu0 0.0
    %291 = vmatpush.msra.mxu0 0.0
    %292 = vmatpush.msra.mxu0 0.0
    %293 = vmatpush.msra.mxu0 0.0
    %v294 = vand.u32 %v43, 4294901760
    %v295 = vsub.f32 %v43, %v294
    %296 = vmatpush.msra.mxu0 %v295
    %v297 = vand.u32 %v24, 4294901760
    %v298 = vsub.f32 %v24, %v297
    %299 = vmatpush.msra.mxu0 %v298
    %v300 = vand.u32 %v22, 4294901760
    %v301 = vsub.f32 %v22, %v300
    %302 = vmatpush.msra.mxu0 %v301
    %v303 = vand.u32 %v36, 4294901760
    %v304 = vsub.f32 %v36, %v303
    %305 = vmatmul.f32.gmra.mxu0 %v304
    %v306 = vpop.f32.mrf.mxu0
    %v307 = vadd.f32 %v279, %v306
    %308 = vdwg.mxu0
    %309 = vmatpush.msra.mxu0 0.0
    %310 = vmatpush.msra.mxu0 0.0
    %311 = vmatpush.msra.mxu0 0.0
    %312 = vmatpush.msra.mxu0 0.0
    %313 = vmatpush.msra.mxu0 0.0
    %314 = vmatpush.msra.mxu0 0.0
    %315 = vmatpush.msra.mxu0 0.0
    %316 = vmatpush.msra.mxu0 0.0
    %317 = vmatpush.msra.mxu0 0.0
    %318 = vmatpush.msra.mxu0 0.0
    %319 = vmatpush.msra.mxu0 0.0
    %320 = vmatpush.msra.mxu0 0.0
    %321 = vmatpush.msra.mxu0 0.0
    %v322 = vand.u32 %v43, 4294901760
    %323 = vmatpush.msra.mxu0 %v322
    %v324 = vand.u32 %v24, 4294901760
    %325 = vmatpush.msra.mxu0 %v324
    %v326 = vand.u32 %v22, 4294901760
    %327 = vmatpush.msra.mxu0 %v326
    %v328 = vand.u32 %v36, 4294901760
    %v329 = vsub.f32 %v36, %v328
    %v330 = vand.u32 %v329, 4294901760
    %331 = vmatmul.f32.gmra.mxu0 %v330
    %v332 = vpop.f32.mrf.mxu0
    %v333 = vadd.f32 %v307, %v332
    %334 = vdwg.mxu0
    %335 = vmatpush.msra.mxu0 0.0
    %336 = vmatpush.msra.mxu0 0.0
    %337 = vmatpush.msra.mxu0 0.0
    %338 = vmatpush.msra.mxu0 0.0
    %339 = vmatpush.msra.mxu0 0.0
    %340 = vmatpush.msra.mxu0 0.0
    %341 = vmatpush.msra.mxu0 0.0
    %342 = vmatpush.msra.mxu0 0.0
    %343 = vmatpush.msra.mxu0 0.0
    %344 = vmatpush.msra.mxu0 0.0
    %345 = vmatpush.msra.mxu0 0.0
    %346 = vmatpush.msra.mxu0 0.0
    %347 = vmatpush.msra.mxu0 0.0
    %v348 = vand.u32 %v43, 4294901760
    %v349 = vsub.f32 %v43, %v348
    %v350 = vand.u32 %v349, 4294901760
    %351 = vmatpush.msra.mxu0 %v350
    %v352 = vand.u32 %v24, 4294901760
    %v353 = vsub.f32 %v24, %v352
    %v354 = vand.u32 %v353, 4294901760
    %355 = vmatpush.msra.mxu0 %v354
    %v356 = vand.u32 %v22, 4294901760
    %v357 = vsub.f32 %v22, %v356
    %v358 = vand.u32 %v357, 4294901760
    %359 = vmatpush.msra.mxu0 %v358
    %v360 = vand.u32 %v36, 4294901760
    %361 = vmatmul.f32.gmra.mxu0 %v360
    %v362 = vpop.f32.mrf.mxu0
    %v363 = vadd.f32 %v333, %v362
    %364 = vdwg.mxu0
    %365 = vmatpush.msra.mxu0 0.0
    %366 = vmatpush.msra.mxu0 0.0
    %367 = vmatpush.msra.mxu0 0.0
    %368 = vmatpush.msra.mxu0 0.0
    %369 = vmatpush.msra.mxu0 0.0
    %370 = vmatpush.msra.mxu0 0.0
    %371 = vmatpush.msra.mxu0 0.0
    %372 = vmatpush.msra.mxu0 0.0
    %373 = vmatpush.msra.mxu0 0.0
    %374 = vmatpush.msra.mxu0 0.0
    %375 = vmatpush.msra.mxu0 0.0
    %376 = vmatpush.msra.mxu0 0.0
    %377 = vmatpush.msra.mxu0 0.0
    %v378 = vand.u32 %v43, 4294901760
    %379 = vmatpush.msra.mxu0 %v378
    %v380 = vand.u32 %v24, 4294901760
    %381 = vmatpush.msra.mxu0 %v380
    %v382 = vand.u32 %v22, 4294901760
    %383 = vmatpush.msra.mxu0 %v382
    %v384 = vand.u32 %v36, 4294901760
    %385 = vmatmul.f32.gmra.mxu0 %v384
    %v386 = vpop.f32.mrf.mxu0
    %v387 = vadd.f32 %v363, %v386
    %388 = vdwg.mxu0
    %v389 = vmax.f32 %v215, 0.0
    %v390 = vmax.f32 %v387, 0.0
    %v391 = vld [vmem:[%s3] sm:$0xff]
    %v392 = vld [vmem:[%s3 + $0x8] sm:$0xff]
    %v393 = vld [vmem:[%s3 + $0x10] sm:$0xff]
    %v394 = vld [vmem:[%s3 + $0x18] sm:$0xff]
    %v395 = vld [vmem:[%s3 + $0x20] sm:$0xff]
    %v396 = vld [vmem:[%s3 + $0x28] sm:$0xff]
    %v397 = vld [vmem:[%s3 + $0x30] sm:$0xff]
    %v398 = vld [vmem:[%s3 + $0x38] sm:$0xff]
    %v399 = vld [vmem:[%s3 + $0x40] sm:$0xff]
    %v400 = vld [vmem:[%s3 + $0x48] sm:$0xff]
    %v401 = vld [vmem:[%s3 + $0x50] sm:$0xff]
    %v402 = vld [vmem:[%s3 + $0x58] sm:$0xff]
    %v403 = vld [vmem:[%s3 + $0x60] sm:$0xff]
    %v404 = vld [vmem:[%s3 + $0x68] sm:$0xff]
    %v405 = vld [vmem:[%s3 + $0x70] sm:$0xff]
    %v406 = vld [vmem:[%s3 + $0x78] sm:$0xff]
    %v407 = vld [vmem:[%s3 + $0x80] sm:$0xff]
    %v408 = vld [vmem:[%s3 + $0x88] sm:$0xff]
    %v409 = vld [vmem:[%s3 + $0x90] sm:$0xff]
    %v410 = vld [vmem:[%s3 + $0x98] sm:$0xff]
    %v411 = vld [vmem:[%s3 + $0xa0] sm:$0xff]
    %v412 = vld [vmem:[%s3 + $0xa8] sm:$0xff]
    %v413 = vld [vmem:[%s3 + $0xb0] sm:$0xff]
    %v414 = vld [vmem:[%s3 + $0xb8] sm:$0xff]
    %v415 = vld [vmem:[%s3 + $0xc0] sm:$0xff]
    %v416 = vld [vmem:[%s3 + $0xc8] sm:$0xff]
    %v417 = vld [vmem:[%s3 + $0xd0] sm:$0xff]
    %v418 = vld [vmem:[%s3 + $0xd8] sm:$0xff]
    %v419 = vld [vmem:[%s3 + $0xe0] sm:$0xff]
    %v420 = vld [vmem:[%s3 + $0xe8] sm:$0xff]
    %v421 = vld [vmem:[%s3 + $0xf0] sm:$0xff]
    %v422 = vld [vmem:[%s3 + $0xf8] sm:$0xff]
    %v423 = vld [vmem:[%s3 + $0x100] sm:$0xff]
    %v424 = vld [vmem:[%s3 + $0x108] sm:$0xff]
    %v425 = vld [vmem:[%s3 + $0x110] sm:$0xff]
    %v426 = vld [vmem:[%s3 + $0x118] sm:$0xff]
    %v427 = vld [vmem:[%s3 + $0x120] sm:$0xff]
    %v428 = vld [vmem:[%s3 + $0x128] sm:$0xff]
    %v429 = vld [vmem:[%s3 + $0x130] sm:$0xff]
    %v430 = vld [vmem:[%s3 + $0x138] sm:$0xff]
    %v431 = vld [vmem:[%s3 + $0x140] sm:$0xff]
    %v432 = vld [vmem:[%s3 + $0x148] sm:$0xff]
    %v433 = vld [vmem:[%s3 + $0x150] sm:$0xff]
    %v434 = vld [vmem:[%s3 + $0x158] sm:$0xff]
    %v435 = vld [vmem:[%s3 + $0x160] sm:$0xff]
    %v436 = vld [vmem:[%s3 + $0x168] sm:$0xff]
    %v437 = vld [vmem:[%s3 + $0x170] sm:$0xff]
    %v438 = vld [vmem:[%s3 + $0x178] sm:$0xff]
    %v439 = vld [vmem:[%s3 + $0x180] sm:$0xff]
    %v440 = vld [vmem:[%s3 + $0x188] sm:$0xff]
    %v441 = vld [vmem:[%s3 + $0x190] sm:$0xff]
    %v442 = vld [vmem:[%s3 + $0x198] sm:$0xff]
    %v443 = vld [vmem:[%s3 + $0x1a0] sm:$0xff]
    %v444 = vld [vmem:[%s3 + $0x1a8] sm:$0xff]
    %v445 = vld [vmem:[%s3 + $0x1b0] sm:$0xff]
    %v446 = vld [vmem:[%s3 + $0x1b8] sm:$0xff]
    %v447 = vld [vmem:[%s3 + $0x1c0] sm:$0xff]
    %v448 = vld [vmem:[%s3 + $0x1c8] sm:$0xff]
    %v449 = vld [vmem:[%s3 + $0x1d0] sm:$0xff]
    %v450 = vld [vmem:[%s3 + $0x1d8] sm:$0xff]
    %v451 = vld [vmem:[%s3 + $0x1e0] sm:$0xff]
    %v452 = vld [vmem:[%s3 + $0x1e8] sm:$0xff]
    %v453 = vld [vmem:[%s3 + $0x1f0] sm:$0xff]
    %v454 = vld [vmem:[%s3 + $0x1f8] sm:$0xff]
    %v455 = vld [vmem:[%s3 + $0x200] sm:$0xff]
    %v456 = vld [vmem:[%s3 + $0x208] sm:$0xff]
    %v457 = vld [vmem:[%s3 + $0x210] sm:$0xff]
    %v458 = vld [vmem:[%s3 + $0x218] sm:$0xff]
    %v459 = vld [vmem:[%s3 + $0x220] sm:$0xff]
    %v460 = vld [vmem:[%s3 + $0x228] sm:$0xff]
    %v461 = vld [vmem:[%s3 + $0x230] sm:$0xff]
    %v462 = vld [vmem:[%s3 + $0x238] sm:$0xff]
    %v463 = vld [vmem:[%s3 + $0x240] sm:$0xff]
    %v464 = vld [vmem:[%s3 + $0x248] sm:$0xff]
    %v465 = vld [vmem:[%s3 + $0x250] sm:$0xff]
    %v466 = vld [vmem:[%s3 + $0x258] sm:$0xff]
    %v467 = vld [vmem:[%s3 + $0x260] sm:$0xff]
    %v468 = vld [vmem:[%s3 + $0x268] sm:$0xff]
    %v469 = vld [vmem:[%s3 + $0x270] sm:$0xff]
    %v470 = vld [vmem:[%s3 + $0x278] sm:$0xff]
    %v471 = vld [vmem:[%s3 + $0x280] sm:$0xff]
    %v472 = vld [vmem:[%s3 + $0x288] sm:$0xff]
    %v473 = vld [vmem:[%s3 + $0x290] sm:$0xff]
    %v474 = vld [vmem:[%s3 + $0x298] sm:$0xff]
    %v475 = vld [vmem:[%s3 + $0x2a0] sm:$0xff]
    %v476 = vld [vmem:[%s3 + $0x2a8] sm:$0xff]
    %v477 = vld [vmem:[%s3 + $0x2b0] sm:$0xff]
    %v478 = vld [vmem:[%s3 + $0x2b8] sm:$0xff]
    %v479 = vld [vmem:[%s3 + $0x2c0] sm:$0xff]
    %v480 = vld [vmem:[%s3 + $0x2c8] sm:$0xff]
    %v481 = vld [vmem:[%s3 + $0x2d0] sm:$0xff]
    %v482 = vld [vmem:[%s3 + $0x2d8] sm:$0xff]
    %v483 = vld [vmem:[%s3 + $0x2e0] sm:$0xff]
    %v484 = vld [vmem:[%s3 + $0x2e8] sm:$0xff]
    %v485 = vld [vmem:[%s3 + $0x2f0] sm:$0xff]
    %v486 = vld [vmem:[%s3 + $0x2f8] sm:$0xff]
    %v487 = vld [vmem:[%s3 + $0x300] sm:$0xff]
    %v488 = vld [vmem:[%s3 + $0x308] sm:$0xff]
    %v489 = vld [vmem:[%s3 + $0x310] sm:$0xff]
    %v490 = vld [vmem:[%s3 + $0x318] sm:$0xff]
    %v491 = vld [vmem:[%s3 + $0x320] sm:$0xff]
    %v492 = vld [vmem:[%s3 + $0x328] sm:$0xff]
    %v493 = vld [vmem:[%s3 + $0x330] sm:$0xff]
    %v494 = vld [vmem:[%s3 + $0x338] sm:$0xff]
    %v495 = vld [vmem:[%s3 + $0x340] sm:$0xff]
    %v496 = vld [vmem:[%s3 + $0x348] sm:$0xff]
    %v497 = vld [vmem:[%s3 + $0x350] sm:$0xff]
    %v498 = vld [vmem:[%s3 + $0x358] sm:$0xff]
    %v499 = vld [vmem:[%s3 + $0x360] sm:$0xff]
    %v500 = vld [vmem:[%s3 + $0x368] sm:$0xff]
    %v501 = vld [vmem:[%s3 + $0x370] sm:$0xff]
    %v502 = vld [vmem:[%s3 + $0x378] sm:$0xff]
    %v503 = vld [vmem:[%s3 + $0x380] sm:$0xff]
    %v504 = vld [vmem:[%s3 + $0x388] sm:$0xff]
    %v505 = vld [vmem:[%s3 + $0x390] sm:$0xff]
    %v506 = vld [vmem:[%s3 + $0x398] sm:$0xff]
    %v507 = vld [vmem:[%s3 + $0x3a0] sm:$0xff]
    %v508 = vld [vmem:[%s3 + $0x3a8] sm:$0xff]
    %v509 = vld [vmem:[%s3 + $0x3b0] sm:$0xff]
    %v510 = vld [vmem:[%s3 + $0x3b8] sm:$0xff]
    %v511 = vld [vmem:[%s3 + $0x3c0] sm:$0xff]
    %v512 = vld [vmem:[%s3 + $0x3c8] sm:$0xff]
    %v513 = vld [vmem:[%s3 + $0x3d0] sm:$0xff]
    %v514 = vld [vmem:[%s3 + $0x3d8] sm:$0xff]
    %v515 = vld [vmem:[%s3 + $0x3e0] sm:$0xff]
    %v516 = vld [vmem:[%s3 + $0x3e8] sm:$0xff]
    %v517 = vld [vmem:[%s3 + $0x3f0] sm:$0xff]
    %v518 = vld [vmem:[%s3 + $0x3f8] sm:$0xff]
    %v519 = vld [vmem:[%s3 + $0x400] sm:$0xff]
    %v520 = vld [vmem:[%s3 + $0x408] sm:$0xff]
    %v521 = vld [vmem:[%s3 + $0x410] sm:$0xff]
    %v522 = vld [vmem:[%s3 + $0x418] sm:$0xff]
    %v523 = vld [vmem:[%s3 + $0x420] sm:$0xff]
    %v524 = vld [vmem:[%s3 + $0x428] sm:$0xff]
    %v525 = vld [vmem:[%s3 + $0x430] sm:$0xff]
    %v526 = vld [vmem:[%s3 + $0x438] sm:$0xff]
    %v527 = vld [vmem:[%s3 + $0x440] sm:$0xff]
    %v528 = vld [vmem:[%s3 + $0x448] sm:$0xff]
    %v529 = vld [vmem:[%s3 + $0x450] sm:$0xff]
    %v530 = vld [vmem:[%s3 + $0x458] sm:$0xff]
    %v531 = vld [vmem:[%s3 + $0x460] sm:$0xff]
    %v532 = vld [vmem:[%s3 + $0x468] sm:$0xff]
    %v533 = vld [vmem:[%s3 + $0x470] sm:$0xff]
    %v534 = vld [vmem:[%s3 + $0x478] sm:$0xff]
    %v535 = vld [vmem:[%s3 + $0x480] sm:$0xff]
    %v536 = vld [vmem:[%s3 + $0x488] sm:$0xff]
    %v537 = vld [vmem:[%s3 + $0x490] sm:$0xff]
    %v538 = vld [vmem:[%s3 + $0x498] sm:$0xff]
    %v539 = vld [vmem:[%s3 + $0x4a0] sm:$0xff]
    %v540 = vld [vmem:[%s3 + $0x4a8] sm:$0xff]
    %v541 = vld [vmem:[%s3 + $0x4b0] sm:$0xff]
    %v542 = vld [vmem:[%s3 + $0x4b8] sm:$0xff]
    %v543 = vld [vmem:[%s3 + $0x4c0] sm:$0xff]
    %v544 = vld [vmem:[%s3 + $0x4c8] sm:$0xff]
    %v545 = vld [vmem:[%s3 + $0x4d0] sm:$0xff]
    %v546 = vld [vmem:[%s3 + $0x4d8] sm:$0xff]
    %v547 = vld [vmem:[%s3 + $0x4e0] sm:$0xff]
    %v548 = vld [vmem:[%s3 + $0x4e8] sm:$0xff]
    %v549 = vld [vmem:[%s3 + $0x4f0] sm:$0xff]
    %v550 = vld [vmem:[%s3 + $0x4f8] sm:$0xff]
    %v551 = vld [vmem:[%s3 + $0x500] sm:$0xff]
    %v552 = vld [vmem:[%s3 + $0x508] sm:$0xff]
    %v553 = vld [vmem:[%s3 + $0x510] sm:$0xff]
    %v554 = vld [vmem:[%s3 + $0x518] sm:$0xff]
    %v555 = vld [vmem:[%s3 + $0x520] sm:$0xff]
    %v556 = vld [vmem:[%s3 + $0x528] sm:$0xff]
    %v557 = vld [vmem:[%s3 + $0x530] sm:$0xff]
    %v558 = vld [vmem:[%s3 + $0x538] sm:$0xff]
    %v559 = vld [vmem:[%s3 + $0x540] sm:$0xff]
    %v560 = vld [vmem:[%s3 + $0x548] sm:$0xff]
    %v561 = vld [vmem:[%s3 + $0x550] sm:$0xff]
    %v562 = vld [vmem:[%s3 + $0x558] sm:$0xff]
    %v563 = vld [vmem:[%s3 + $0x560] sm:$0xff]
    %v564 = vld [vmem:[%s3 + $0x568] sm:$0xff]
    %v565 = vld [vmem:[%s3 + $0x570] sm:$0xff]
    %v566 = vld [vmem:[%s3 + $0x578] sm:$0xff]
    %v567 = vld [vmem:[%s3 + $0x580] sm:$0xff]
    %v568 = vld [vmem:[%s3 + $0x588] sm:$0xff]
    %v569 = vld [vmem:[%s3 + $0x590] sm:$0xff]
    %v570 = vld [vmem:[%s3 + $0x598] sm:$0xff]
    %v571 = vld [vmem:[%s3 + $0x5a0] sm:$0xff]
    %v572 = vld [vmem:[%s3 + $0x5a8] sm:$0xff]
    %v573 = vld [vmem:[%s3 + $0x5b0] sm:$0xff]
    %v574 = vld [vmem:[%s3 + $0x5b8] sm:$0xff]
    %v575 = vld [vmem:[%s3 + $0x5c0] sm:$0xff]
    %v576 = vld [vmem:[%s3 + $0x5c8] sm:$0xff]
    %v577 = vld [vmem:[%s3 + $0x5d0] sm:$0xff]
    %v578 = vld [vmem:[%s3 + $0x5d8] sm:$0xff]
    %v579 = vld [vmem:[%s3 + $0x5e0] sm:$0xff]
    %v580 = vld [vmem:[%s3 + $0x5e8] sm:$0xff]
    %v581 = vld [vmem:[%s3 + $0x5f0] sm:$0xff]
    %v582 = vld [vmem:[%s3 + $0x5f8] sm:$0xff]
    %v583 = vld [vmem:[%s3 + $0x600] sm:$0xff]
    %v584 = vld [vmem:[%s3 + $0x608] sm:$0xff]
    %v585 = vld [vmem:[%s3 + $0x610] sm:$0xff]
    %v586 = vld [vmem:[%s3 + $0x618] sm:$0xff]
    %v587 = vld [vmem:[%s3 + $0x620] sm:$0xff]
    %v588 = vld [vmem:[%s3 + $0x628] sm:$0xff]
    %v589 = vld [vmem:[%s3 + $0x630] sm:$0xff]
    %v590 = vld [vmem:[%s3 + $0x638] sm:$0xff]
    %v591 = vld [vmem:[%s3 + $0x640] sm:$0xff]
    %v592 = vld [vmem:[%s3 + $0x648] sm:$0xff]
    %v593 = vld [vmem:[%s3 + $0x650] sm:$0xff]
    %v594 = vld [vmem:[%s3 + $0x658] sm:$0xff]
    %v595 = vld [vmem:[%s3 + $0x660] sm:$0xff]
    %v596 = vld [vmem:[%s3 + $0x668] sm:$0xff]
    %v597 = vld [vmem:[%s3 + $0x670] sm:$0xff]
    %v598 = vld [vmem:[%s3 + $0x678] sm:$0xff]
    %v599 = vld [vmem:[%s3 + $0x680] sm:$0xff]
    %v600 = vld [vmem:[%s3 + $0x688] sm:$0xff]
    %v601 = vld [vmem:[%s3 + $0x690] sm:$0xff]
    %v602 = vld [vmem:[%s3 + $0x698] sm:$0xff]
    %v603 = vld [vmem:[%s3 + $0x6a0] sm:$0xff]
    %v604 = vld [vmem:[%s3 + $0x6a8] sm:$0xff]
    %v605 = vld [vmem:[%s3 + $0x6b0] sm:$0xff]
    %v606 = vld [vmem:[%s3 + $0x6b8] sm:$0xff]
    %v607 = vld [vmem:[%s3 + $0x6c0] sm:$0xff]
    %v608 = vld [vmem:[%s3 + $0x6c8] sm:$0xff]
    %v609 = vld [vmem:[%s3 + $0x6d0] sm:$0xff]
    %v610 = vld [vmem:[%s3 + $0x6d8] sm:$0xff]
    %v611 = vld [vmem:[%s3 + $0x6e0] sm:$0xff]
    %v612 = vld [vmem:[%s3 + $0x6e8] sm:$0xff]
    %v613 = vld [vmem:[%s3 + $0x6f0] sm:$0xff]
    %v614 = vld [vmem:[%s3 + $0x6f8] sm:$0xff]
    %v615 = vld [vmem:[%s4] sm:$0x7f]
    %v617 = vperm.slane %v615, 0
    %v618 = vperm.slane %v615, 1
    %v619 = vperm.slane %v615, 2
    %v620 = vperm.slane %v615, 3
    %v621 = vperm.slane %v615, 4
    %v622 = vperm.slane %v615, 5
    %v623 = vperm.slane %v615, 6
    %v631 = vand.u32 %v496, 4294901760
    %632 = vmatpush.msra.mxu0 %v631
    %v633 = vand.u32 %v489, 4294901760
    %634 = vmatpush.msra.mxu0 %v633
    %v635 = vand.u32 %v482, 4294901760
    %636 = vmatpush.msra.mxu0 %v635
    %v637 = vand.u32 %v475, 4294901760
    %638 = vmatpush.msra.mxu0 %v637
    %v639 = vand.u32 %v468, 4294901760
    %640 = vmatpush.msra.mxu0 %v639
    %v641 = vand.u32 %v461, 4294901760
    %642 = vmatpush.msra.mxu0 %v641
    %v643 = vand.u32 %v454, 4294901760
    %644 = vmatpush.msra.mxu0 %v643
    %v645 = vand.u32 %v447, 4294901760
    %646 = vmatpush.msra.mxu0 %v645
    %v647 = vand.u32 %v440, 4294901760
    %648 = vmatpush.msra.mxu0 %v647
    %v649 = vand.u32 %v433, 4294901760
    %650 = vmatpush.msra.mxu0 %v649
    %v651 = vand.u32 %v426, 4294901760
    %652 = vmatpush.msra.mxu0 %v651
    %v653 = vand.u32 %v419, 4294901760
    %654 = vmatpush.msra.mxu0 %v653
    %v655 = vand.u32 %v412, 4294901760
    %656 = vmatpush.msra.mxu0 %v655
    %v657 = vand.u32 %v405, 4294901760
    %658 = vmatpush.msra.mxu0 %v657
    %v659 = vand.u32 %v398, 4294901760
    %660 = vmatpush.msra.mxu0 %v659
    %v661 = vand.u32 %v391, 4294901760
    %662 = vmatpush.msra.mxu0 %v661
    %v663 = vand.u32 %v389, 4294901760
    %v664 = vsub.f32 %v389, %v663
    %v665 = vand.u32 %v664, 4294901760
    %v666 = vsub.f32 %v664, %v665
    %v667 = vand.u32 %v666, 4294901760
    %668 = vmatmul.f32.gmra.mxu0 %v667
    %v669 = vpop.f32.mrf.mxu0
    %v670 = vadd.f32 %v617, %v669
    %671 = vdwg.mxu0
    %v672 = vand.u32 %v496, 4294901760
    %v673 = vsub.f32 %v496, %v672
    %v674 = vand.u32 %v673, 4294901760
    %v675 = vsub.f32 %v673, %v674
    %v676 = vand.u32 %v675, 4294901760
    %677 = vmatpush.msra.mxu0 %v676
    %v678 = vand.u32 %v489, 4294901760
    %v679 = vsub.f32 %v489, %v678
    %v680 = vand.u32 %v679, 4294901760
    %v681 = vsub.f32 %v679, %v680
    %v682 = vand.u32 %v681, 4294901760
    %683 = vmatpush.msra.mxu0 %v682
    %v684 = vand.u32 %v482, 4294901760
    %v685 = vsub.f32 %v482, %v684
    %v686 = vand.u32 %v685, 4294901760
    %v687 = vsub.f32 %v685, %v686
    %v688 = vand.u32 %v687, 4294901760
    %689 = vmatpush.msra.mxu0 %v688
    %v690 = vand.u32 %v475, 4294901760
    %v691 = vsub.f32 %v475, %v690
    %v692 = vand.u32 %v691, 4294901760
    %v693 = vsub.f32 %v691, %v692
    %v694 = vand.u32 %v693, 4294901760
    %695 = vmatpush.msra.mxu0 %v694
    %v696 = vand.u32 %v468, 4294901760
    %v697 = vsub.f32 %v468, %v696
    %v698 = vand.u32 %v697, 4294901760
    %v699 = vsub.f32 %v697, %v698
    %v700 = vand.u32 %v699, 4294901760
    %701 = vmatpush.msra.mxu0 %v700
    %v702 = vand.u32 %v461, 4294901760
    %v703 = vsub.f32 %v461, %v702
    %v704 = vand.u32 %v703, 4294901760
    %v705 = vsub.f32 %v703, %v704
    %v706 = vand.u32 %v705, 4294901760
    %707 = vmatpush.msra.mxu0 %v706
    %v708 = vand.u32 %v454, 4294901760
    %v709 = vsub.f32 %v454, %v708
    %v710 = vand.u32 %v709, 4294901760
    %v711 = vsub.f32 %v709, %v710
    %v712 = vand.u32 %v711, 4294901760
    %713 = vmatpush.msra.mxu0 %v712
    %v714 = vand.u32 %v447, 4294901760
    %v715 = vsub.f32 %v447, %v714
    %v716 = vand.u32 %v715, 4294901760
    %v717 = vsub.f32 %v715, %v716
    %v718 = vand.u32 %v717, 4294901760
    %719 = vmatpush.msra.mxu0 %v718
    %v720 = vand.u32 %v440, 4294901760
    %v721 = vsub.f32 %v440, %v720
    %v722 = vand.u32 %v721, 4294901760
    %v723 = vsub.f32 %v721, %v722
    %v724 = vand.u32 %v723, 4294901760
    %725 = vmatpush.msra.mxu0 %v724
    %v726 = vand.u32 %v433, 4294901760
    %v727 = vsub.f32 %v433, %v726
    %v728 = vand.u32 %v727, 4294901760
    %v729 = vsub.f32 %v727, %v728
    %v730 = vand.u32 %v729, 4294901760
    %731 = vmatpush.msra.mxu0 %v730
    %v732 = vand.u32 %v426, 4294901760
    %v733 = vsub.f32 %v426, %v732
    %v734 = vand.u32 %v733, 4294901760
    %v735 = vsub.f32 %v733, %v734
    %v736 = vand.u32 %v735, 4294901760
    %737 = vmatpush.msra.mxu0 %v736
    %v738 = vand.u32 %v419, 4294901760
    %v739 = vsub.f32 %v419, %v738
    %v740 = vand.u32 %v739, 4294901760
    %v741 = vsub.f32 %v739, %v740
    %v742 = vand.u32 %v741, 4294901760
    %743 = vmatpush.msra.mxu0 %v742
    %v744 = vand.u32 %v412, 4294901760
    %v745 = vsub.f32 %v412, %v744
    %v746 = vand.u32 %v745, 4294901760
    %v747 = vsub.f32 %v745, %v746
    %v748 = vand.u32 %v747, 4294901760
    %749 = vmatpush.msra.mxu0 %v748
    %v750 = vand.u32 %v405, 4294901760
    %v751 = vsub.f32 %v405, %v750
    %v752 = vand.u32 %v751, 4294901760
    %v753 = vsub.f32 %v751, %v752
    %v754 = vand.u32 %v753, 4294901760
    %755 = vmatpush.msra.mxu0 %v754
    %v756 = vand.u32 %v398, 4294901760
    %v757 = vsub.f32 %v398, %v756
    %v758 = vand.u32 %v757, 4294901760
    %v759 = vsub.f32 %v757, %v758
    %v760 = vand.u32 %v759, 4294901760
    %761 = vmatpush.msra.mxu0 %v760
    %v762 = vand.u32 %v391, 4294901760
    %v763 = vsub.f32 %v391, %v762
    %v764 = vand.u32 %v763, 4294901760
    %v765 = vsub.f32 %v763, %v764
    %v766 = vand.u32 %v765, 4294901760
    %767 = vmatpush.msra.mxu0 %v766
    %v768 = vand.u32 %v389, 4294901760
    %769 = vmatmul.f32.gmra.mxu0 %v768
    %v770 = vpop.f32.mrf.mxu0
    %v771 = vadd.f32 %v670, %v770
    %772 = vdwg.mxu0
    %v773 = vand.u32 %v496, 4294901760
    %v774 = vsub.f32 %v496, %v773
    %775 = vmatpush.msra.mxu0 %v774
    %v776 = vand.u32 %v489, 4294901760
    %v777 = vsub.f32 %v489, %v776
    %778 = vmatpush.msra.mxu0 %v777
    %v779 = vand.u32 %v482, 4294901760
    %v780 = vsub.f32 %v482, %v779
    %781 = vmatpush.msra.mxu0 %v780
    %v782 = vand.u32 %v475, 4294901760
    %v783 = vsub.f32 %v475, %v782
    %784 = vmatpush.msra.mxu0 %v783
    %v785 = vand.u32 %v468, 4294901760
    %v786 = vsub.f32 %v468, %v785
    %787 = vmatpush.msra.mxu0 %v786
    %v788 = vand.u32 %v461, 4294901760
    %v789 = vsub.f32 %v461, %v788
    %790 = vmatpush.msra.mxu0 %v789
    %v791 = vand.u32 %v454, 4294901760
    %v792 = vsub.f32 %v454, %v791
    %793 = vmatpush.msra.mxu0 %v792
    %v794 = vand.u32 %v447, 4294901760
    %v795 = vsub.f32 %v447, %v794
    %796 = vmatpush.msra.mxu0 %v795
    %v797 = vand.u32 %v440, 4294901760
    %v798 = vsub.f32 %v440, %v797
    %799 = vmatpush.msra.mxu0 %v798
    %v800 = vand.u32 %v433, 4294901760
    %v801 = vsub.f32 %v433, %v800
    %802 = vmatpush.msra.mxu0 %v801
    %v803 = vand.u32 %v426, 4294901760
    %v804 = vsub.f32 %v426, %v803
    %805 = vmatpush.msra.mxu0 %v804
    %v806 = vand.u32 %v419, 4294901760
    %v807 = vsub.f32 %v419, %v806
    %808 = vmatpush.msra.mxu0 %v807
    %v809 = vand.u32 %v412, 4294901760
    %v810 = vsub.f32 %v412, %v809
    %811 = vmatpush.msra.mxu0 %v810
    %v812 = vand.u32 %v405, 4294901760
    %v813 = vsub.f32 %v405, %v812
    %814 = vmatpush.msra.mxu0 %v813
    %v815 = vand.u32 %v398, 4294901760
    %v816 = vsub.f32 %v398, %v815
    %817 = vmatpush.msra.mxu0 %v816
    %v818 = vand.u32 %v391, 4294901760
    %v819 = vsub.f32 %v391, %v818
    %820 = vmatpush.msra.mxu0 %v819
    %v821 = vand.u32 %v389, 4294901760
    %v822 = vsub.f32 %v389, %v821
    %823 = vmatmul.f32.gmra.mxu0 %v822
    %v824 = vpop.f32.mrf.mxu0
    %v825 = vadd.f32 %v771, %v824
    %826 = vdwg.mxu0
    %v827 = vand.u32 %v496, 4294901760
    %828 = vmatpush.msra.mxu0 %v827
    %v829 = vand.u32 %v489, 4294901760
    %830 = vmatpush.msra.mxu0 %v829
    %v831 = vand.u32 %v482, 4294901760
    %832 = vmatpush.msra.mxu0 %v831
    %v833 = vand.u32 %v475, 4294901760
    %834 = vmatpush.msra.mxu0 %v833
    %v835 = vand.u32 %v468, 4294901760
    %836 = vmatpush.msra.mxu0 %v835
    %v837 = vand.u32 %v461, 4294901760
    %838 = vmatpush.msra.mxu0 %v837
    %v839 = vand.u32 %v454, 4294901760
    %840 = vmatpush.msra.mxu0 %v839
    %v841 = vand.u32 %v447, 4294901760
    %842 = vmatpush.msra.mxu0 %v841
    %v843 = vand.u32 %v440, 4294901760
    %844 = vmatpush.msra.mxu0 %v843
    %v845 = vand.u32 %v433, 4294901760
    %846 = vmatpush.msra.mxu0 %v845
    %v847 = vand.u32 %v426, 4294901760
    %848 = vmatpush.msra.mxu0 %v847
    %v849 = vand.u32 %v419, 4294901760
    %850 = vmatpush.msra.mxu0 %v849
    %v851 = vand.u32 %v412, 4294901760
    %852 = vmatpush.msra.mxu0 %v851
    %v853 = vand.u32 %v405, 4294901760
    %854 = vmatpush.msra.mxu0 %v853
    %v855 = vand.u32 %v398, 4294901760
    %856 = vmatpush.msra.mxu0 %v855
    %v857 = vand.u32 %v391, 4294901760
    %858 = vmatpush.msra.mxu0 %v857
    %v859 = vand.u32 %v389, 4294901760
    %v860 = vsub.f32 %v389, %v859
    %v861 = vand.u32 %v860, 4294901760
    %862 = vmatmul.f32.gmra.mxu0 %v861
    %v863 = vpop.f32.mrf.mxu0
    %v864 = vadd.f32 %v825, %v863
    %865 = vdwg.mxu0
    %v866 = vand.u32 %v496, 4294901760
    %v867 = vsub.f32 %v496, %v866
    %v868 = vand.u32 %v867, 4294901760
    %869 = vmatpush.msra.mxu0 %v868
    %v870 = vand.u32 %v489, 4294901760
    %v871 = vsub.f32 %v489, %v870
    %v872 = vand.u32 %v871, 4294901760
    %873 = vmatpush.msra.mxu0 %v872
    %v874 = vand.u32 %v482, 4294901760
    %v875 = vsub.f32 %v482, %v874
    %v876 = vand.u32 %v875, 4294901760
    %877 = vmatpush.msra.mxu0 %v876
    %v878 = vand.u32 %v475, 4294901760
    %v879 = vsub.f32 %v475, %v878
    %v880 = vand.u32 %v879, 4294901760
    %881 = vmatpush.msra.mxu0 %v880
    %v882 = vand.u32 %v468, 4294901760
    %v883 = vsub.f32 %v468, %v882
    %v884 = vand.u32 %v883, 4294901760
    %885 = vmatpush.msra.mxu0 %v884
    %v886 = vand.u32 %v461, 4294901760
    %v887 = vsub.f32 %v461, %v886
    %v888 = vand.u32 %v887, 4294901760
    %889 = vmatpush.msra.mxu0 %v888
    %v890 = vand.u32 %v454, 4294901760
    %v891 = vsub.f32 %v454, %v890
    %v892 = vand.u32 %v891, 4294901760
    %893 = vmatpush.msra.mxu0 %v892
    %v894 = vand.u32 %v447, 4294901760
    %v895 = vsub.f32 %v447, %v894
    %v896 = vand.u32 %v895, 4294901760
    %897 = vmatpush.msra.mxu0 %v896
    %v898 = vand.u32 %v440, 4294901760
    %v899 = vsub.f32 %v440, %v898
    %v900 = vand.u32 %v899, 4294901760
    %901 = vmatpush.msra.mxu0 %v900
    %v902 = vand.u32 %v433, 4294901760
    %v903 = vsub.f32 %v433, %v902
    %v904 = vand.u32 %v903, 4294901760
    %905 = vmatpush.msra.mxu0 %v904
    %v906 = vand.u32 %v426, 4294901760
    %v907 = vsub.f32 %v426, %v906
    %v908 = vand.u32 %v907, 4294901760
    %909 = vmatpush.msra.mxu0 %v908
    %v910 = vand.u32 %v419, 4294901760
    %v911 = vsub.f32 %v419, %v910
    %v912 = vand.u32 %v911, 4294901760
    %913 = vmatpush.msra.mxu0 %v912
    %v914 = vand.u32 %v412, 4294901760
    %v915 = vsub.f32 %v412, %v914
    %v916 = vand.u32 %v915, 4294901760
    %917 = vmatpush.msra.mxu0 %v916
    %v918 = vand.u32 %v405, 4294901760
    %v919 = vsub.f32 %v405, %v918
    %v920 = vand.u32 %v919, 4294901760
    %921 = vmatpush.msra.mxu0 %v920
    %v922 = vand.u32 %v398, 4294901760
    %v923 = vsub.f32 %v398, %v922
    %v924 = vand.u32 %v923, 4294901760
    %925 = vmatpush.msra.mxu0 %v924
    %v926 = vand.u32 %v391, 4294901760
    %v927 = vsub.f32 %v391, %v926
    %v928 = vand.u32 %v927, 4294901760
    %929 = vmatpush.msra.mxu0 %v928
    %v930 = vand.u32 %v389, 4294901760
    %931 = vmatmul.f32.gmra.mxu0 %v930
    %v932 = vpop.f32.mrf.mxu0
    %v933 = vadd.f32 %v864, %v932
    %934 = vdwg.mxu0
    %v935 = vand.u32 %v496, 4294901760
    %936 = vmatpush.msra.mxu0 %v935
    %v937 = vand.u32 %v489, 4294901760
    %938 = vmatpush.msra.mxu0 %v937
    %v939 = vand.u32 %v482, 4294901760
    %940 = vmatpush.msra.mxu0 %v939
    %v941 = vand.u32 %v475, 4294901760
    %942 = vmatpush.msra.mxu0 %v941
    %v943 = vand.u32 %v468, 4294901760
    %944 = vmatpush.msra.mxu0 %v943
    %v945 = vand.u32 %v461, 4294901760
    %946 = vmatpush.msra.mxu0 %v945
    %v947 = vand.u32 %v454, 4294901760
    %948 = vmatpush.msra.mxu0 %v947
    %v949 = vand.u32 %v447, 4294901760
    %950 = vmatpush.msra.mxu0 %v949
    %v951 = vand.u32 %v440, 4294901760
    %952 = vmatpush.msra.mxu0 %v951
    %v953 = vand.u32 %v433, 4294901760
    %954 = vmatpush.msra.mxu0 %v953
    %v955 = vand.u32 %v426, 4294901760
    %956 = vmatpush.msra.mxu0 %v955
    %v957 = vand.u32 %v419, 4294901760
    %958 = vmatpush.msra.mxu0 %v957
    %v959 = vand.u32 %v412, 4294901760
    %960 = vmatpush.msra.mxu0 %v959
    %v961 = vand.u32 %v405, 4294901760
    %962 = vmatpush.msra.mxu0 %v961
    %v963 = vand.u32 %v398, 4294901760
    %964 = vmatpush.msra.mxu0 %v963
    %v965 = vand.u32 %v391, 4294901760
    %966 = vmatpush.msra.mxu0 %v965
    %v967 = vand.u32 %v389, 4294901760
    %968 = vmatmul.f32.gmra.mxu0 %v967
    %v969 = vpop.f32.mrf.mxu0
    %v970 = vadd.f32 %v933, %v969
    %971 = vdwg.mxu0
    %v972 = vand.u32 %v608, 4294901760
    %973 = vmatpush.msra.mxu0 %v972
    %v974 = vand.u32 %v601, 4294901760
    %975 = vmatpush.msra.mxu0 %v974
    %v976 = vand.u32 %v594, 4294901760
    %977 = vmatpush.msra.mxu0 %v976
    %v978 = vand.u32 %v587, 4294901760
    %979 = vmatpush.msra.mxu0 %v978
    %v980 = vand.u32 %v580, 4294901760
    %981 = vmatpush.msra.mxu0 %v980
    %v982 = vand.u32 %v573, 4294901760
    %983 = vmatpush.msra.mxu0 %v982
    %v984 = vand.u32 %v566, 4294901760
    %985 = vmatpush.msra.mxu0 %v984
    %v986 = vand.u32 %v559, 4294901760
    %987 = vmatpush.msra.mxu0 %v986
    %v988 = vand.u32 %v552, 4294901760
    %989 = vmatpush.msra.mxu0 %v988
    %v990 = vand.u32 %v545, 4294901760
    %991 = vmatpush.msra.mxu0 %v990
    %v992 = vand.u32 %v538, 4294901760
    %993 = vmatpush.msra.mxu0 %v992
    %v994 = vand.u32 %v531, 4294901760
    %995 = vmatpush.msra.mxu0 %v994
    %v996 = vand.u32 %v524, 4294901760
    %997 = vmatpush.msra.mxu0 %v996
    %v998 = vand.u32 %v517, 4294901760
    %999 = vmatpush.msra.mxu0 %v998
    %v1000 = vand.u32 %v510, 4294901760
    %1001 = vmatpush.msra.mxu0 %v1000
    %v1002 = vand.u32 %v503, 4294901760
    %1003 = vmatpush.msra.mxu0 %v1002
    %v1004 = vand.u32 %v390, 4294901760
    %v1005 = vsub.f32 %v390, %v1004
    %v1006 = vand.u32 %v1005, 4294901760
    %v1007 = vsub.f32 %v1005, %v1006
    %v1008 = vand.u32 %v1007, 4294901760
    %1009 = vmatmul.f32.gmra.mxu0 %v1008
    %v1010 = vpop.f32.mrf.mxu0
    %v1011 = vadd.f32 %v970, %v1010
    %1012 = vdwg.mxu0
    %v1013 = vand.u32 %v608, 4294901760
    %v1014 = vsub.f32 %v608, %v1013
    %v1015 = vand.u32 %v1014, 4294901760
    %v1016 = vsub.f32 %v1014, %v1015
    %v1017 = vand.u32 %v1016, 4294901760
    %1018 = vmatpush.msra.mxu0 %v1017
    %v1019 = vand.u32 %v601, 4294901760
    %v1020 = vsub.f32 %v601, %v1019
    %v1021 = vand.u32 %v1020, 4294901760
    %v1022 = vsub.f32 %v1020, %v1021
    %v1023 = vand.u32 %v1022, 4294901760
    %1024 = vmatpush.msra.mxu0 %v1023
    %v1025 = vand.u32 %v594, 4294901760
    %v1026 = vsub.f32 %v594, %v1025
    %v1027 = vand.u32 %v1026, 4294901760
    %v1028 = vsub.f32 %v1026, %v1027
    %v1029 = vand.u32 %v1028, 4294901760
    %1030 = vmatpush.msra.mxu0 %v1029
    %v1031 = vand.u32 %v587, 4294901760
    %v1032 = vsub.f32 %v587, %v1031
    %v1033 = vand.u32 %v1032, 4294901760
    %v1034 = vsub.f32 %v1032, %v1033
    %v1035 = vand.u32 %v1034, 4294901760
    %1036 = vmatpush.msra.mxu0 %v1035
    %v1037 = vand.u32 %v580, 4294901760
    %v1038 = vsub.f32 %v580, %v1037
    %v1039 = vand.u32 %v1038, 4294901760
    %v1040 = vsub.f32 %v1038, %v1039
    %v1041 = vand.u32 %v1040, 4294901760
    %1042 = vmatpush.msra.mxu0 %v1041
    %v1043 = vand.u32 %v573, 4294901760
    %v1044 = vsub.f32 %v573, %v1043
    %v1045 = vand.u32 %v1044, 4294901760
    %v1046 = vsub.f32 %v1044, %v1045
    %v1047 = vand.u32 %v1046, 4294901760
    %1048 = vmatpush.msra.mxu0 %v1047
    %v1049 = vand.u32 %v566, 4294901760
    %v1050 = vsub.f32 %v566, %v1049
    %v1051 = vand.u32 %v1050, 4294901760
    %v1052 = vsub.f32 %v1050, %v1051
    %v1053 = vand.u32 %v1052, 4294901760
    %1054 = vmatpush.msra.mxu0 %v1053
    %v1055 = vand.u32 %v559, 4294901760
    %v1056 = vsub.f32 %v559, %v1055
    %v1057 = vand.u32 %v1056, 4294901760
    %v1058 = vsub.f32 %v1056, %v1057
    %v1059 = vand.u32 %v1058, 4294901760
    %1060 = vmatpush.msra.mxu0 %v1059
    %v1061 = vand.u32 %v552, 4294901760
    %v1062 = vsub.f32 %v552, %v1061
    %v1063 = vand.u32 %v1062, 4294901760
    %v1064 = vsub.f32 %v1062, %v1063
    %v1065 = vand.u32 %v1064, 4294901760
    %1066 = vmatpush.msra.mxu0 %v1065
    %v1067 = vand.u32 %v545, 4294901760
    %v1068 = vsub.f32 %v545, %v1067
    %v1069 = vand.u32 %v1068, 4294901760
    %v1070 = vsub.f32 %v1068, %v1069
    %v1071 = vand.u32 %v1070, 4294901760
    %1072 = vmatpush.msra.mxu0 %v1071
    %v1073 = vand.u32 %v538, 4294901760
    %v1074 = vsub.f32 %v538, %v1073
    %v1075 = vand.u32 %v1074, 4294901760
    %v1076 = vsub.f32 %v1074, %v1075
    %v1077 = vand.u32 %v1076, 4294901760
    %1078 = vmatpush.msra.mxu0 %v1077
    %v1079 = vand.u32 %v531, 4294901760
    %v1080 = vsub.f32 %v531, %v1079
    %v1081 = vand.u32 %v1080, 4294901760
    %v1082 = vsub.f32 %v1080, %v1081
    %v1083 = vand.u32 %v1082, 4294901760
    %1084 = vmatpush.msra.mxu0 %v1083
    %v1085 = vand.u32 %v524, 4294901760
    %v1086 = vsub.f32 %v524, %v1085
    %v1087 = vand.u32 %v1086, 4294901760
    %v1088 = vsub.f32 %v1086, %v1087
    %v1089 = vand.u32 %v1088, 4294901760
    %1090 = vmatpush.msra.mxu0 %v1089
    %v1091 = vand.u32 %v517, 4294901760
    %v1092 = vsub.f32 %v517, %v1091
    %v1093 = vand.u32 %v1092, 4294901760
    %v1094 = vsub.f32 %v1092, %v1093
    %v1095 = vand.u32 %v1094, 4294901760
    %1096 = vmatpush.msra.mxu0 %v1095
    %v1097 = vand.u32 %v510, 4294901760
    %v1098 = vsub.f32 %v510, %v1097
    %v1099 = vand.u32 %v1098, 4294901760
    %v1100 = vsub.f32 %v1098, %v1099
    %v1101 = vand.u32 %v1100, 4294901760
    %1102 = vmatpush.msra.mxu0 %v1101
    %v1103 = vand.u32 %v503, 4294901760
    %v1104 = vsub.f32 %v503, %v1103
    %v1105 = vand.u32 %v1104, 4294901760
    %v1106 = vsub.f32 %v1104, %v1105
    %v1107 = vand.u32 %v1106, 4294901760
    %1108 = vmatpush.msra.mxu0 %v1107
    %v1109 = vand.u32 %v390, 4294901760
    %1110 = vmatmul.f32.gmra.mxu0 %v1109
    %v1111 = vpop.f32.mrf.mxu0
    %v1112 = vadd.f32 %v1011, %v1111
    %1113 = vdwg.mxu0
    %v1114 = vand.u32 %v608, 4294901760
    %v1115 = vsub.f32 %v608, %v1114
    %1116 = vmatpush.msra.mxu0 %v1115
    %v1117 = vand.u32 %v601, 4294901760
    %v1118 = vsub.f32 %v601, %v1117
    %1119 = vmatpush.msra.mxu0 %v1118
    %v1120 = vand.u32 %v594, 4294901760
    %v1121 = vsub.f32 %v594, %v1120
    %1122 = vmatpush.msra.mxu0 %v1121
    %v1123 = vand.u32 %v587, 4294901760
    %v1124 = vsub.f32 %v587, %v1123
    %1125 = vmatpush.msra.mxu0 %v1124
    %v1126 = vand.u32 %v580, 4294901760
    %v1127 = vsub.f32 %v580, %v1126
    %1128 = vmatpush.msra.mxu0 %v1127
    %v1129 = vand.u32 %v573, 4294901760
    %v1130 = vsub.f32 %v573, %v1129
    %1131 = vmatpush.msra.mxu0 %v1130
    %v1132 = vand.u32 %v566, 4294901760
    %v1133 = vsub.f32 %v566, %v1132
    %1134 = vmatpush.msra.mxu0 %v1133
    %v1135 = vand.u32 %v559, 4294901760
    %v1136 = vsub.f32 %v559, %v1135
    %1137 = vmatpush.msra.mxu0 %v1136
    %v1138 = vand.u32 %v552, 4294901760
    %v1139 = vsub.f32 %v552, %v1138
    %1140 = vmatpush.msra.mxu0 %v1139
    %v1141 = vand.u32 %v545, 4294901760
    %v1142 = vsub.f32 %v545, %v1141
    %1143 = vmatpush.msra.mxu0 %v1142
    %v1144 = vand.u32 %v538, 4294901760
    %v1145 = vsub.f32 %v538, %v1144
    %1146 = vmatpush.msra.mxu0 %v1145
    %v1147 = vand.u32 %v531, 4294901760
    %v1148 = vsub.f32 %v531, %v1147
    %1149 = vmatpush.msra.mxu0 %v1148
    %v1150 = vand.u32 %v524, 4294901760
    %v1151 = vsub.f32 %v524, %v1150
    %1152 = vmatpush.msra.mxu0 %v1151
    %v1153 = vand.u32 %v517, 4294901760
    %v1154 = vsub.f32 %v517, %v1153
    %1155 = vmatpush.msra.mxu0 %v1154
    %v1156 = vand.u32 %v510, 4294901760
    %v1157 = vsub.f32 %v510, %v1156
    %1158 = vmatpush.msra.mxu0 %v1157
    %v1159 = vand.u32 %v503, 4294901760
    %v1160 = vsub.f32 %v503, %v1159
    %1161 = vmatpush.msra.mxu0 %v1160
    %v1162 = vand.u32 %v390, 4294901760
    %v1163 = vsub.f32 %v390, %v1162
    %1164 = vmatmul.f32.gmra.mxu0 %v1163
    %v1165 = vpop.f32.mrf.mxu0
    %v1166 = vadd.f32 %v1112, %v1165
    %1167 = vdwg.mxu0
    %v1168 = vand.u32 %v608, 4294901760
    %1169 = vmatpush.msra.mxu0 %v1168
    %v1170 = vand.u32 %v601, 4294901760
    %1171 = vmatpush.msra.mxu0 %v1170
    %v1172 = vand.u32 %v594, 4294901760
    %1173 = vmatpush.msra.mxu0 %v1172
    %v1174 = vand.u32 %v587, 4294901760
    %1175 = vmatpush.msra.mxu0 %v1174
    %v1176 = vand.u32 %v580, 4294901760
    %1177 = vmatpush.msra.mxu0 %v1176
    %v1178 = vand.u32 %v573, 4294901760
    %1179 = vmatpush.msra.mxu0 %v1178
    %v1180 = vand.u32 %v566, 4294901760
    %1181 = vmatpush.msra.mxu0 %v1180
    %v1182 = vand.u32 %v559, 4294901760
    %1183 = vmatpush.msra.mxu0 %v1182
    %v1184 = vand.u32 %v552, 4294901760
    %1185 = vmatpush.msra.mxu0 %v1184
    %v1186 = vand.u32 %v545, 4294901760
    %1187 = vmatpush.msra.mxu0 %v1186
    %v1188 = vand.u32 %v538, 4294901760
    %1189 = vmatpush.msra.mxu0 %v1188
    %v1190 = vand.u32 %v531, 4294901760
    %1191 = vmatpush.msra.mxu0 %v1190
    %v1192 = vand.u32 %v524, 4294901760
    %1193 = vmatpush.msra.mxu0 %v1192
    %v1194 = vand.u32 %v517, 4294901760
    %1195 = vmatpush.msra.mxu0 %v1194
    %v1196 = vand.u32 %v510, 4294901760
    %1197 = vmatpush.msra.mxu0 %v1196
    %v1198 = vand.u32 %v503, 4294901760
    %1199 = vmatpush.msra.mxu0 %v1198
    %v1200 = vand.u32 %v390, 4294901760
    %v1201 = vsub.f32 %v390, %v1200
    %v1202 = vand.u32 %v1201, 4294901760
    %1203 = vmatmul.f32.gmra.mxu0 %v1202
    %v1204 = vpop.f32.mrf.mxu0
    %v1205 = vadd.f32 %v1166, %v1204
    %1206 = vdwg.mxu0
    %v1207 = vand.u32 %v608, 4294901760
    %v1208 = vsub.f32 %v608, %v1207
    %v1209 = vand.u32 %v1208, 4294901760
    %1210 = vmatpush.msra.mxu0 %v1209
    %v1211 = vand.u32 %v601, 4294901760
    %v1212 = vsub.f32 %v601, %v1211
    %v1213 = vand.u32 %v1212, 4294901760
    %1214 = vmatpush.msra.mxu0 %v1213
    %v1215 = vand.u32 %v594, 4294901760
    %v1216 = vsub.f32 %v594, %v1215
    %v1217 = vand.u32 %v1216, 4294901760
    %1218 = vmatpush.msra.mxu0 %v1217
    %v1219 = vand.u32 %v587, 4294901760
    %v1220 = vsub.f32 %v587, %v1219
    %v1221 = vand.u32 %v1220, 4294901760
    %1222 = vmatpush.msra.mxu0 %v1221
    %v1223 = vand.u32 %v580, 4294901760
    %v1224 = vsub.f32 %v580, %v1223
    %v1225 = vand.u32 %v1224, 4294901760
    %1226 = vmatpush.msra.mxu0 %v1225
    %v1227 = vand.u32 %v573, 4294901760
    %v1228 = vsub.f32 %v573, %v1227
    %v1229 = vand.u32 %v1228, 4294901760
    %1230 = vmatpush.msra.mxu0 %v1229
    %v1231 = vand.u32 %v566, 4294901760
    %v1232 = vsub.f32 %v566, %v1231
    %v1233 = vand.u32 %v1232, 4294901760
    %1234 = vmatpush.msra.mxu0 %v1233
    %v1235 = vand.u32 %v559, 4294901760
    %v1236 = vsub.f32 %v559, %v1235
    %v1237 = vand.u32 %v1236, 4294901760
    %1238 = vmatpush.msra.mxu0 %v1237
    %v1239 = vand.u32 %v552, 4294901760
    %v1240 = vsub.f32 %v552, %v1239
    %v1241 = vand.u32 %v1240, 4294901760
    %1242 = vmatpush.msra.mxu0 %v1241
    %v1243 = vand.u32 %v545, 4294901760
    %v1244 = vsub.f32 %v545, %v1243
    %v1245 = vand.u32 %v1244, 4294901760
    %1246 = vmatpush.msra.mxu0 %v1245
    %v1247 = vand.u32 %v538, 4294901760
    %v1248 = vsub.f32 %v538, %v1247
    %v1249 = vand.u32 %v1248, 4294901760
    %1250 = vmatpush.msra.mxu0 %v1249
    %v1251 = vand.u32 %v531, 4294901760
    %v1252 = vsub.f32 %v531, %v1251
    %v1253 = vand.u32 %v1252, 4294901760
    %1254 = vmatpush.msra.mxu0 %v1253
    %v1255 = vand.u32 %v524, 4294901760
    %v1256 = vsub.f32 %v524, %v1255
    %v1257 = vand.u32 %v1256, 4294901760
    %1258 = vmatpush.msra.mxu0 %v1257
    %v1259 = vand.u32 %v517, 4294901760
    %v1260 = vsub.f32 %v517, %v1259
    %v1261 = vand.u32 %v1260, 4294901760
    %1262 = vmatpush.msra.mxu0 %v1261
    %v1263 = vand.u32 %v510, 4294901760
    %v1264 = vsub.f32 %v510, %v1263
    %v1265 = vand.u32 %v1264, 4294901760
    %1266 = vmatpush.msra.mxu0 %v1265
    %v1267 = vand.u32 %v503, 4294901760
    %v1268 = vsub.f32 %v503, %v1267
    %v1269 = vand.u32 %v1268, 4294901760
    %1270 = vmatpush.msra.mxu0 %v1269
    %v1271 = vand.u32 %v390, 4294901760
    %1272 = vmatmul.f32.gmra.mxu0 %v1271
    %v1273 = vpop.f32.mrf.mxu0
    %v1274 = vadd.f32 %v1205, %v1273
    %1275 = vdwg.mxu0
    %v1276 = vand.u32 %v608, 4294901760
    %1277 = vmatpush.msra.mxu0 %v1276
    %v1278 = vand.u32 %v601, 4294901760
    %1279 = vmatpush.msra.mxu0 %v1278
    %v1280 = vand.u32 %v594, 4294901760
    %1281 = vmatpush.msra.mxu0 %v1280
    %v1282 = vand.u32 %v587, 4294901760
    %1283 = vmatpush.msra.mxu0 %v1282
    %v1284 = vand.u32 %v580, 4294901760
    %1285 = vmatpush.msra.mxu0 %v1284
    %v1286 = vand.u32 %v573, 4294901760
    %1287 = vmatpush.msra.mxu0 %v1286
    %v1288 = vand.u32 %v566, 4294901760
    %1289 = vmatpush.msra.mxu0 %v1288
    %v1290 = vand.u32 %v559, 4294901760
    %1291 = vmatpush.msra.mxu0 %v1290
    %v1292 = vand.u32 %v552, 4294901760
    %1293 = vmatpush.msra.mxu0 %v1292
    %v1294 = vand.u32 %v545, 4294901760
    %1295 = vmatpush.msra.mxu0 %v1294
    %v1296 = vand.u32 %v538, 4294901760
    %1297 = vmatpush.msra.mxu0 %v1296
    %v1298 = vand.u32 %v531, 4294901760
    %1299 = vmatpush.msra.mxu0 %v1298
    %v1300 = vand.u32 %v524, 4294901760
    %1301 = vmatpush.msra.mxu0 %v1300
    %v1302 = vand.u32 %v517, 4294901760
    %1303 = vmatpush.msra.mxu0 %v1302
    %v1304 = vand.u32 %v510, 4294901760
    %1305 = vmatpush.msra.mxu0 %v1304
    %v1306 = vand.u32 %v503, 4294901760
    %1307 = vmatpush.msra.mxu0 %v1306
    %v1308 = vand.u32 %v390, 4294901760
    %1309 = vmatmul.f32.gmra.mxu0 %v1308
    %v1310 = vpop.f32.mrf.mxu0
    %v1311 = vadd.f32 %v1274, %v1310
    %1312 = vdwg.mxu0
    %v1313 = vand.u32 %v497, 4294901760
    %1314 = vmatpush.msra.mxu0 %v1313
    %v1315 = vand.u32 %v490, 4294901760
    %1316 = vmatpush.msra.mxu0 %v1315
    %v1317 = vand.u32 %v483, 4294901760
    %1318 = vmatpush.msra.mxu0 %v1317
    %v1319 = vand.u32 %v476, 4294901760
    %1320 = vmatpush.msra.mxu0 %v1319
    %v1321 = vand.u32 %v469, 4294901760
    %1322 = vmatpush.msra.mxu0 %v1321
    %v1323 = vand.u32 %v462, 4294901760
    %1324 = vmatpush.msra.mxu0 %v1323
    %v1325 = vand.u32 %v455, 4294901760
    %1326 = vmatpush.msra.mxu0 %v1325
    %v1327 = vand.u32 %v448, 4294901760
    %1328 = vmatpush.msra.mxu0 %v1327
    %v1329 = vand.u32 %v441, 4294901760
    %1330 = vmatpush.msra.mxu0 %v1329
    %v1331 = vand.u32 %v434, 4294901760
    %1332 = vmatpush.msra.mxu0 %v1331
    %v1333 = vand.u32 %v427, 4294901760
    %1334 = vmatpush.msra.mxu0 %v1333
    %v1335 = vand.u32 %v420, 4294901760
    %1336 = vmatpush.msra.mxu0 %v1335
    %v1337 = vand.u32 %v413, 4294901760
    %1338 = vmatpush.msra.mxu0 %v1337
    %v1339 = vand.u32 %v406, 4294901760
    %1340 = vmatpush.msra.mxu0 %v1339
    %v1341 = vand.u32 %v399, 4294901760
    %1342 = vmatpush.msra.mxu0 %v1341
    %v1343 = vand.u32 %v392, 4294901760
    %1344 = vmatpush.msra.mxu0 %v1343
    %v1345 = vand.u32 %v389, 4294901760
    %v1346 = vsub.f32 %v389, %v1345
    %v1347 = vand.u32 %v1346, 4294901760
    %v1348 = vsub.f32 %v1346, %v1347
    %v1349 = vand.u32 %v1348, 4294901760
    %1350 = vmatmul.f32.gmra.mxu0 %v1349
    %v1351 = vpop.f32.mrf.mxu0
    %v1352 = vadd.f32 %v618, %v1351
    %1353 = vdwg.mxu0
    %v1354 = vand.u32 %v497, 4294901760
    %v1355 = vsub.f32 %v497, %v1354
    %v1356 = vand.u32 %v1355, 4294901760
    %v1357 = vsub.f32 %v1355, %v1356
    %v1358 = vand.u32 %v1357, 4294901760
    %1359 = vmatpush.msra.mxu0 %v1358
    %v1360 = vand.u32 %v490, 4294901760
    %v1361 = vsub.f32 %v490, %v1360
    %v1362 = vand.u32 %v1361, 4294901760
    %v1363 = vsub.f32 %v1361, %v1362
    %v1364 = vand.u32 %v1363, 4294901760
    %1365 = vmatpush.msra.mxu0 %v1364
    %v1366 = vand.u32 %v483, 4294901760
    %v1367 = vsub.f32 %v483, %v1366
    %v1368 = vand.u32 %v1367, 4294901760
    %v1369 = vsub.f32 %v1367, %v1368
    %v1370 = vand.u32 %v1369, 4294901760
    %1371 = vmatpush.msra.mxu0 %v1370
    %v1372 = vand.u32 %v476, 4294901760
    %v1373 = vsub.f32 %v476, %v1372
    %v1374 = vand.u32 %v1373, 4294901760
    %v1375 = vsub.f32 %v1373, %v1374
    %v1376 = vand.u32 %v1375, 4294901760
    %1377 = vmatpush.msra.mxu0 %v1376
    %v1378 = vand.u32 %v469, 4294901760
    %v1379 = vsub.f32 %v469, %v1378
    %v1380 = vand.u32 %v1379, 4294901760
    %v1381 = vsub.f32 %v1379, %v1380
    %v1382 = vand.u32 %v1381, 4294901760
    %1383 = vmatpush.msra.mxu0 %v1382
    %v1384 = vand.u32 %v462, 4294901760
    %v1385 = vsub.f32 %v462, %v1384
    %v1386 = vand.u32 %v1385, 4294901760
    %v1387 = vsub.f32 %v1385, %v1386
    %v1388 = vand.u32 %v1387, 4294901760
    %1389 = vmatpush.msra.mxu0 %v1388
    %v1390 = vand.u32 %v455, 4294901760
    %v1391 = vsub.f32 %v455, %v1390
    %v1392 = vand.u32 %v1391, 4294901760
    %v1393 = vsub.f32 %v1391, %v1392
    %v1394 = vand.u32 %v1393, 4294901760
    %1395 = vmatpush.msra.mxu0 %v1394
    %v1396 = vand.u32 %v448, 4294901760
    %v1397 = vsub.f32 %v448, %v1396
    %v1398 = vand.u32 %v1397, 4294901760
    %v1399 = vsub.f32 %v1397, %v1398
    %v1400 = vand.u32 %v1399, 4294901760
    %1401 = vmatpush.msra.mxu0 %v1400
    %v1402 = vand.u32 %v441, 4294901760
    %v1403 = vsub.f32 %v441, %v1402
    %v1404 = vand.u32 %v1403, 4294901760
    %v1405 = vsub.f32 %v1403, %v1404
    %v1406 = vand.u32 %v1405, 4294901760
    %1407 = vmatpush.msra.mxu0 %v1406
    %v1408 = vand.u32 %v434, 4294901760
    %v1409 = vsub.f32 %v434, %v1408
    %v1410 = vand.u32 %v1409, 4294901760
    %v1411 = vsub.f32 %v1409, %v1410
    %v1412 = vand.u32 %v1411, 4294901760
    %1413 = vmatpush.msra.mxu0 %v1412
    %v1414 = vand.u32 %v427, 4294901760
    %v1415 = vsub.f32 %v427, %v1414
    %v1416 = vand.u32 %v1415, 4294901760
    %v1417 = vsub.f32 %v1415, %v1416
    %v1418 = vand.u32 %v1417, 4294901760
    %1419 = vmatpush.msra.mxu0 %v1418
    %v1420 = vand.u32 %v420, 4294901760
    %v1421 = vsub.f32 %v420, %v1420
    %v1422 = vand.u32 %v1421, 4294901760
    %v1423 = vsub.f32 %v1421, %v1422
    %v1424 = vand.u32 %v1423, 4294901760
    %1425 = vmatpush.msra.mxu0 %v1424
    %v1426 = vand.u32 %v413, 4294901760
    %v1427 = vsub.f32 %v413, %v1426
    %v1428 = vand.u32 %v1427, 4294901760
    %v1429 = vsub.f32 %v1427, %v1428
    %v1430 = vand.u32 %v1429, 4294901760
    %1431 = vmatpush.msra.mxu0 %v1430
    %v1432 = vand.u32 %v406, 4294901760
    %v1433 = vsub.f32 %v406, %v1432
    %v1434 = vand.u32 %v1433, 4294901760
    %v1435 = vsub.f32 %v1433, %v1434
    %v1436 = vand.u32 %v1435, 4294901760
    %1437 = vmatpush.msra.mxu0 %v1436
    %v1438 = vand.u32 %v399, 4294901760
    %v1439 = vsub.f32 %v399, %v1438
    %v1440 = vand.u32 %v1439, 4294901760
    %v1441 = vsub.f32 %v1439, %v1440
    %v1442 = vand.u32 %v1441, 4294901760
    %1443 = vmatpush.msra.mxu0 %v1442
    %v1444 = vand.u32 %v392, 4294901760
    %v1445 = vsub.f32 %v392, %v1444
    %v1446 = vand.u32 %v1445, 4294901760
    %v1447 = vsub.f32 %v1445, %v1446
    %v1448 = vand.u32 %v1447, 4294901760
    %1449 = vmatpush.msra.mxu0 %v1448
    %v1450 = vand.u32 %v389, 4294901760
    %1451 = vmatmul.f32.gmra.mxu0 %v1450
    %v1452 = vpop.f32.mrf.mxu0
    %v1453 = vadd.f32 %v1352, %v1452
    %1454 = vdwg.mxu0
    %v1455 = vand.u32 %v497, 4294901760
    %v1456 = vsub.f32 %v497, %v1455
    %1457 = vmatpush.msra.mxu0 %v1456
    %v1458 = vand.u32 %v490, 4294901760
    %v1459 = vsub.f32 %v490, %v1458
    %1460 = vmatpush.msra.mxu0 %v1459
    %v1461 = vand.u32 %v483, 4294901760
    %v1462 = vsub.f32 %v483, %v1461
    %1463 = vmatpush.msra.mxu0 %v1462
    %v1464 = vand.u32 %v476, 4294901760
    %v1465 = vsub.f32 %v476, %v1464
    %1466 = vmatpush.msra.mxu0 %v1465
    %v1467 = vand.u32 %v469, 4294901760
    %v1468 = vsub.f32 %v469, %v1467
    %1469 = vmatpush.msra.mxu0 %v1468
    %v1470 = vand.u32 %v462, 4294901760
    %v1471 = vsub.f32 %v462, %v1470
    %1472 = vmatpush.msra.mxu0 %v1471
    %v1473 = vand.u32 %v455, 4294901760
    %v1474 = vsub.f32 %v455, %v1473
    %1475 = vmatpush.msra.mxu0 %v1474
    %v1476 = vand.u32 %v448, 4294901760
    %v1477 = vsub.f32 %v448, %v1476
    %1478 = vmatpush.msra.mxu0 %v1477
    %v1479 = vand.u32 %v441, 4294901760
    %v1480 = vsub.f32 %v441, %v1479
    %1481 = vmatpush.msra.mxu0 %v1480
    %v1482 = vand.u32 %v434, 4294901760
    %v1483 = vsub.f32 %v434, %v1482
    %1484 = vmatpush.msra.mxu0 %v1483
    %v1485 = vand.u32 %v427, 4294901760
    %v1486 = vsub.f32 %v427, %v1485
    %1487 = vmatpush.msra.mxu0 %v1486
    %v1488 = vand.u32 %v420, 4294901760
    %v1489 = vsub.f32 %v420, %v1488
    %1490 = vmatpush.msra.mxu0 %v1489
    %v1491 = vand.u32 %v413, 4294901760
    %v1492 = vsub.f32 %v413, %v1491
    %1493 = vmatpush.msra.mxu0 %v1492
    %v1494 = vand.u32 %v406, 4294901760
    %v1495 = vsub.f32 %v406, %v1494
    %1496 = vmatpush.msra.mxu0 %v1495
    %v1497 = vand.u32 %v399, 4294901760
    %v1498 = vsub.f32 %v399, %v1497
    %1499 = vmatpush.msra.mxu0 %v1498
    %v1500 = vand.u32 %v392, 4294901760
    %v1501 = vsub.f32 %v392, %v1500
    %1502 = vmatpush.msra.mxu0 %v1501
    %v1503 = vand.u32 %v389, 4294901760
    %v1504 = vsub.f32 %v389, %v1503
    %1505 = vmatmul.f32.gmra.mxu0 %v1504
    %v1506 = vpop.f32.mrf.mxu0
    %v1507 = vadd.f32 %v1453, %v1506
    %1508 = vdwg.mxu0
    %v1509 = vand.u32 %v497, 4294901760
    %1510 = vmatpush.msra.mxu0 %v1509
    %v1511 = vand.u32 %v490, 4294901760
    %1512 = vmatpush.msra.mxu0 %v1511
    %v1513 = vand.u32 %v483, 4294901760
    %1514 = vmatpush.msra.mxu0 %v1513
    %v1515 = vand.u32 %v476, 4294901760
    %1516 = vmatpush.msra.mxu0 %v1515
    %v1517 = vand.u32 %v469, 4294901760
    %1518 = vmatpush.msra.mxu0 %v1517
    %v1519 = vand.u32 %v462, 4294901760
    %1520 = vmatpush.msra.mxu0 %v1519
    %v1521 = vand.u32 %v455, 4294901760
    %1522 = vmatpush.msra.mxu0 %v1521
    %v1523 = vand.u32 %v448, 4294901760
    %1524 = vmatpush.msra.mxu0 %v1523
    %v1525 = vand.u32 %v441, 4294901760
    %1526 = vmatpush.msra.mxu0 %v1525
    %v1527 = vand.u32 %v434, 4294901760
    %1528 = vmatpush.msra.mxu0 %v1527
    %v1529 = vand.u32 %v427, 4294901760
    %1530 = vmatpush.msra.mxu0 %v1529
    %v1531 = vand.u32 %v420, 4294901760
    %1532 = vmatpush.msra.mxu0 %v1531
    %v1533 = vand.u32 %v413, 4294901760
    %1534 = vmatpush.msra.mxu0 %v1533
    %v1535 = vand.u32 %v406, 4294901760
    %1536 = vmatpush.msra.mxu0 %v1535
    %v1537 = vand.u32 %v399, 4294901760
    %1538 = vmatpush.msra.mxu0 %v1537
    %v1539 = vand.u32 %v392, 4294901760
    %1540 = vmatpush.msra.mxu0 %v1539
    %v1541 = vand.u32 %v389, 4294901760
    %v1542 = vsub.f32 %v389, %v1541
    %v1543 = vand.u32 %v1542, 4294901760
    %1544 = vmatmul.f32.gmra.mxu0 %v1543
    %v1545 = vpop.f32.mrf.mxu0
    %v1546 = vadd.f32 %v1507, %v1545
    %1547 = vdwg.mxu0
    %v1548 = vand.u32 %v497, 4294901760
    %v1549 = vsub.f32 %v497, %v1548
    %v1550 = vand.u32 %v1549, 4294901760
    %1551 = vmatpush.msra.mxu0 %v1550
    %v1552 = vand.u32 %v490, 4294901760
    %v1553 = vsub.f32 %v490, %v1552
    %v1554 = vand.u32 %v1553, 4294901760
    %1555 = vmatpush.msra.mxu0 %v1554
    %v1556 = vand.u32 %v483, 4294901760
    %v1557 = vsub.f32 %v483, %v1556
    %v1558 = vand.u32 %v1557, 4294901760
    %1559 = vmatpush.msra.mxu0 %v1558
    %v1560 = vand.u32 %v476, 4294901760
    %v1561 = vsub.f32 %v476, %v1560
    %v1562 = vand.u32 %v1561, 4294901760
    %1563 = vmatpush.msra.mxu0 %v1562
    %v1564 = vand.u32 %v469, 4294901760
    %v1565 = vsub.f32 %v469, %v1564
    %v1566 = vand.u32 %v1565, 4294901760
    %1567 = vmatpush.msra.mxu0 %v1566
    %v1568 = vand.u32 %v462, 4294901760
    %v1569 = vsub.f32 %v462, %v1568
    %v1570 = vand.u32 %v1569, 4294901760
    %1571 = vmatpush.msra.mxu0 %v1570
    %v1572 = vand.u32 %v455, 4294901760
    %v1573 = vsub.f32 %v455, %v1572
    %v1574 = vand.u32 %v1573, 4294901760
    %1575 = vmatpush.msra.mxu0 %v1574
    %v1576 = vand.u32 %v448, 4294901760
    %v1577 = vsub.f32 %v448, %v1576
    %v1578 = vand.u32 %v1577, 4294901760
    %1579 = vmatpush.msra.mxu0 %v1578
    %v1580 = vand.u32 %v441, 4294901760
    %v1581 = vsub.f32 %v441, %v1580
    %v1582 = vand.u32 %v1581, 4294901760
    %1583 = vmatpush.msra.mxu0 %v1582
    %v1584 = vand.u32 %v434, 4294901760
    %v1585 = vsub.f32 %v434, %v1584
    %v1586 = vand.u32 %v1585, 4294901760
    %1587 = vmatpush.msra.mxu0 %v1586
    %v1588 = vand.u32 %v427, 4294901760
    %v1589 = vsub.f32 %v427, %v1588
    %v1590 = vand.u32 %v1589, 4294901760
    %1591 = vmatpush.msra.mxu0 %v1590
    %v1592 = vand.u32 %v420, 4294901760
    %v1593 = vsub.f32 %v420, %v1592
    %v1594 = vand.u32 %v1593, 4294901760
    %1595 = vmatpush.msra.mxu0 %v1594
    %v1596 = vand.u32 %v413, 4294901760
    %v1597 = vsub.f32 %v413, %v1596
    %v1598 = vand.u32 %v1597, 4294901760
    %1599 = vmatpush.msra.mxu0 %v1598
    %v1600 = vand.u32 %v406, 4294901760
    %v1601 = vsub.f32 %v406, %v1600
    %v1602 = vand.u32 %v1601, 4294901760
    %1603 = vmatpush.msra.mxu0 %v1602
    %v1604 = vand.u32 %v399, 4294901760
    %v1605 = vsub.f32 %v399, %v1604
    %v1606 = vand.u32 %v1605, 4294901760
    %1607 = vmatpush.msra.mxu0 %v1606
    %v1608 = vand.u32 %v392, 4294901760
    %v1609 = vsub.f32 %v392, %v1608
    %v1610 = vand.u32 %v1609, 4294901760
    %1611 = vmatpush.msra.mxu0 %v1610
    %v1612 = vand.u32 %v389, 4294901760
    %1613 = vmatmul.f32.gmra.mxu0 %v1612
    %v1614 = vpop.f32.mrf.mxu0
    %v1615 = vadd.f32 %v1546, %v1614
    %1616 = vdwg.mxu0
    %v1617 = vand.u32 %v497, 4294901760
    %1618 = vmatpush.msra.mxu0 %v1617
    %v1619 = vand.u32 %v490, 4294901760
    %1620 = vmatpush.msra.mxu0 %v1619
    %v1621 = vand.u32 %v483, 4294901760
    %1622 = vmatpush.msra.mxu0 %v1621
    %v1623 = vand.u32 %v476, 4294901760
    %1624 = vmatpush.msra.mxu0 %v1623
    %v1625 = vand.u32 %v469, 4294901760
    %1626 = vmatpush.msra.mxu0 %v1625
    %v1627 = vand.u32 %v462, 4294901760
    %1628 = vmatpush.msra.mxu0 %v1627
    %v1629 = vand.u32 %v455, 4294901760
    %1630 = vmatpush.msra.mxu0 %v1629
    %v1631 = vand.u32 %v448, 4294901760
    %1632 = vmatpush.msra.mxu0 %v1631
    %v1633 = vand.u32 %v441, 4294901760
    %1634 = vmatpush.msra.mxu0 %v1633
    %v1635 = vand.u32 %v434, 4294901760
    %1636 = vmatpush.msra.mxu0 %v1635
    %v1637 = vand.u32 %v427, 4294901760
    %1638 = vmatpush.msra.mxu0 %v1637
    %v1639 = vand.u32 %v420, 4294901760
    %1640 = vmatpush.msra.mxu0 %v1639
    %v1641 = vand.u32 %v413, 4294901760
    %1642 = vmatpush.msra.mxu0 %v1641
    %v1643 = vand.u32 %v406, 4294901760
    %1644 = vmatpush.msra.mxu0 %v1643
    %v1645 = vand.u32 %v399, 4294901760
    %1646 = vmatpush.msra.mxu0 %v1645
    %v1647 = vand.u32 %v392, 4294901760
    %1648 = vmatpush.msra.mxu0 %v1647
    %v1649 = vand.u32 %v389, 4294901760
    %1650 = vmatmul.f32.gmra.mxu0 %v1649
    %v1651 = vpop.f32.mrf.mxu0
    %v1652 = vadd.f32 %v1615, %v1651
    %1653 = vdwg.mxu0
    %v1654 = vand.u32 %v609, 4294901760
    %1655 = vmatpush.msra.mxu0 %v1654
    %v1656 = vand.u32 %v602, 4294901760
    %1657 = vmatpush.msra.mxu0 %v1656
    %v1658 = vand.u32 %v595, 4294901760
    %1659 = vmatpush.msra.mxu0 %v1658
    %v1660 = vand.u32 %v588, 4294901760
    %1661 = vmatpush.msra.mxu0 %v1660
    %v1662 = vand.u32 %v581, 4294901760
    %1663 = vmatpush.msra.mxu0 %v1662
    %v1664 = vand.u32 %v574, 4294901760
    %1665 = vmatpush.msra.mxu0 %v1664
    %v1666 = vand.u32 %v567, 4294901760
    %1667 = vmatpush.msra.mxu0 %v1666
    %v1668 = vand.u32 %v560, 4294901760
    %1669 = vmatpush.msra.mxu0 %v1668
    %v1670 = vand.u32 %v553, 4294901760
    %1671 = vmatpush.msra.mxu0 %v1670
    %v1672 = vand.u32 %v546, 4294901760
    %1673 = vmatpush.msra.mxu0 %v1672
    %v1674 = vand.u32 %v539, 4294901760
    %1675 = vmatpush.msra.mxu0 %v1674
    %v1676 = vand.u32 %v532, 4294901760
    %1677 = vmatpush.msra.mxu0 %v1676
    %v1678 = vand.u32 %v525, 4294901760
    %1679 = vmatpush.msra.mxu0 %v1678
    %v1680 = vand.u32 %v518, 4294901760
    %1681 = vmatpush.msra.mxu0 %v1680
    %v1682 = vand.u32 %v511, 4294901760
    %1683 = vmatpush.msra.mxu0 %v1682
    %v1684 = vand.u32 %v504, 4294901760
    %1685 = vmatpush.msra.mxu0 %v1684
    %v1686 = vand.u32 %v390, 4294901760
    %v1687 = vsub.f32 %v390, %v1686
    %v1688 = vand.u32 %v1687, 4294901760
    %v1689 = vsub.f32 %v1687, %v1688
    %v1690 = vand.u32 %v1689, 4294901760
    %1691 = vmatmul.f32.gmra.mxu0 %v1690
    %v1692 = vpop.f32.mrf.mxu0
    %v1693 = vadd.f32 %v1652, %v1692
    %1694 = vdwg.mxu0
    %v1695 = vand.u32 %v609, 4294901760
    %v1696 = vsub.f32 %v609, %v1695
    %v1697 = vand.u32 %v1696, 4294901760
    %v1698 = vsub.f32 %v1696, %v1697
    %v1699 = vand.u32 %v1698, 4294901760
    %1700 = vmatpush.msra.mxu0 %v1699
    %v1701 = vand.u32 %v602, 4294901760
    %v1702 = vsub.f32 %v602, %v1701
    %v1703 = vand.u32 %v1702, 4294901760
    %v1704 = vsub.f32 %v1702, %v1703
    %v1705 = vand.u32 %v1704, 4294901760
    %1706 = vmatpush.msra.mxu0 %v1705
    %v1707 = vand.u32 %v595, 4294901760
    %v1708 = vsub.f32 %v595, %v1707
    %v1709 = vand.u32 %v1708, 4294901760
    %v1710 = vsub.f32 %v1708, %v1709
    %v1711 = vand.u32 %v1710, 4294901760
    %1712 = vmatpush.msra.mxu0 %v1711
    %v1713 = vand.u32 %v588, 4294901760
    %v1714 = vsub.f32 %v588, %v1713
    %v1715 = vand.u32 %v1714, 4294901760
    %v1716 = vsub.f32 %v1714, %v1715
    %v1717 = vand.u32 %v1716, 4294901760
    %1718 = vmatpush.msra.mxu0 %v1717
    %v1719 = vand.u32 %v581, 4294901760
    %v1720 = vsub.f32 %v581, %v1719
    %v1721 = vand.u32 %v1720, 4294901760
    %v1722 = vsub.f32 %v1720, %v1721
    %v1723 = vand.u32 %v1722, 4294901760
    %1724 = vmatpush.msra.mxu0 %v1723
    %v1725 = vand.u32 %v574, 4294901760
    %v1726 = vsub.f32 %v574, %v1725
    %v1727 = vand.u32 %v1726, 4294901760
    %v1728 = vsub.f32 %v1726, %v1727
    %v1729 = vand.u32 %v1728, 4294901760
    %1730 = vmatpush.msra.mxu0 %v1729
    %v1731 = vand.u32 %v567, 4294901760
    %v1732 = vsub.f32 %v567, %v1731
    %v1733 = vand.u32 %v1732, 4294901760
    %v1734 = vsub.f32 %v1732, %v1733
    %v1735 = vand.u32 %v1734, 4294901760
    %1736 = vmatpush.msra.mxu0 %v1735
    %v1737 = vand.u32 %v560, 4294901760
    %v1738 = vsub.f32 %v560, %v1737
    %v1739 = vand.u32 %v1738, 4294901760
    %v1740 = vsub.f32 %v1738, %v1739
    %v1741 = vand.u32 %v1740, 4294901760
    %1742 = vmatpush.msra.mxu0 %v1741
    %v1743 = vand.u32 %v553, 4294901760
    %v1744 = vsub.f32 %v553, %v1743
    %v1745 = vand.u32 %v1744, 4294901760
    %v1746 = vsub.f32 %v1744, %v1745
    %v1747 = vand.u32 %v1746, 4294901760
    %1748 = vmatpush.msra.mxu0 %v1747
    %v1749 = vand.u32 %v546, 4294901760
    %v1750 = vsub.f32 %v546, %v1749
    %v1751 = vand.u32 %v1750, 4294901760
    %v1752 = vsub.f32 %v1750, %v1751
    %v1753 = vand.u32 %v1752, 4294901760
    %1754 = vmatpush.msra.mxu0 %v1753
    %v1755 = vand.u32 %v539, 4294901760
    %v1756 = vsub.f32 %v539, %v1755
    %v1757 = vand.u32 %v1756, 4294901760
    %v1758 = vsub.f32 %v1756, %v1757
    %v1759 = vand.u32 %v1758, 4294901760
    %1760 = vmatpush.msra.mxu0 %v1759
    %v1761 = vand.u32 %v532, 4294901760
    %v1762 = vsub.f32 %v532, %v1761
    %v1763 = vand.u32 %v1762, 4294901760
    %v1764 = vsub.f32 %v1762, %v1763
    %v1765 = vand.u32 %v1764, 4294901760
    %1766 = vmatpush.msra.mxu0 %v1765
    %v1767 = vand.u32 %v525, 4294901760
    %v1768 = vsub.f32 %v525, %v1767
    %v1769 = vand.u32 %v1768, 4294901760
    %v1770 = vsub.f32 %v1768, %v1769
    %v1771 = vand.u32 %v1770, 4294901760
    %1772 = vmatpush.msra.mxu0 %v1771
    %v1773 = vand.u32 %v518, 4294901760
    %v1774 = vsub.f32 %v518, %v1773
    %v1775 = vand.u32 %v1774, 4294901760
    %v1776 = vsub.f32 %v1774, %v1775
    %v1777 = vand.u32 %v1776, 4294901760
    %1778 = vmatpush.msra.mxu0 %v1777
    %v1779 = vand.u32 %v511, 4294901760
    %v1780 = vsub.f32 %v511, %v1779
    %v1781 = vand.u32 %v1780, 4294901760
    %v1782 = vsub.f32 %v1780, %v1781
    %v1783 = vand.u32 %v1782, 4294901760
    %1784 = vmatpush.msra.mxu0 %v1783
    %v1785 = vand.u32 %v504, 4294901760
    %v1786 = vsub.f32 %v504, %v1785
    %v1787 = vand.u32 %v1786, 4294901760
    %v1788 = vsub.f32 %v1786, %v1787
    %v1789 = vand.u32 %v1788, 4294901760
    %1790 = vmatpush.msra.mxu0 %v1789
    %v1791 = vand.u32 %v390, 4294901760
    %1792 = vmatmul.f32.gmra.mxu0 %v1791
    %v1793 = vpop.f32.mrf.mxu0
    %v1794 = vadd.f32 %v1693, %v1793
    %1795 = vdwg.mxu0
    %v1796 = vand.u32 %v609, 4294901760
    %v1797 = vsub.f32 %v609, %v1796
    %1798 = vmatpush.msra.mxu0 %v1797
    %v1799 = vand.u32 %v602, 4294901760
    %v1800 = vsub.f32 %v602, %v1799
    %1801 = vmatpush.msra.mxu0 %v1800
    %v1802 = vand.u32 %v595, 4294901760
    %v1803 = vsub.f32 %v595, %v1802
    %1804 = vmatpush.msra.mxu0 %v1803
    %v1805 = vand.u32 %v588, 4294901760
    %v1806 = vsub.f32 %v588, %v1805
    %1807 = vmatpush.msra.mxu0 %v1806
    %v1808 = vand.u32 %v581, 4294901760
    %v1809 = vsub.f32 %v581, %v1808
    %1810 = vmatpush.msra.mxu0 %v1809
    %v1811 = vand.u32 %v574, 4294901760
    %v1812 = vsub.f32 %v574, %v1811
    %1813 = vmatpush.msra.mxu0 %v1812
    %v1814 = vand.u32 %v567, 4294901760
    %v1815 = vsub.f32 %v567, %v1814
    %1816 = vmatpush.msra.mxu0 %v1815
    %v1817 = vand.u32 %v560, 4294901760
    %v1818 = vsub.f32 %v560, %v1817
    %1819 = vmatpush.msra.mxu0 %v1818
    %v1820 = vand.u32 %v553, 4294901760
    %v1821 = vsub.f32 %v553, %v1820
    %1822 = vmatpush.msra.mxu0 %v1821
    %v1823 = vand.u32 %v546, 4294901760
    %v1824 = vsub.f32 %v546, %v1823
    %1825 = vmatpush.msra.mxu0 %v1824
    %v1826 = vand.u32 %v539, 4294901760
    %v1827 = vsub.f32 %v539, %v1826
    %1828 = vmatpush.msra.mxu0 %v1827
    %v1829 = vand.u32 %v532, 4294901760
    %v1830 = vsub.f32 %v532, %v1829
    %1831 = vmatpush.msra.mxu0 %v1830
    %v1832 = vand.u32 %v525, 4294901760
    %v1833 = vsub.f32 %v525, %v1832
    %1834 = vmatpush.msra.mxu0 %v1833
    %v1835 = vand.u32 %v518, 4294901760
    %v1836 = vsub.f32 %v518, %v1835
    %1837 = vmatpush.msra.mxu0 %v1836
    %v1838 = vand.u32 %v511, 4294901760
    %v1839 = vsub.f32 %v511, %v1838
    %1840 = vmatpush.msra.mxu0 %v1839
    %v1841 = vand.u32 %v504, 4294901760
    %v1842 = vsub.f32 %v504, %v1841
    %1843 = vmatpush.msra.mxu0 %v1842
    %v1844 = vand.u32 %v390, 4294901760
    %v1845 = vsub.f32 %v390, %v1844
    %1846 = vmatmul.f32.gmra.mxu0 %v1845
    %v1847 = vpop.f32.mrf.mxu0
    %v1848 = vadd.f32 %v1794, %v1847
    %1849 = vdwg.mxu0
    %v1850 = vand.u32 %v609, 4294901760
    %1851 = vmatpush.msra.mxu0 %v1850
    %v1852 = vand.u32 %v602, 4294901760
    %1853 = vmatpush.msra.mxu0 %v1852
    %v1854 = vand.u32 %v595, 4294901760
    %1855 = vmatpush.msra.mxu0 %v1854
    %v1856 = vand.u32 %v588, 4294901760
    %1857 = vmatpush.msra.mxu0 %v1856
    %v1858 = vand.u32 %v581, 4294901760
    %1859 = vmatpush.msra.mxu0 %v1858
    %v1860 = vand.u32 %v574, 4294901760
    %1861 = vmatpush.msra.mxu0 %v1860
    %v1862 = vand.u32 %v567, 4294901760
    %1863 = vmatpush.msra.mxu0 %v1862
    %v1864 = vand.u32 %v560, 4294901760
    %1865 = vmatpush.msra.mxu0 %v1864
    %v1866 = vand.u32 %v553, 4294901760
    %1867 = vmatpush.msra.mxu0 %v1866
    %v1868 = vand.u32 %v546, 4294901760
    %1869 = vmatpush.msra.mxu0 %v1868
    %v1870 = vand.u32 %v539, 4294901760
    %1871 = vmatpush.msra.mxu0 %v1870
    %v1872 = vand.u32 %v532, 4294901760
    %1873 = vmatpush.msra.mxu0 %v1872
    %v1874 = vand.u32 %v525, 4294901760
    %1875 = vmatpush.msra.mxu0 %v1874
    %v1876 = vand.u32 %v518, 4294901760
    %1877 = vmatpush.msra.mxu0 %v1876
    %v1878 = vand.u32 %v511, 4294901760
    %1879 = vmatpush.msra.mxu0 %v1878
    %v1880 = vand.u32 %v504, 4294901760
    %1881 = vmatpush.msra.mxu0 %v1880
    %v1882 = vand.u32 %v390, 4294901760
    %v1883 = vsub.f32 %v390, %v1882
    %v1884 = vand.u32 %v1883, 4294901760
    %1885 = vmatmul.f32.gmra.mxu0 %v1884
    %v1886 = vpop.f32.mrf.mxu0
    %v1887 = vadd.f32 %v1848, %v1886
    %1888 = vdwg.mxu0
    %v1889 = vand.u32 %v609, 4294901760
    %v1890 = vsub.f32 %v609, %v1889
    %v1891 = vand.u32 %v1890, 4294901760
    %1892 = vmatpush.msra.mxu0 %v1891
    %v1893 = vand.u32 %v602, 4294901760
    %v1894 = vsub.f32 %v602, %v1893
    %v1895 = vand.u32 %v1894, 4294901760
    %1896 = vmatpush.msra.mxu0 %v1895
    %v1897 = vand.u32 %v595, 4294901760
    %v1898 = vsub.f32 %v595, %v1897
    %v1899 = vand.u32 %v1898, 4294901760
    %1900 = vmatpush.msra.mxu0 %v1899
    %v1901 = vand.u32 %v588, 4294901760
    %v1902 = vsub.f32 %v588, %v1901
    %v1903 = vand.u32 %v1902, 4294901760
    %1904 = vmatpush.msra.mxu0 %v1903
    %v1905 = vand.u32 %v581, 4294901760
    %v1906 = vsub.f32 %v581, %v1905
    %v1907 = vand.u32 %v1906, 4294901760
    %1908 = vmatpush.msra.mxu0 %v1907
    %v1909 = vand.u32 %v574, 4294901760
    %v1910 = vsub.f32 %v574, %v1909
    %v1911 = vand.u32 %v1910, 4294901760
    %1912 = vmatpush.msra.mxu0 %v1911
    %v1913 = vand.u32 %v567, 4294901760
    %v1914 = vsub.f32 %v567, %v1913
    %v1915 = vand.u32 %v1914, 4294901760
    %1916 = vmatpush.msra.mxu0 %v1915
    %v1917 = vand.u32 %v560, 4294901760
    %v1918 = vsub.f32 %v560, %v1917
    %v1919 = vand.u32 %v1918, 4294901760
    %1920 = vmatpush.msra.mxu0 %v1919
    %v1921 = vand.u32 %v553, 4294901760
    %v1922 = vsub.f32 %v553, %v1921
    %v1923 = vand.u32 %v1922, 4294901760
    %1924 = vmatpush.msra.mxu0 %v1923
    %v1925 = vand.u32 %v546, 4294901760
    %v1926 = vsub.f32 %v546, %v1925
    %v1927 = vand.u32 %v1926, 4294901760
    %1928 = vmatpush.msra.mxu0 %v1927
    %v1929 = vand.u32 %v539, 4294901760
    %v1930 = vsub.f32 %v539, %v1929
    %v1931 = vand.u32 %v1930, 4294901760
    %1932 = vmatpush.msra.mxu0 %v1931
    %v1933 = vand.u32 %v532, 4294901760
    %v1934 = vsub.f32 %v532, %v1933
    %v1935 = vand.u32 %v1934, 4294901760
    %1936 = vmatpush.msra.mxu0 %v1935
    %v1937 = vand.u32 %v525, 4294901760
    %v1938 = vsub.f32 %v525, %v1937
    %v1939 = vand.u32 %v1938, 4294901760
    %1940 = vmatpush.msra.mxu0 %v1939
    %v1941 = vand.u32 %v518, 4294901760
    %v1942 = vsub.f32 %v518, %v1941
    %v1943 = vand.u32 %v1942, 4294901760
    %1944 = vmatpush.msra.mxu0 %v1943
    %v1945 = vand.u32 %v511, 4294901760
    %v1946 = vsub.f32 %v511, %v1945
    %v1947 = vand.u32 %v1946, 4294901760
    %1948 = vmatpush.msra.mxu0 %v1947
    %v1949 = vand.u32 %v504, 4294901760
    %v1950 = vsub.f32 %v504, %v1949
    %v1951 = vand.u32 %v1950, 4294901760
    %1952 = vmatpush.msra.mxu0 %v1951
    %v1953 = vand.u32 %v390, 4294901760
    %1954 = vmatmul.f32.gmra.mxu0 %v1953
    %v1955 = vpop.f32.mrf.mxu0
    %v1956 = vadd.f32 %v1887, %v1955
    %1957 = vdwg.mxu0
    %v1958 = vand.u32 %v609, 4294901760
    %1959 = vmatpush.msra.mxu0 %v1958
    %v1960 = vand.u32 %v602, 4294901760
    %1961 = vmatpush.msra.mxu0 %v1960
    %v1962 = vand.u32 %v595, 4294901760
    %1963 = vmatpush.msra.mxu0 %v1962
    %v1964 = vand.u32 %v588, 4294901760
    %1965 = vmatpush.msra.mxu0 %v1964
    %v1966 = vand.u32 %v581, 4294901760
    %1967 = vmatpush.msra.mxu0 %v1966
    %v1968 = vand.u32 %v574, 4294901760
    %1969 = vmatpush.msra.mxu0 %v1968
    %v1970 = vand.u32 %v567, 4294901760
    %1971 = vmatpush.msra.mxu0 %v1970
    %v1972 = vand.u32 %v560, 4294901760
    %1973 = vmatpush.msra.mxu0 %v1972
    %v1974 = vand.u32 %v553, 4294901760
    %1975 = vmatpush.msra.mxu0 %v1974
    %v1976 = vand.u32 %v546, 4294901760
    %1977 = vmatpush.msra.mxu0 %v1976
    %v1978 = vand.u32 %v539, 4294901760
    %1979 = vmatpush.msra.mxu0 %v1978
    %v1980 = vand.u32 %v532, 4294901760
    %1981 = vmatpush.msra.mxu0 %v1980
    %v1982 = vand.u32 %v525, 4294901760
    %1983 = vmatpush.msra.mxu0 %v1982
    %v1984 = vand.u32 %v518, 4294901760
    %1985 = vmatpush.msra.mxu0 %v1984
    %v1986 = vand.u32 %v511, 4294901760
    %1987 = vmatpush.msra.mxu0 %v1986
    %v1988 = vand.u32 %v504, 4294901760
    %1989 = vmatpush.msra.mxu0 %v1988
    %v1990 = vand.u32 %v390, 4294901760
    %1991 = vmatmul.f32.gmra.mxu0 %v1990
    %v1992 = vpop.f32.mrf.mxu0
    %v1993 = vadd.f32 %v1956, %v1992
    %1994 = vdwg.mxu0
    %v1995 = vand.u32 %v498, 4294901760
    %1996 = vmatpush.msra.mxu0 %v1995
    %v1997 = vand.u32 %v491, 4294901760
    %1998 = vmatpush.msra.mxu0 %v1997
    %v1999 = vand.u32 %v484, 4294901760
    %2000 = vmatpush.msra.mxu0 %v1999
    %v2001 = vand.u32 %v477, 4294901760
    %2002 = vmatpush.msra.mxu0 %v2001
    %v2003 = vand.u32 %v470, 4294901760
    %2004 = vmatpush.msra.mxu0 %v2003
    %v2005 = vand.u32 %v463, 4294901760
    %2006 = vmatpush.msra.mxu0 %v2005
    %v2007 = vand.u32 %v456, 4294901760
    %2008 = vmatpush.msra.mxu0 %v2007
    %v2009 = vand.u32 %v449, 4294901760
    %2010 = vmatpush.msra.mxu0 %v2009
    %v2011 = vand.u32 %v442, 4294901760
    %2012 = vmatpush.msra.mxu0 %v2011
    %v2013 = vand.u32 %v435, 4294901760
    %2014 = vmatpush.msra.mxu0 %v2013
    %v2015 = vand.u32 %v428, 4294901760
    %2016 = vmatpush.msra.mxu0 %v2015
    %v2017 = vand.u32 %v421, 4294901760
    %2018 = vmatpush.msra.mxu0 %v2017
    %v2019 = vand.u32 %v414, 4294901760
    %2020 = vmatpush.msra.mxu0 %v2019
    %v2021 = vand.u32 %v407, 4294901760
    %2022 = vmatpush.msra.mxu0 %v2021
    %v2023 = vand.u32 %v400, 4294901760
    %2024 = vmatpush.msra.mxu0 %v2023
    %v2025 = vand.u32 %v393, 4294901760
    %2026 = vmatpush.msra.mxu0 %v2025
    %v2027 = vand.u32 %v389, 4294901760
    %v2028 = vsub.f32 %v389, %v2027
    %v2029 = vand.u32 %v2028, 4294901760
    %v2030 = vsub.f32 %v2028, %v2029
    %v2031 = vand.u32 %v2030, 4294901760
    %2032 = vmatmul.f32.gmra.mxu0 %v2031
    %v2033 = vpop.f32.mrf.mxu0
    %v2034 = vadd.f32 %v619, %v2033
    %2035 = vdwg.mxu0
    %v2036 = vand.u32 %v498, 4294901760
    %v2037 = vsub.f32 %v498, %v2036
    %v2038 = vand.u32 %v2037, 4294901760
    %v2039 = vsub.f32 %v2037, %v2038
    %v2040 = vand.u32 %v2039, 4294901760
    %2041 = vmatpush.msra.mxu0 %v2040
    %v2042 = vand.u32 %v491, 4294901760
    %v2043 = vsub.f32 %v491, %v2042
    %v2044 = vand.u32 %v2043, 4294901760
    %v2045 = vsub.f32 %v2043, %v2044
    %v2046 = vand.u32 %v2045, 4294901760
    %2047 = vmatpush.msra.mxu0 %v2046
    %v2048 = vand.u32 %v484, 4294901760
    %v2049 = vsub.f32 %v484, %v2048
    %v2050 = vand.u32 %v2049, 4294901760
    %v2051 = vsub.f32 %v2049, %v2050
    %v2052 = vand.u32 %v2051, 4294901760
    %2053 = vmatpush.msra.mxu0 %v2052
    %v2054 = vand.u32 %v477, 4294901760
    %v2055 = vsub.f32 %v477, %v2054
    %v2056 = vand.u32 %v2055, 4294901760
    %v2057 = vsub.f32 %v2055, %v2056
    %v2058 = vand.u32 %v2057, 4294901760
    %2059 = vmatpush.msra.mxu0 %v2058
    %v2060 = vand.u32 %v470, 4294901760
    %v2061 = vsub.f32 %v470, %v2060
    %v2062 = vand.u32 %v2061, 4294901760
    %v2063 = vsub.f32 %v2061, %v2062
    %v2064 = vand.u32 %v2063, 4294901760
    %2065 = vmatpush.msra.mxu0 %v2064
    %v2066 = vand.u32 %v463, 4294901760
    %v2067 = vsub.f32 %v463, %v2066
    %v2068 = vand.u32 %v2067, 4294901760
    %v2069 = vsub.f32 %v2067, %v2068
    %v2070 = vand.u32 %v2069, 4294901760
    %2071 = vmatpush.msra.mxu0 %v2070
    %v2072 = vand.u32 %v456, 4294901760
    %v2073 = vsub.f32 %v456, %v2072
    %v2074 = vand.u32 %v2073, 4294901760
    %v2075 = vsub.f32 %v2073, %v2074
    %v2076 = vand.u32 %v2075, 4294901760
    %2077 = vmatpush.msra.mxu0 %v2076
    %v2078 = vand.u32 %v449, 4294901760
    %v2079 = vsub.f32 %v449, %v2078
    %v2080 = vand.u32 %v2079, 4294901760
    %v2081 = vsub.f32 %v2079, %v2080
    %v2082 = vand.u32 %v2081, 4294901760
    %2083 = vmatpush.msra.mxu0 %v2082
    %v2084 = vand.u32 %v442, 4294901760
    %v2085 = vsub.f32 %v442, %v2084
    %v2086 = vand.u32 %v2085, 4294901760
    %v2087 = vsub.f32 %v2085, %v2086
    %v2088 = vand.u32 %v2087, 4294901760
    %2089 = vmatpush.msra.mxu0 %v2088
    %v2090 = vand.u32 %v435, 4294901760
    %v2091 = vsub.f32 %v435, %v2090
    %v2092 = vand.u32 %v2091, 4294901760
    %v2093 = vsub.f32 %v2091, %v2092
    %v2094 = vand.u32 %v2093, 4294901760
    %2095 = vmatpush.msra.mxu0 %v2094
    %v2096 = vand.u32 %v428, 4294901760
    %v2097 = vsub.f32 %v428, %v2096
    %v2098 = vand.u32 %v2097, 4294901760
    %v2099 = vsub.f32 %v2097, %v2098
    %v2100 = vand.u32 %v2099, 4294901760
    %2101 = vmatpush.msra.mxu0 %v2100
    %v2102 = vand.u32 %v421, 4294901760
    %v2103 = vsub.f32 %v421, %v2102
    %v2104 = vand.u32 %v2103, 4294901760
    %v2105 = vsub.f32 %v2103, %v2104
    %v2106 = vand.u32 %v2105, 4294901760
    %2107 = vmatpush.msra.mxu0 %v2106
    %v2108 = vand.u32 %v414, 4294901760
    %v2109 = vsub.f32 %v414, %v2108
    %v2110 = vand.u32 %v2109, 4294901760
    %v2111 = vsub.f32 %v2109, %v2110
    %v2112 = vand.u32 %v2111, 4294901760
    %2113 = vmatpush.msra.mxu0 %v2112
    %v2114 = vand.u32 %v407, 4294901760
    %v2115 = vsub.f32 %v407, %v2114
    %v2116 = vand.u32 %v2115, 4294901760
    %v2117 = vsub.f32 %v2115, %v2116
    %v2118 = vand.u32 %v2117, 4294901760
    %2119 = vmatpush.msra.mxu0 %v2118
    %v2120 = vand.u32 %v400, 4294901760
    %v2121 = vsub.f32 %v400, %v2120
    %v2122 = vand.u32 %v2121, 4294901760
    %v2123 = vsub.f32 %v2121, %v2122
    %v2124 = vand.u32 %v2123, 4294901760
    %2125 = vmatpush.msra.mxu0 %v2124
    %v2126 = vand.u32 %v393, 4294901760
    %v2127 = vsub.f32 %v393, %v2126
    %v2128 = vand.u32 %v2127, 4294901760
    %v2129 = vsub.f32 %v2127, %v2128
    %v2130 = vand.u32 %v2129, 4294901760
    %2131 = vmatpush.msra.mxu0 %v2130
    %v2132 = vand.u32 %v389, 4294901760
    %2133 = vmatmul.f32.gmra.mxu0 %v2132
    %v2134 = vpop.f32.mrf.mxu0
    %v2135 = vadd.f32 %v2034, %v2134
    %2136 = vdwg.mxu0
    %v2137 = vand.u32 %v498, 4294901760
    %v2138 = vsub.f32 %v498, %v2137
    %2139 = vmatpush.msra.mxu0 %v2138
    %v2140 = vand.u32 %v491, 4294901760
    %v2141 = vsub.f32 %v491, %v2140
    %2142 = vmatpush.msra.mxu0 %v2141
    %v2143 = vand.u32 %v484, 4294901760
    %v2144 = vsub.f32 %v484, %v2143
    %2145 = vmatpush.msra.mxu0 %v2144
    %v2146 = vand.u32 %v477, 4294901760
    %v2147 = vsub.f32 %v477, %v2146
    %2148 = vmatpush.msra.mxu0 %v2147
    %v2149 = vand.u32 %v470, 4294901760
    %v2150 = vsub.f32 %v470, %v2149
    %2151 = vmatpush.msra.mxu0 %v2150
    %v2152 = vand.u32 %v463, 4294901760
    %v2153 = vsub.f32 %v463, %v2152
    %2154 = vmatpush.msra.mxu0 %v2153
    %v2155 = vand.u32 %v456, 4294901760
    %v2156 = vsub.f32 %v456, %v2155
    %2157 = vmatpush.msra.mxu0 %v2156
    %v2158 = vand.u32 %v449, 4294901760
    %v2159 = vsub.f32 %v449, %v2158
    %2160 = vmatpush.msra.mxu0 %v2159
    %v2161 = vand.u32 %v442, 4294901760
    %v2162 = vsub.f32 %v442, %v2161
    %2163 = vmatpush.msra.mxu0 %v2162
    %v2164 = vand.u32 %v435, 4294901760
    %v2165 = vsub.f32 %v435, %v2164
    %2166 = vmatpush.msra.mxu0 %v2165
    %v2167 = vand.u32 %v428, 4294901760
    %v2168 = vsub.f32 %v428, %v2167
    %2169 = vmatpush.msra.mxu0 %v2168
    %v2170 = vand.u32 %v421, 4294901760
    %v2171 = vsub.f32 %v421, %v2170
    %2172 = vmatpush.msra.mxu0 %v2171
    %v2173 = vand.u32 %v414, 4294901760
    %v2174 = vsub.f32 %v414, %v2173
    %2175 = vmatpush.msra.mxu0 %v2174
    %v2176 = vand.u32 %v407, 4294901760
    %v2177 = vsub.f32 %v407, %v2176
    %2178 = vmatpush.msra.mxu0 %v2177
    %v2179 = vand.u32 %v400, 4294901760
    %v2180 = vsub.f32 %v400, %v2179
    %2181 = vmatpush.msra.mxu0 %v2180
    %v2182 = vand.u32 %v393, 4294901760
    %v2183 = vsub.f32 %v393, %v2182
    %2184 = vmatpush.msra.mxu0 %v2183
    %v2185 = vand.u32 %v389, 4294901760
    %v2186 = vsub.f32 %v389, %v2185
    %2187 = vmatmul.f32.gmra.mxu0 %v2186
    %v2188 = vpop.f32.mrf.mxu0
    %v2189 = vadd.f32 %v2135, %v2188
    %2190 = vdwg.mxu0
    %v2191 = vand.u32 %v498, 4294901760
    %2192 = vmatpush.msra.mxu0 %v2191
    %v2193 = vand.u32 %v491, 4294901760
    %2194 = vmatpush.msra.mxu0 %v2193
    %v2195 = vand.u32 %v484, 4294901760
    %2196 = vmatpush.msra.mxu0 %v2195
    %v2197 = vand.u32 %v477, 4294901760
    %2198 = vmatpush.msra.mxu0 %v2197
    %v2199 = vand.u32 %v470, 4294901760
    %2200 = vmatpush.msra.mxu0 %v2199
    %v2201 = vand.u32 %v463, 4294901760
    %2202 = vmatpush.msra.mxu0 %v2201
    %v2203 = vand.u32 %v456, 4294901760
    %2204 = vmatpush.msra.mxu0 %v2203
    %v2205 = vand.u32 %v449, 4294901760
    %2206 = vmatpush.msra.mxu0 %v2205
    %v2207 = vand.u32 %v442, 4294901760
    %2208 = vmatpush.msra.mxu0 %v2207
    %v2209 = vand.u32 %v435, 4294901760
    %2210 = vmatpush.msra.mxu0 %v2209
    %v2211 = vand.u32 %v428, 4294901760
    %2212 = vmatpush.msra.mxu0 %v2211
    %v2213 = vand.u32 %v421, 4294901760
    %2214 = vmatpush.msra.mxu0 %v2213
    %v2215 = vand.u32 %v414, 4294901760
    %2216 = vmatpush.msra.mxu0 %v2215
    %v2217 = vand.u32 %v407, 4294901760
    %2218 = vmatpush.msra.mxu0 %v2217
    %v2219 = vand.u32 %v400, 4294901760
    %2220 = vmatpush.msra.mxu0 %v2219
    %v2221 = vand.u32 %v393, 4294901760
    %2222 = vmatpush.msra.mxu0 %v2221
    %v2223 = vand.u32 %v389, 4294901760
    %v2224 = vsub.f32 %v389, %v2223
    %v2225 = vand.u32 %v2224, 4294901760
    %2226 = vmatmul.f32.gmra.mxu0 %v2225
    %v2227 = vpop.f32.mrf.mxu0
    %v2228 = vadd.f32 %v2189, %v2227
    %2229 = vdwg.mxu0
    %v2230 = vand.u32 %v498, 4294901760
    %v2231 = vsub.f32 %v498, %v2230
    %v2232 = vand.u32 %v2231, 4294901760
    %2233 = vmatpush.msra.mxu0 %v2232
    %v2234 = vand.u32 %v491, 4294901760
    %v2235 = vsub.f32 %v491, %v2234
    %v2236 = vand.u32 %v2235, 4294901760
    %2237 = vmatpush.msra.mxu0 %v2236
    %v2238 = vand.u32 %v484, 4294901760
    %v2239 = vsub.f32 %v484, %v2238
    %v2240 = vand.u32 %v2239, 4294901760
    %2241 = vmatpush.msra.mxu0 %v2240
    %v2242 = vand.u32 %v477, 4294901760
    %v2243 = vsub.f32 %v477, %v2242
    %v2244 = vand.u32 %v2243, 4294901760
    %2245 = vmatpush.msra.mxu0 %v2244
    %v2246 = vand.u32 %v470, 4294901760
    %v2247 = vsub.f32 %v470, %v2246
    %v2248 = vand.u32 %v2247, 4294901760
    %2249 = vmatpush.msra.mxu0 %v2248
    %v2250 = vand.u32 %v463, 4294901760
    %v2251 = vsub.f32 %v463, %v2250
    %v2252 = vand.u32 %v2251, 4294901760
    %2253 = vmatpush.msra.mxu0 %v2252
    %v2254 = vand.u32 %v456, 4294901760
    %v2255 = vsub.f32 %v456, %v2254
    %v2256 = vand.u32 %v2255, 4294901760
    %2257 = vmatpush.msra.mxu0 %v2256
    %v2258 = vand.u32 %v449, 4294901760
    %v2259 = vsub.f32 %v449, %v2258
    %v2260 = vand.u32 %v2259, 4294901760
    %2261 = vmatpush.msra.mxu0 %v2260
    %v2262 = vand.u32 %v442, 4294901760
    %v2263 = vsub.f32 %v442, %v2262
    %v2264 = vand.u32 %v2263, 4294901760
    %2265 = vmatpush.msra.mxu0 %v2264
    %v2266 = vand.u32 %v435, 4294901760
    %v2267 = vsub.f32 %v435, %v2266
    %v2268 = vand.u32 %v2267, 4294901760
    %2269 = vmatpush.msra.mxu0 %v2268
    %v2270 = vand.u32 %v428, 4294901760
    %v2271 = vsub.f32 %v428, %v2270
    %v2272 = vand.u32 %v2271, 4294901760
    %2273 = vmatpush.msra.mxu0 %v2272
    %v2274 = vand.u32 %v421, 4294901760
    %v2275 = vsub.f32 %v421, %v2274
    %v2276 = vand.u32 %v2275, 4294901760
    %2277 = vmatpush.msra.mxu0 %v2276
    %v2278 = vand.u32 %v414, 4294901760
    %v2279 = vsub.f32 %v414, %v2278
    %v2280 = vand.u32 %v2279, 4294901760
    %2281 = vmatpush.msra.mxu0 %v2280
    %v2282 = vand.u32 %v407, 4294901760
    %v2283 = vsub.f32 %v407, %v2282
    %v2284 = vand.u32 %v2283, 4294901760
    %2285 = vmatpush.msra.mxu0 %v2284
    %v2286 = vand.u32 %v400, 4294901760
    %v2287 = vsub.f32 %v400, %v2286
    %v2288 = vand.u32 %v2287, 4294901760
    %2289 = vmatpush.msra.mxu0 %v2288
    %v2290 = vand.u32 %v393, 4294901760
    %v2291 = vsub.f32 %v393, %v2290
    %v2292 = vand.u32 %v2291, 4294901760
    %2293 = vmatpush.msra.mxu0 %v2292
    %v2294 = vand.u32 %v389, 4294901760
    %2295 = vmatmul.f32.gmra.mxu0 %v2294
    %v2296 = vpop.f32.mrf.mxu0
    %v2297 = vadd.f32 %v2228, %v2296
    %2298 = vdwg.mxu0
    %v2299 = vand.u32 %v498, 4294901760
    %2300 = vmatpush.msra.mxu0 %v2299
    %v2301 = vand.u32 %v491, 4294901760
    %2302 = vmatpush.msra.mxu0 %v2301
    %v2303 = vand.u32 %v484, 4294901760
    %2304 = vmatpush.msra.mxu0 %v2303
    %v2305 = vand.u32 %v477, 4294901760
    %2306 = vmatpush.msra.mxu0 %v2305
    %v2307 = vand.u32 %v470, 4294901760
    %2308 = vmatpush.msra.mxu0 %v2307
    %v2309 = vand.u32 %v463, 4294901760
    %2310 = vmatpush.msra.mxu0 %v2309
    %v2311 = vand.u32 %v456, 4294901760
    %2312 = vmatpush.msra.mxu0 %v2311
    %v2313 = vand.u32 %v449, 4294901760
    %2314 = vmatpush.msra.mxu0 %v2313
    %v2315 = vand.u32 %v442, 4294901760
    %2316 = vmatpush.msra.mxu0 %v2315
    %v2317 = vand.u32 %v435, 4294901760
    %2318 = vmatpush.msra.mxu0 %v2317
    %v2319 = vand.u32 %v428, 4294901760
    %2320 = vmatpush.msra.mxu0 %v2319
    %v2321 = vand.u32 %v421, 4294901760
    %2322 = vmatpush.msra.mxu0 %v2321
    %v2323 = vand.u32 %v414, 4294901760
    %2324 = vmatpush.msra.mxu0 %v2323
    %v2325 = vand.u32 %v407, 4294901760
    %2326 = vmatpush.msra.mxu0 %v2325
    %v2327 = vand.u32 %v400, 4294901760
    %2328 = vmatpush.msra.mxu0 %v2327
    %v2329 = vand.u32 %v393, 4294901760
    %2330 = vmatpush.msra.mxu0 %v2329
    %v2331 = vand.u32 %v389, 4294901760
    %2332 = vmatmul.f32.gmra.mxu0 %v2331
    %v2333 = vpop.f32.mrf.mxu0
    %v2334 = vadd.f32 %v2297, %v2333
    %2335 = vdwg.mxu0
    %v2336 = vand.u32 %v610, 4294901760
    %2337 = vmatpush.msra.mxu0 %v2336
    %v2338 = vand.u32 %v603, 4294901760
    %2339 = vmatpush.msra.mxu0 %v2338
    %v2340 = vand.u32 %v596, 4294901760
    %2341 = vmatpush.msra.mxu0 %v2340
    %v2342 = vand.u32 %v589, 4294901760
    %2343 = vmatpush.msra.mxu0 %v2342
    %v2344 = vand.u32 %v582, 4294901760
    %2345 = vmatpush.msra.mxu0 %v2344
    %v2346 = vand.u32 %v575, 4294901760
    %2347 = vmatpush.msra.mxu0 %v2346
    %v2348 = vand.u32 %v568, 4294901760
    %2349 = vmatpush.msra.mxu0 %v2348
    %v2350 = vand.u32 %v561, 4294901760
    %2351 = vmatpush.msra.mxu0 %v2350
    %v2352 = vand.u32 %v554, 4294901760
    %2353 = vmatpush.msra.mxu0 %v2352
    %v2354 = vand.u32 %v547, 4294901760
    %2355 = vmatpush.msra.mxu0 %v2354
    %v2356 = vand.u32 %v540, 4294901760
    %2357 = vmatpush.msra.mxu0 %v2356
    %v2358 = vand.u32 %v533, 4294901760
    %2359 = vmatpush.msra.mxu0 %v2358
    %v2360 = vand.u32 %v526, 4294901760
    %2361 = vmatpush.msra.mxu0 %v2360
    %v2362 = vand.u32 %v519, 4294901760
    %2363 = vmatpush.msra.mxu0 %v2362
    %v2364 = vand.u32 %v512, 4294901760
    %2365 = vmatpush.msra.mxu0 %v2364
    %v2366 = vand.u32 %v505, 4294901760
    %2367 = vmatpush.msra.mxu0 %v2366
    %v2368 = vand.u32 %v390, 4294901760
    %v2369 = vsub.f32 %v390, %v2368
    %v2370 = vand.u32 %v2369, 4294901760
    %v2371 = vsub.f32 %v2369, %v2370
    %v2372 = vand.u32 %v2371, 4294901760
    %2373 = vmatmul.f32.gmra.mxu0 %v2372
    %v2374 = vpop.f32.mrf.mxu0
    %v2375 = vadd.f32 %v2334, %v2374
    %2376 = vdwg.mxu0
    %v2377 = vand.u32 %v610, 4294901760
    %v2378 = vsub.f32 %v610, %v2377
    %v2379 = vand.u32 %v2378, 4294901760
    %v2380 = vsub.f32 %v2378, %v2379
    %v2381 = vand.u32 %v2380, 4294901760
    %2382 = vmatpush.msra.mxu0 %v2381
    %v2383 = vand.u32 %v603, 4294901760
    %v2384 = vsub.f32 %v603, %v2383
    %v2385 = vand.u32 %v2384, 4294901760
    %v2386 = vsub.f32 %v2384, %v2385
    %v2387 = vand.u32 %v2386, 4294901760
    %2388 = vmatpush.msra.mxu0 %v2387
    %v2389 = vand.u32 %v596, 4294901760
    %v2390 = vsub.f32 %v596, %v2389
    %v2391 = vand.u32 %v2390, 4294901760
    %v2392 = vsub.f32 %v2390, %v2391
    %v2393 = vand.u32 %v2392, 4294901760
    %2394 = vmatpush.msra.mxu0 %v2393
    %v2395 = vand.u32 %v589, 4294901760
    %v2396 = vsub.f32 %v589, %v2395
    %v2397 = vand.u32 %v2396, 4294901760
    %v2398 = vsub.f32 %v2396, %v2397
    %v2399 = vand.u32 %v2398, 4294901760
    %2400 = vmatpush.msra.mxu0 %v2399
    %v2401 = vand.u32 %v582, 4294901760
    %v2402 = vsub.f32 %v582, %v2401
    %v2403 = vand.u32 %v2402, 4294901760
    %v2404 = vsub.f32 %v2402, %v2403
    %v2405 = vand.u32 %v2404, 4294901760
    %2406 = vmatpush.msra.mxu0 %v2405
    %v2407 = vand.u32 %v575, 4294901760
    %v2408 = vsub.f32 %v575, %v2407
    %v2409 = vand.u32 %v2408, 4294901760
    %v2410 = vsub.f32 %v2408, %v2409
    %v2411 = vand.u32 %v2410, 4294901760
    %2412 = vmatpush.msra.mxu0 %v2411
    %v2413 = vand.u32 %v568, 4294901760
    %v2414 = vsub.f32 %v568, %v2413
    %v2415 = vand.u32 %v2414, 4294901760
    %v2416 = vsub.f32 %v2414, %v2415
    %v2417 = vand.u32 %v2416, 4294901760
    %2418 = vmatpush.msra.mxu0 %v2417
    %v2419 = vand.u32 %v561, 4294901760
    %v2420 = vsub.f32 %v561, %v2419
    %v2421 = vand.u32 %v2420, 4294901760
    %v2422 = vsub.f32 %v2420, %v2421
    %v2423 = vand.u32 %v2422, 4294901760
    %2424 = vmatpush.msra.mxu0 %v2423
    %v2425 = vand.u32 %v554, 4294901760
    %v2426 = vsub.f32 %v554, %v2425
    %v2427 = vand.u32 %v2426, 4294901760
    %v2428 = vsub.f32 %v2426, %v2427
    %v2429 = vand.u32 %v2428, 4294901760
    %2430 = vmatpush.msra.mxu0 %v2429
    %v2431 = vand.u32 %v547, 4294901760
    %v2432 = vsub.f32 %v547, %v2431
    %v2433 = vand.u32 %v2432, 4294901760
    %v2434 = vsub.f32 %v2432, %v2433
    %v2435 = vand.u32 %v2434, 4294901760
    %2436 = vmatpush.msra.mxu0 %v2435
    %v2437 = vand.u32 %v540, 4294901760
    %v2438 = vsub.f32 %v540, %v2437
    %v2439 = vand.u32 %v2438, 4294901760
    %v2440 = vsub.f32 %v2438, %v2439
    %v2441 = vand.u32 %v2440, 4294901760
    %2442 = vmatpush.msra.mxu0 %v2441
    %v2443 = vand.u32 %v533, 4294901760
    %v2444 = vsub.f32 %v533, %v2443
    %v2445 = vand.u32 %v2444, 4294901760
    %v2446 = vsub.f32 %v2444, %v2445
    %v2447 = vand.u32 %v2446, 4294901760
    %2448 = vmatpush.msra.mxu0 %v2447
    %v2449 = vand.u32 %v526, 4294901760
    %v2450 = vsub.f32 %v526, %v2449
    %v2451 = vand.u32 %v2450, 4294901760
    %v2452 = vsub.f32 %v2450, %v2451
    %v2453 = vand.u32 %v2452, 4294901760
    %2454 = vmatpush.msra.mxu0 %v2453
    %v2455 = vand.u32 %v519, 4294901760
    %v2456 = vsub.f32 %v519, %v2455
    %v2457 = vand.u32 %v2456, 4294901760
    %v2458 = vsub.f32 %v2456, %v2457
    %v2459 = vand.u32 %v2458, 4294901760
    %2460 = vmatpush.msra.mxu0 %v2459
    %v2461 = vand.u32 %v512, 4294901760
    %v2462 = vsub.f32 %v512, %v2461
    %v2463 = vand.u32 %v2462, 4294901760
    %v2464 = vsub.f32 %v2462, %v2463
    %v2465 = vand.u32 %v2464, 4294901760
    %2466 = vmatpush.msra.mxu0 %v2465
    %v2467 = vand.u32 %v505, 4294901760
    %v2468 = vsub.f32 %v505, %v2467
    %v2469 = vand.u32 %v2468, 4294901760
    %v2470 = vsub.f32 %v2468, %v2469
    %v2471 = vand.u32 %v2470, 4294901760
    %2472 = vmatpush.msra.mxu0 %v2471
    %v2473 = vand.u32 %v390, 4294901760
    %2474 = vmatmul.f32.gmra.mxu0 %v2473
    %v2475 = vpop.f32.mrf.mxu0
    %v2476 = vadd.f32 %v2375, %v2475
    %2477 = vdwg.mxu0
    %v2478 = vand.u32 %v610, 4294901760
    %v2479 = vsub.f32 %v610, %v2478
    %2480 = vmatpush.msra.mxu0 %v2479
    %v2481 = vand.u32 %v603, 4294901760
    %v2482 = vsub.f32 %v603, %v2481
    %2483 = vmatpush.msra.mxu0 %v2482
    %v2484 = vand.u32 %v596, 4294901760
    %v2485 = vsub.f32 %v596, %v2484
    %2486 = vmatpush.msra.mxu0 %v2485
    %v2487 = vand.u32 %v589, 4294901760
    %v2488 = vsub.f32 %v589, %v2487
    %2489 = vmatpush.msra.mxu0 %v2488
    %v2490 = vand.u32 %v582, 4294901760
    %v2491 = vsub.f32 %v582, %v2490
    %2492 = vmatpush.msra.mxu0 %v2491
    %v2493 = vand.u32 %v575, 4294901760
    %v2494 = vsub.f32 %v575, %v2493
    %2495 = vmatpush.msra.mxu0 %v2494
    %v2496 = vand.u32 %v568, 4294901760
    %v2497 = vsub.f32 %v568, %v2496
    %2498 = vmatpush.msra.mxu0 %v2497
    %v2499 = vand.u32 %v561, 4294901760
    %v2500 = vsub.f32 %v561, %v2499
    %2501 = vmatpush.msra.mxu0 %v2500
    %v2502 = vand.u32 %v554, 4294901760
    %v2503 = vsub.f32 %v554, %v2502
    %2504 = vmatpush.msra.mxu0 %v2503
    %v2505 = vand.u32 %v547, 4294901760
    %v2506 = vsub.f32 %v547, %v2505
    %2507 = vmatpush.msra.mxu0 %v2506
    %v2508 = vand.u32 %v540, 4294901760
    %v2509 = vsub.f32 %v540, %v2508
    %2510 = vmatpush.msra.mxu0 %v2509
    %v2511 = vand.u32 %v533, 4294901760
    %v2512 = vsub.f32 %v533, %v2511
    %2513 = vmatpush.msra.mxu0 %v2512
    %v2514 = vand.u32 %v526, 4294901760
    %v2515 = vsub.f32 %v526, %v2514
    %2516 = vmatpush.msra.mxu0 %v2515
    %v2517 = vand.u32 %v519, 4294901760
    %v2518 = vsub.f32 %v519, %v2517
    %2519 = vmatpush.msra.mxu0 %v2518
    %v2520 = vand.u32 %v512, 4294901760
    %v2521 = vsub.f32 %v512, %v2520
    %2522 = vmatpush.msra.mxu0 %v2521
    %v2523 = vand.u32 %v505, 4294901760
    %v2524 = vsub.f32 %v505, %v2523
    %2525 = vmatpush.msra.mxu0 %v2524
    %v2526 = vand.u32 %v390, 4294901760
    %v2527 = vsub.f32 %v390, %v2526
    %2528 = vmatmul.f32.gmra.mxu0 %v2527
    %v2529 = vpop.f32.mrf.mxu0
    %v2530 = vadd.f32 %v2476, %v2529
    %2531 = vdwg.mxu0
    %v2532 = vand.u32 %v610, 4294901760
    %2533 = vmatpush.msra.mxu0 %v2532
    %v2534 = vand.u32 %v603, 4294901760
    %2535 = vmatpush.msra.mxu0 %v2534
    %v2536 = vand.u32 %v596, 4294901760
    %2537 = vmatpush.msra.mxu0 %v2536
    %v2538 = vand.u32 %v589, 4294901760
    %2539 = vmatpush.msra.mxu0 %v2538
    %v2540 = vand.u32 %v582, 4294901760
    %2541 = vmatpush.msra.mxu0 %v2540
    %v2542 = vand.u32 %v575, 4294901760
    %2543 = vmatpush.msra.mxu0 %v2542
    %v2544 = vand.u32 %v568, 4294901760
    %2545 = vmatpush.msra.mxu0 %v2544
    %v2546 = vand.u32 %v561, 4294901760
    %2547 = vmatpush.msra.mxu0 %v2546
    %v2548 = vand.u32 %v554, 4294901760
    %2549 = vmatpush.msra.mxu0 %v2548
    %v2550 = vand.u32 %v547, 4294901760
    %2551 = vmatpush.msra.mxu0 %v2550
    %v2552 = vand.u32 %v540, 4294901760
    %2553 = vmatpush.msra.mxu0 %v2552
    %v2554 = vand.u32 %v533, 4294901760
    %2555 = vmatpush.msra.mxu0 %v2554
    %v2556 = vand.u32 %v526, 4294901760
    %2557 = vmatpush.msra.mxu0 %v2556
    %v2558 = vand.u32 %v519, 4294901760
    %2559 = vmatpush.msra.mxu0 %v2558
    %v2560 = vand.u32 %v512, 4294901760
    %2561 = vmatpush.msra.mxu0 %v2560
    %v2562 = vand.u32 %v505, 4294901760
    %2563 = vmatpush.msra.mxu0 %v2562
    %v2564 = vand.u32 %v390, 4294901760
    %v2565 = vsub.f32 %v390, %v2564
    %v2566 = vand.u32 %v2565, 4294901760
    %2567 = vmatmul.f32.gmra.mxu0 %v2566
    %v2568 = vpop.f32.mrf.mxu0
    %v2569 = vadd.f32 %v2530, %v2568
    %2570 = vdwg.mxu0
    %v2571 = vand.u32 %v610, 4294901760
    %v2572 = vsub.f32 %v610, %v2571
    %v2573 = vand.u32 %v2572, 4294901760
    %2574 = vmatpush.msra.mxu0 %v2573
    %v2575 = vand.u32 %v603, 4294901760
    %v2576 = vsub.f32 %v603, %v2575
    %v2577 = vand.u32 %v2576, 4294901760
    %2578 = vmatpush.msra.mxu0 %v2577
    %v2579 = vand.u32 %v596, 4294901760
    %v2580 = vsub.f32 %v596, %v2579
    %v2581 = vand.u32 %v2580, 4294901760
    %2582 = vmatpush.msra.mxu0 %v2581
    %v2583 = vand.u32 %v589, 4294901760
    %v2584 = vsub.f32 %v589, %v2583
    %v2585 = vand.u32 %v2584, 4294901760
    %2586 = vmatpush.msra.mxu0 %v2585
    %v2587 = vand.u32 %v582, 4294901760
    %v2588 = vsub.f32 %v582, %v2587
    %v2589 = vand.u32 %v2588, 4294901760
    %2590 = vmatpush.msra.mxu0 %v2589
    %v2591 = vand.u32 %v575, 4294901760
    %v2592 = vsub.f32 %v575, %v2591
    %v2593 = vand.u32 %v2592, 4294901760
    %2594 = vmatpush.msra.mxu0 %v2593
    %v2595 = vand.u32 %v568, 4294901760
    %v2596 = vsub.f32 %v568, %v2595
    %v2597 = vand.u32 %v2596, 4294901760
    %2598 = vmatpush.msra.mxu0 %v2597
    %v2599 = vand.u32 %v561, 4294901760
    %v2600 = vsub.f32 %v561, %v2599
    %v2601 = vand.u32 %v2600, 4294901760
    %2602 = vmatpush.msra.mxu0 %v2601
    %v2603 = vand.u32 %v554, 4294901760
    %v2604 = vsub.f32 %v554, %v2603
    %v2605 = vand.u32 %v2604, 4294901760
    %2606 = vmatpush.msra.mxu0 %v2605
    %v2607 = vand.u32 %v547, 4294901760
    %v2608 = vsub.f32 %v547, %v2607
    %v2609 = vand.u32 %v2608, 4294901760
    %2610 = vmatpush.msra.mxu0 %v2609
    %v2611 = vand.u32 %v540, 4294901760
    %v2612 = vsub.f32 %v540, %v2611
    %v2613 = vand.u32 %v2612, 4294901760
    %2614 = vmatpush.msra.mxu0 %v2613
    %v2615 = vand.u32 %v533, 4294901760
    %v2616 = vsub.f32 %v533, %v2615
    %v2617 = vand.u32 %v2616, 4294901760
    %2618 = vmatpush.msra.mxu0 %v2617
    %v2619 = vand.u32 %v526, 4294901760
    %v2620 = vsub.f32 %v526, %v2619
    %v2621 = vand.u32 %v2620, 4294901760
    %2622 = vmatpush.msra.mxu0 %v2621
    %v2623 = vand.u32 %v519, 4294901760
    %v2624 = vsub.f32 %v519, %v2623
    %v2625 = vand.u32 %v2624, 4294901760
    %2626 = vmatpush.msra.mxu0 %v2625
    %v2627 = vand.u32 %v512, 4294901760
    %v2628 = vsub.f32 %v512, %v2627
    %v2629 = vand.u32 %v2628, 4294901760
    %2630 = vmatpush.msra.mxu0 %v2629
    %v2631 = vand.u32 %v505, 4294901760
    %v2632 = vsub.f32 %v505, %v2631
    %v2633 = vand.u32 %v2632, 4294901760
    %2634 = vmatpush.msra.mxu0 %v2633
    %v2635 = vand.u32 %v390, 4294901760
    %2636 = vmatmul.f32.gmra.mxu0 %v2635
    %v2637 = vpop.f32.mrf.mxu0
    %v2638 = vadd.f32 %v2569, %v2637
    %2639 = vdwg.mxu0
    %v2640 = vand.u32 %v610, 4294901760
    %2641 = vmatpush.msra.mxu0 %v2640
    %v2642 = vand.u32 %v603, 4294901760
    %2643 = vmatpush.msra.mxu0 %v2642
    %v2644 = vand.u32 %v596, 4294901760
    %2645 = vmatpush.msra.mxu0 %v2644
    %v2646 = vand.u32 %v589, 4294901760
    %2647 = vmatpush.msra.mxu0 %v2646
    %v2648 = vand.u32 %v582, 4294901760
    %2649 = vmatpush.msra.mxu0 %v2648
    %v2650 = vand.u32 %v575, 4294901760
    %2651 = vmatpush.msra.mxu0 %v2650
    %v2652 = vand.u32 %v568, 4294901760
    %2653 = vmatpush.msra.mxu0 %v2652
    %v2654 = vand.u32 %v561, 4294901760
    %2655 = vmatpush.msra.mxu0 %v2654
    %v2656 = vand.u32 %v554, 4294901760
    %2657 = vmatpush.msra.mxu0 %v2656
    %v2658 = vand.u32 %v547, 4294901760
    %2659 = vmatpush.msra.mxu0 %v2658
    %v2660 = vand.u32 %v540, 4294901760
    %2661 = vmatpush.msra.mxu0 %v2660
    %v2662 = vand.u32 %v533, 4294901760
    %2663 = vmatpush.msra.mxu0 %v2662
    %v2664 = vand.u32 %v526, 4294901760
    %2665 = vmatpush.msra.mxu0 %v2664
    %v2666 = vand.u32 %v519, 4294901760
    %2667 = vmatpush.msra.mxu0 %v2666
    %v2668 = vand.u32 %v512, 4294901760
    %2669 = vmatpush.msra.mxu0 %v2668
    %v2670 = vand.u32 %v505, 4294901760
    %2671 = vmatpush.msra.mxu0 %v2670
    %v2672 = vand.u32 %v390, 4294901760
    %2673 = vmatmul.f32.gmra.mxu0 %v2672
    %v2674 = vpop.f32.mrf.mxu0
    %v2675 = vadd.f32 %v2638, %v2674
    %2676 = vdwg.mxu0
    %v2677 = vand.u32 %v499, 4294901760
    %2678 = vmatpush.msra.mxu0 %v2677
    %v2679 = vand.u32 %v492, 4294901760
    %2680 = vmatpush.msra.mxu0 %v2679
    %v2681 = vand.u32 %v485, 4294901760
    %2682 = vmatpush.msra.mxu0 %v2681
    %v2683 = vand.u32 %v478, 4294901760
    %2684 = vmatpush.msra.mxu0 %v2683
    %v2685 = vand.u32 %v471, 4294901760
    %2686 = vmatpush.msra.mxu0 %v2685
    %v2687 = vand.u32 %v464, 4294901760
    %2688 = vmatpush.msra.mxu0 %v2687
    %v2689 = vand.u32 %v457, 4294901760
    %2690 = vmatpush.msra.mxu0 %v2689
    %v2691 = vand.u32 %v450, 4294901760
    %2692 = vmatpush.msra.mxu0 %v2691
    %v2693 = vand.u32 %v443, 4294901760
    %2694 = vmatpush.msra.mxu0 %v2693
    %v2695 = vand.u32 %v436, 4294901760
    %2696 = vmatpush.msra.mxu0 %v2695
    %v2697 = vand.u32 %v429, 4294901760
    %2698 = vmatpush.msra.mxu0 %v2697
    %v2699 = vand.u32 %v422, 4294901760
    %2700 = vmatpush.msra.mxu0 %v2699
    %v2701 = vand.u32 %v415, 4294901760
    %2702 = vmatpush.msra.mxu0 %v2701
    %v2703 = vand.u32 %v408, 4294901760
    %2704 = vmatpush.msra.mxu0 %v2703
    %v2705 = vand.u32 %v401, 4294901760
    %2706 = vmatpush.msra.mxu0 %v2705
    %v2707 = vand.u32 %v394, 4294901760
    %2708 = vmatpush.msra.mxu0 %v2707
    %v2709 = vand.u32 %v389, 4294901760
    %v2710 = vsub.f32 %v389, %v2709
    %v2711 = vand.u32 %v2710, 4294901760
    %v2712 = vsub.f32 %v2710, %v2711
    %v2713 = vand.u32 %v2712, 4294901760
    %2714 = vmatmul.f32.gmra.mxu0 %v2713
    %v2715 = vpop.f32.mrf.mxu0
    %v2716 = vadd.f32 %v620, %v2715
    %2717 = vdwg.mxu0
    %v2718 = vand.u32 %v499, 4294901760
    %v2719 = vsub.f32 %v499, %v2718
    %v2720 = vand.u32 %v2719, 4294901760
    %v2721 = vsub.f32 %v2719, %v2720
    %v2722 = vand.u32 %v2721, 4294901760
    %2723 = vmatpush.msra.mxu0 %v2722
    %v2724 = vand.u32 %v492, 4294901760
    %v2725 = vsub.f32 %v492, %v2724
    %v2726 = vand.u32 %v2725, 4294901760
    %v2727 = vsub.f32 %v2725, %v2726
    %v2728 = vand.u32 %v2727, 4294901760
    %2729 = vmatpush.msra.mxu0 %v2728
    %v2730 = vand.u32 %v485, 4294901760
    %v2731 = vsub.f32 %v485, %v2730
    %v2732 = vand.u32 %v2731, 4294901760
    %v2733 = vsub.f32 %v2731, %v2732
    %v2734 = vand.u32 %v2733, 4294901760
    %2735 = vmatpush.msra.mxu0 %v2734
    %v2736 = vand.u32 %v478, 4294901760
    %v2737 = vsub.f32 %v478, %v2736
    %v2738 = vand.u32 %v2737, 4294901760
    %v2739 = vsub.f32 %v2737, %v2738
    %v2740 = vand.u32 %v2739, 4294901760
    %2741 = vmatpush.msra.mxu0 %v2740
    %v2742 = vand.u32 %v471, 4294901760
    %v2743 = vsub.f32 %v471, %v2742
    %v2744 = vand.u32 %v2743, 4294901760
    %v2745 = vsub.f32 %v2743, %v2744
    %v2746 = vand.u32 %v2745, 4294901760
    %2747 = vmatpush.msra.mxu0 %v2746
    %v2748 = vand.u32 %v464, 4294901760
    %v2749 = vsub.f32 %v464, %v2748
    %v2750 = vand.u32 %v2749, 4294901760
    %v2751 = vsub.f32 %v2749, %v2750
    %v2752 = vand.u32 %v2751, 4294901760
    %2753 = vmatpush.msra.mxu0 %v2752
    %v2754 = vand.u32 %v457, 4294901760
    %v2755 = vsub.f32 %v457, %v2754
    %v2756 = vand.u32 %v2755, 4294901760
    %v2757 = vsub.f32 %v2755, %v2756
    %v2758 = vand.u32 %v2757, 4294901760
    %2759 = vmatpush.msra.mxu0 %v2758
    %v2760 = vand.u32 %v450, 4294901760
    %v2761 = vsub.f32 %v450, %v2760
    %v2762 = vand.u32 %v2761, 4294901760
    %v2763 = vsub.f32 %v2761, %v2762
    %v2764 = vand.u32 %v2763, 4294901760
    %2765 = vmatpush.msra.mxu0 %v2764
    %v2766 = vand.u32 %v443, 4294901760
    %v2767 = vsub.f32 %v443, %v2766
    %v2768 = vand.u32 %v2767, 4294901760
    %v2769 = vsub.f32 %v2767, %v2768
    %v2770 = vand.u32 %v2769, 4294901760
    %2771 = vmatpush.msra.mxu0 %v2770
    %v2772 = vand.u32 %v436, 4294901760
    %v2773 = vsub.f32 %v436, %v2772
    %v2774 = vand.u32 %v2773, 4294901760
    %v2775 = vsub.f32 %v2773, %v2774
    %v2776 = vand.u32 %v2775, 4294901760
    %2777 = vmatpush.msra.mxu0 %v2776
    %v2778 = vand.u32 %v429, 4294901760
    %v2779 = vsub.f32 %v429, %v2778
    %v2780 = vand.u32 %v2779, 4294901760
    %v2781 = vsub.f32 %v2779, %v2780
    %v2782 = vand.u32 %v2781, 4294901760
    %2783 = vmatpush.msra.mxu0 %v2782
    %v2784 = vand.u32 %v422, 4294901760
    %v2785 = vsub.f32 %v422, %v2784
    %v2786 = vand.u32 %v2785, 4294901760
    %v2787 = vsub.f32 %v2785, %v2786
    %v2788 = vand.u32 %v2787, 4294901760
    %2789 = vmatpush.msra.mxu0 %v2788
    %v2790 = vand.u32 %v415, 4294901760
    %v2791 = vsub.f32 %v415, %v2790
    %v2792 = vand.u32 %v2791, 4294901760
    %v2793 = vsub.f32 %v2791, %v2792
    %v2794 = vand.u32 %v2793, 4294901760
    %2795 = vmatpush.msra.mxu0 %v2794
    %v2796 = vand.u32 %v408, 4294901760
    %v2797 = vsub.f32 %v408, %v2796
    %v2798 = vand.u32 %v2797, 4294901760
    %v2799 = vsub.f32 %v2797, %v2798
    %v2800 = vand.u32 %v2799, 4294901760
    %2801 = vmatpush.msra.mxu0 %v2800
    %v2802 = vand.u32 %v401, 4294901760
    %v2803 = vsub.f32 %v401, %v2802
    %v2804 = vand.u32 %v2803, 4294901760
    %v2805 = vsub.f32 %v2803, %v2804
    %v2806 = vand.u32 %v2805, 4294901760
    %2807 = vmatpush.msra.mxu0 %v2806
    %v2808 = vand.u32 %v394, 4294901760
    %v2809 = vsub.f32 %v394, %v2808
    %v2810 = vand.u32 %v2809, 4294901760
    %v2811 = vsub.f32 %v2809, %v2810
    %v2812 = vand.u32 %v2811, 4294901760
    %2813 = vmatpush.msra.mxu0 %v2812
    %v2814 = vand.u32 %v389, 4294901760
    %2815 = vmatmul.f32.gmra.mxu0 %v2814
    %v2816 = vpop.f32.mrf.mxu0
    %v2817 = vadd.f32 %v2716, %v2816
    %2818 = vdwg.mxu0
    %v2819 = vand.u32 %v499, 4294901760
    %v2820 = vsub.f32 %v499, %v2819
    %2821 = vmatpush.msra.mxu0 %v2820
    %v2822 = vand.u32 %v492, 4294901760
    %v2823 = vsub.f32 %v492, %v2822
    %2824 = vmatpush.msra.mxu0 %v2823
    %v2825 = vand.u32 %v485, 4294901760
    %v2826 = vsub.f32 %v485, %v2825
    %2827 = vmatpush.msra.mxu0 %v2826
    %v2828 = vand.u32 %v478, 4294901760
    %v2829 = vsub.f32 %v478, %v2828
    %2830 = vmatpush.msra.mxu0 %v2829
    %v2831 = vand.u32 %v471, 4294901760
    %v2832 = vsub.f32 %v471, %v2831
    %2833 = vmatpush.msra.mxu0 %v2832
    %v2834 = vand.u32 %v464, 4294901760
    %v2835 = vsub.f32 %v464, %v2834
    %2836 = vmatpush.msra.mxu0 %v2835
    %v2837 = vand.u32 %v457, 4294901760
    %v2838 = vsub.f32 %v457, %v2837
    %2839 = vmatpush.msra.mxu0 %v2838
    %v2840 = vand.u32 %v450, 4294901760
    %v2841 = vsub.f32 %v450, %v2840
    %2842 = vmatpush.msra.mxu0 %v2841
    %v2843 = vand.u32 %v443, 4294901760
    %v2844 = vsub.f32 %v443, %v2843
    %2845 = vmatpush.msra.mxu0 %v2844
    %v2846 = vand.u32 %v436, 4294901760
    %v2847 = vsub.f32 %v436, %v2846
    %2848 = vmatpush.msra.mxu0 %v2847
    %v2849 = vand.u32 %v429, 4294901760
    %v2850 = vsub.f32 %v429, %v2849
    %2851 = vmatpush.msra.mxu0 %v2850
    %v2852 = vand.u32 %v422, 4294901760
    %v2853 = vsub.f32 %v422, %v2852
    %2854 = vmatpush.msra.mxu0 %v2853
    %v2855 = vand.u32 %v415, 4294901760
    %v2856 = vsub.f32 %v415, %v2855
    %2857 = vmatpush.msra.mxu0 %v2856
    %v2858 = vand.u32 %v408, 4294901760
    %v2859 = vsub.f32 %v408, %v2858
    %2860 = vmatpush.msra.mxu0 %v2859
    %v2861 = vand.u32 %v401, 4294901760
    %v2862 = vsub.f32 %v401, %v2861
    %2863 = vmatpush.msra.mxu0 %v2862
    %v2864 = vand.u32 %v394, 4294901760
    %v2865 = vsub.f32 %v394, %v2864
    %2866 = vmatpush.msra.mxu0 %v2865
    %v2867 = vand.u32 %v389, 4294901760
    %v2868 = vsub.f32 %v389, %v2867
    %2869 = vmatmul.f32.gmra.mxu0 %v2868
    %v2870 = vpop.f32.mrf.mxu0
    %v2871 = vadd.f32 %v2817, %v2870
    %2872 = vdwg.mxu0
    %v2873 = vand.u32 %v499, 4294901760
    %2874 = vmatpush.msra.mxu0 %v2873
    %v2875 = vand.u32 %v492, 4294901760
    %2876 = vmatpush.msra.mxu0 %v2875
    %v2877 = vand.u32 %v485, 4294901760
    %2878 = vmatpush.msra.mxu0 %v2877
    %v2879 = vand.u32 %v478, 4294901760
    %2880 = vmatpush.msra.mxu0 %v2879
    %v2881 = vand.u32 %v471, 4294901760
    %2882 = vmatpush.msra.mxu0 %v2881
    %v2883 = vand.u32 %v464, 4294901760
    %2884 = vmatpush.msra.mxu0 %v2883
    %v2885 = vand.u32 %v457, 4294901760
    %2886 = vmatpush.msra.mxu0 %v2885
    %v2887 = vand.u32 %v450, 4294901760
    %2888 = vmatpush.msra.mxu0 %v2887
    %v2889 = vand.u32 %v443, 4294901760
    %2890 = vmatpush.msra.mxu0 %v2889
    %v2891 = vand.u32 %v436, 4294901760
    %2892 = vmatpush.msra.mxu0 %v2891
    %v2893 = vand.u32 %v429, 4294901760
    %2894 = vmatpush.msra.mxu0 %v2893
    %v2895 = vand.u32 %v422, 4294901760
    %2896 = vmatpush.msra.mxu0 %v2895
    %v2897 = vand.u32 %v415, 4294901760
    %2898 = vmatpush.msra.mxu0 %v2897
    %v2899 = vand.u32 %v408, 4294901760
    %2900 = vmatpush.msra.mxu0 %v2899
    %v2901 = vand.u32 %v401, 4294901760
    %2902 = vmatpush.msra.mxu0 %v2901
    %v2903 = vand.u32 %v394, 4294901760
    %2904 = vmatpush.msra.mxu0 %v2903
    %v2905 = vand.u32 %v389, 4294901760
    %v2906 = vsub.f32 %v389, %v2905
    %v2907 = vand.u32 %v2906, 4294901760
    %2908 = vmatmul.f32.gmra.mxu0 %v2907
    %v2909 = vpop.f32.mrf.mxu0
    %v2910 = vadd.f32 %v2871, %v2909
    %2911 = vdwg.mxu0
    %v2912 = vand.u32 %v499, 4294901760
    %v2913 = vsub.f32 %v499, %v2912
    %v2914 = vand.u32 %v2913, 4294901760
    %2915 = vmatpush.msra.mxu0 %v2914
    %v2916 = vand.u32 %v492, 4294901760
    %v2917 = vsub.f32 %v492, %v2916
    %v2918 = vand.u32 %v2917, 4294901760
    %2919 = vmatpush.msra.mxu0 %v2918
    %v2920 = vand.u32 %v485, 4294901760
    %v2921 = vsub.f32 %v485, %v2920
    %v2922 = vand.u32 %v2921, 4294901760
    %2923 = vmatpush.msra.mxu0 %v2922
    %v2924 = vand.u32 %v478, 4294901760
    %v2925 = vsub.f32 %v478, %v2924
    %v2926 = vand.u32 %v2925, 4294901760
    %2927 = vmatpush.msra.mxu0 %v2926
    %v2928 = vand.u32 %v471, 4294901760
    %v2929 = vsub.f32 %v471, %v2928
    %v2930 = vand.u32 %v2929, 4294901760
    %2931 = vmatpush.msra.mxu0 %v2930
    %v2932 = vand.u32 %v464, 4294901760
    %v2933 = vsub.f32 %v464, %v2932
    %v2934 = vand.u32 %v2933, 4294901760
    %2935 = vmatpush.msra.mxu0 %v2934
    %v2936 = vand.u32 %v457, 4294901760
    %v2937 = vsub.f32 %v457, %v2936
    %v2938 = vand.u32 %v2937, 4294901760
    %2939 = vmatpush.msra.mxu0 %v2938
    %v2940 = vand.u32 %v450, 4294901760
    %v2941 = vsub.f32 %v450, %v2940
    %v2942 = vand.u32 %v2941, 4294901760
    %2943 = vmatpush.msra.mxu0 %v2942
    %v2944 = vand.u32 %v443, 4294901760
    %v2945 = vsub.f32 %v443, %v2944
    %v2946 = vand.u32 %v2945, 4294901760
    %2947 = vmatpush.msra.mxu0 %v2946
    %v2948 = vand.u32 %v436, 4294901760
    %v2949 = vsub.f32 %v436, %v2948
    %v2950 = vand.u32 %v2949, 4294901760
    %2951 = vmatpush.msra.mxu0 %v2950
    %v2952 = vand.u32 %v429, 4294901760
    %v2953 = vsub.f32 %v429, %v2952
    %v2954 = vand.u32 %v2953, 4294901760
    %2955 = vmatpush.msra.mxu0 %v2954
    %v2956 = vand.u32 %v422, 4294901760
    %v2957 = vsub.f32 %v422, %v2956
    %v2958 = vand.u32 %v2957, 4294901760
    %2959 = vmatpush.msra.mxu0 %v2958
    %v2960 = vand.u32 %v415, 4294901760
    %v2961 = vsub.f32 %v415, %v2960
    %v2962 = vand.u32 %v2961, 4294901760
    %2963 = vmatpush.msra.mxu0 %v2962
    %v2964 = vand.u32 %v408, 4294901760
    %v2965 = vsub.f32 %v408, %v2964
    %v2966 = vand.u32 %v2965, 4294901760
    %2967 = vmatpush.msra.mxu0 %v2966
    %v2968 = vand.u32 %v401, 4294901760
    %v2969 = vsub.f32 %v401, %v2968
    %v2970 = vand.u32 %v2969, 4294901760
    %2971 = vmatpush.msra.mxu0 %v2970
    %v2972 = vand.u32 %v394, 4294901760
    %v2973 = vsub.f32 %v394, %v2972
    %v2974 = vand.u32 %v2973, 4294901760
    %2975 = vmatpush.msra.mxu0 %v2974
    %v2976 = vand.u32 %v389, 4294901760
    %2977 = vmatmul.f32.gmra.mxu0 %v2976
    %v2978 = vpop.f32.mrf.mxu0
    %v2979 = vadd.f32 %v2910, %v2978
    %2980 = vdwg.mxu0
    %v2981 = vand.u32 %v499, 4294901760
    %2982 = vmatpush.msra.mxu0 %v2981
    %v2983 = vand.u32 %v492, 4294901760
    %2984 = vmatpush.msra.mxu0 %v2983
    %v2985 = vand.u32 %v485, 4294901760
    %2986 = vmatpush.msra.mxu0 %v2985
    %v2987 = vand.u32 %v478, 4294901760
    %2988 = vmatpush.msra.mxu0 %v2987
    %v2989 = vand.u32 %v471, 4294901760
    %2990 = vmatpush.msra.mxu0 %v2989
    %v2991 = vand.u32 %v464, 4294901760
    %2992 = vmatpush.msra.mxu0 %v2991
    %v2993 = vand.u32 %v457, 4294901760
    %2994 = vmatpush.msra.mxu0 %v2993
    %v2995 = vand.u32 %v450, 4294901760
    %2996 = vmatpush.msra.mxu0 %v2995
    %v2997 = vand.u32 %v443, 4294901760
    %2998 = vmatpush.msra.mxu0 %v2997
    %v2999 = vand.u32 %v436, 4294901760
    %3000 = vmatpush.msra.mxu0 %v2999
    %v3001 = vand.u32 %v429, 4294901760
    %3002 = vmatpush.msra.mxu0 %v3001
    %v3003 = vand.u32 %v422, 4294901760
    %3004 = vmatpush.msra.mxu0 %v3003
    %v3005 = vand.u32 %v415, 4294901760
    %3006 = vmatpush.msra.mxu0 %v3005
    %v3007 = vand.u32 %v408, 4294901760
    %3008 = vmatpush.msra.mxu0 %v3007
    %v3009 = vand.u32 %v401, 4294901760
    %3010 = vmatpush.msra.mxu0 %v3009
    %v3011 = vand.u32 %v394, 4294901760
    %3012 = vmatpush.msra.mxu0 %v3011
    %v3013 = vand.u32 %v389, 4294901760
    %3014 = vmatmul.f32.gmra.mxu0 %v3013
    %v3015 = vpop.f32.mrf.mxu0
    %v3016 = vadd.f32 %v2979, %v3015
    %3017 = vdwg.mxu0
    %v3018 = vand.u32 %v611, 4294901760
    %3019 = vmatpush.msra.mxu0 %v3018
    %v3020 = vand.u32 %v604, 4294901760
    %3021 = vmatpush.msra.mxu0 %v3020
    %v3022 = vand.u32 %v597, 4294901760
    %3023 = vmatpush.msra.mxu0 %v3022
    %v3024 = vand.u32 %v590, 4294901760
    %3025 = vmatpush.msra.mxu0 %v3024
    %v3026 = vand.u32 %v583, 4294901760
    %3027 = vmatpush.msra.mxu0 %v3026
    %v3028 = vand.u32 %v576, 4294901760
    %3029 = vmatpush.msra.mxu0 %v3028
    %v3030 = vand.u32 %v569, 4294901760
    %3031 = vmatpush.msra.mxu0 %v3030
    %v3032 = vand.u32 %v562, 4294901760
    %3033 = vmatpush.msra.mxu0 %v3032
    %v3034 = vand.u32 %v555, 4294901760
    %3035 = vmatpush.msra.mxu0 %v3034
    %v3036 = vand.u32 %v548, 4294901760
    %3037 = vmatpush.msra.mxu0 %v3036
    %v3038 = vand.u32 %v541, 4294901760
    %3039 = vmatpush.msra.mxu0 %v3038
    %v3040 = vand.u32 %v534, 4294901760
    %3041 = vmatpush.msra.mxu0 %v3040
    %v3042 = vand.u32 %v527, 4294901760
    %3043 = vmatpush.msra.mxu0 %v3042
    %v3044 = vand.u32 %v520, 4294901760
    %3045 = vmatpush.msra.mxu0 %v3044
    %v3046 = vand.u32 %v513, 4294901760
    %3047 = vmatpush.msra.mxu0 %v3046
    %v3048 = vand.u32 %v506, 4294901760
    %3049 = vmatpush.msra.mxu0 %v3048
    %v3050 = vand.u32 %v390, 4294901760
    %v3051 = vsub.f32 %v390, %v3050
    %v3052 = vand.u32 %v3051, 4294901760
    %v3053 = vsub.f32 %v3051, %v3052
    %v3054 = vand.u32 %v3053, 4294901760
    %3055 = vmatmul.f32.gmra.mxu0 %v3054
    %v3056 = vpop.f32.mrf.mxu0
    %v3057 = vadd.f32 %v3016, %v3056
    %3058 = vdwg.mxu0
    %v3059 = vand.u32 %v611, 4294901760
    %v3060 = vsub.f32 %v611, %v3059
    %v3061 = vand.u32 %v3060, 4294901760
    %v3062 = vsub.f32 %v3060, %v3061
    %v3063 = vand.u32 %v3062, 4294901760
    %3064 = vmatpush.msra.mxu0 %v3063
    %v3065 = vand.u32 %v604, 4294901760
    %v3066 = vsub.f32 %v604, %v3065
    %v3067 = vand.u32 %v3066, 4294901760
    %v3068 = vsub.f32 %v3066, %v3067
    %v3069 = vand.u32 %v3068, 4294901760
    %3070 = vmatpush.msra.mxu0 %v3069
    %v3071 = vand.u32 %v597, 4294901760
    %v3072 = vsub.f32 %v597, %v3071
    %v3073 = vand.u32 %v3072, 4294901760
    %v3074 = vsub.f32 %v3072, %v3073
    %v3075 = vand.u32 %v3074, 4294901760
    %3076 = vmatpush.msra.mxu0 %v3075
    %v3077 = vand.u32 %v590, 4294901760
    %v3078 = vsub.f32 %v590, %v3077
    %v3079 = vand.u32 %v3078, 4294901760
    %v3080 = vsub.f32 %v3078, %v3079
    %v3081 = vand.u32 %v3080, 4294901760
    %3082 = vmatpush.msra.mxu0 %v3081
    %v3083 = vand.u32 %v583, 4294901760
    %v3084 = vsub.f32 %v583, %v3083
    %v3085 = vand.u32 %v3084, 4294901760
    %v3086 = vsub.f32 %v3084, %v3085
    %v3087 = vand.u32 %v3086, 4294901760
    %3088 = vmatpush.msra.mxu0 %v3087
    %v3089 = vand.u32 %v576, 4294901760
    %v3090 = vsub.f32 %v576, %v3089
    %v3091 = vand.u32 %v3090, 4294901760
    %v3092 = vsub.f32 %v3090, %v3091
    %v3093 = vand.u32 %v3092, 4294901760
    %3094 = vmatpush.msra.mxu0 %v3093
    %v3095 = vand.u32 %v569, 4294901760
    %v3096 = vsub.f32 %v569, %v3095
    %v3097 = vand.u32 %v3096, 4294901760
    %v3098 = vsub.f32 %v3096, %v3097
    %v3099 = vand.u32 %v3098, 4294901760
    %3100 = vmatpush.msra.mxu0 %v3099
    %v3101 = vand.u32 %v562, 4294901760
    %v3102 = vsub.f32 %v562, %v3101
    %v3103 = vand.u32 %v3102, 4294901760
    %v3104 = vsub.f32 %v3102, %v3103
    %v3105 = vand.u32 %v3104, 4294901760
    %3106 = vmatpush.msra.mxu0 %v3105
    %v3107 = vand.u32 %v555, 4294901760
    %v3108 = vsub.f32 %v555, %v3107
    %v3109 = vand.u32 %v3108, 4294901760
    %v3110 = vsub.f32 %v3108, %v3109
    %v3111 = vand.u32 %v3110, 4294901760
    %3112 = vmatpush.msra.mxu0 %v3111
    %v3113 = vand.u32 %v548, 4294901760
    %v3114 = vsub.f32 %v548, %v3113
    %v3115 = vand.u32 %v3114, 4294901760
    %v3116 = vsub.f32 %v3114, %v3115
    %v3117 = vand.u32 %v3116, 4294901760
    %3118 = vmatpush.msra.mxu0 %v3117
    %v3119 = vand.u32 %v541, 4294901760
    %v3120 = vsub.f32 %v541, %v3119
    %v3121 = vand.u32 %v3120, 4294901760
    %v3122 = vsub.f32 %v3120, %v3121
    %v3123 = vand.u32 %v3122, 4294901760
    %3124 = vmatpush.msra.mxu0 %v3123
    %v3125 = vand.u32 %v534, 4294901760
    %v3126 = vsub.f32 %v534, %v3125
    %v3127 = vand.u32 %v3126, 4294901760
    %v3128 = vsub.f32 %v3126, %v3127
    %v3129 = vand.u32 %v3128, 4294901760
    %3130 = vmatpush.msra.mxu0 %v3129
    %v3131 = vand.u32 %v527, 4294901760
    %v3132 = vsub.f32 %v527, %v3131
    %v3133 = vand.u32 %v3132, 4294901760
    %v3134 = vsub.f32 %v3132, %v3133
    %v3135 = vand.u32 %v3134, 4294901760
    %3136 = vmatpush.msra.mxu0 %v3135
    %v3137 = vand.u32 %v520, 4294901760
    %v3138 = vsub.f32 %v520, %v3137
    %v3139 = vand.u32 %v3138, 4294901760
    %v3140 = vsub.f32 %v3138, %v3139
    %v3141 = vand.u32 %v3140, 4294901760
    %3142 = vmatpush.msra.mxu0 %v3141
    %v3143 = vand.u32 %v513, 4294901760
    %v3144 = vsub.f32 %v513, %v3143
    %v3145 = vand.u32 %v3144, 4294901760
    %v3146 = vsub.f32 %v3144, %v3145
    %v3147 = vand.u32 %v3146, 4294901760
    %3148 = vmatpush.msra.mxu0 %v3147
    %v3149 = vand.u32 %v506, 4294901760
    %v3150 = vsub.f32 %v506, %v3149
    %v3151 = vand.u32 %v3150, 4294901760
    %v3152 = vsub.f32 %v3150, %v3151
    %v3153 = vand.u32 %v3152, 4294901760
    %3154 = vmatpush.msra.mxu0 %v3153
    %v3155 = vand.u32 %v390, 4294901760
    %3156 = vmatmul.f32.gmra.mxu0 %v3155
    %v3157 = vpop.f32.mrf.mxu0
    %v3158 = vadd.f32 %v3057, %v3157
    %3159 = vdwg.mxu0
    %v3160 = vand.u32 %v611, 4294901760
    %v3161 = vsub.f32 %v611, %v3160
    %3162 = vmatpush.msra.mxu0 %v3161
    %v3163 = vand.u32 %v604, 4294901760
    %v3164 = vsub.f32 %v604, %v3163
    %3165 = vmatpush.msra.mxu0 %v3164
    %v3166 = vand.u32 %v597, 4294901760
    %v3167 = vsub.f32 %v597, %v3166
    %3168 = vmatpush.msra.mxu0 %v3167
    %v3169 = vand.u32 %v590, 4294901760
    %v3170 = vsub.f32 %v590, %v3169
    %3171 = vmatpush.msra.mxu0 %v3170
    %v3172 = vand.u32 %v583, 4294901760
    %v3173 = vsub.f32 %v583, %v3172
    %3174 = vmatpush.msra.mxu0 %v3173
    %v3175 = vand.u32 %v576, 4294901760
    %v3176 = vsub.f32 %v576, %v3175
    %3177 = vmatpush.msra.mxu0 %v3176
    %v3178 = vand.u32 %v569, 4294901760
    %v3179 = vsub.f32 %v569, %v3178
    %3180 = vmatpush.msra.mxu0 %v3179
    %v3181 = vand.u32 %v562, 4294901760
    %v3182 = vsub.f32 %v562, %v3181
    %3183 = vmatpush.msra.mxu0 %v3182
    %v3184 = vand.u32 %v555, 4294901760
    %v3185 = vsub.f32 %v555, %v3184
    %3186 = vmatpush.msra.mxu0 %v3185
    %v3187 = vand.u32 %v548, 4294901760
    %v3188 = vsub.f32 %v548, %v3187
    %3189 = vmatpush.msra.mxu0 %v3188
    %v3190 = vand.u32 %v541, 4294901760
    %v3191 = vsub.f32 %v541, %v3190
    %3192 = vmatpush.msra.mxu0 %v3191
    %v3193 = vand.u32 %v534, 4294901760
    %v3194 = vsub.f32 %v534, %v3193
    %3195 = vmatpush.msra.mxu0 %v3194
    %v3196 = vand.u32 %v527, 4294901760
    %v3197 = vsub.f32 %v527, %v3196
    %3198 = vmatpush.msra.mxu0 %v3197
    %v3199 = vand.u32 %v520, 4294901760
    %v3200 = vsub.f32 %v520, %v3199
    %3201 = vmatpush.msra.mxu0 %v3200
    %v3202 = vand.u32 %v513, 4294901760
    %v3203 = vsub.f32 %v513, %v3202
    %3204 = vmatpush.msra.mxu0 %v3203
    %v3205 = vand.u32 %v506, 4294901760
    %v3206 = vsub.f32 %v506, %v3205
    %3207 = vmatpush.msra.mxu0 %v3206
    %v3208 = vand.u32 %v390, 4294901760
    %v3209 = vsub.f32 %v390, %v3208
    %3210 = vmatmul.f32.gmra.mxu0 %v3209
    %v3211 = vpop.f32.mrf.mxu0
    %v3212 = vadd.f32 %v3158, %v3211
    %3213 = vdwg.mxu0
    %v3214 = vand.u32 %v611, 4294901760
    %3215 = vmatpush.msra.mxu0 %v3214
    %v3216 = vand.u32 %v604, 4294901760
    %3217 = vmatpush.msra.mxu0 %v3216
    %v3218 = vand.u32 %v597, 4294901760
    %3219 = vmatpush.msra.mxu0 %v3218
    %v3220 = vand.u32 %v590, 4294901760
    %3221 = vmatpush.msra.mxu0 %v3220
    %v3222 = vand.u32 %v583, 4294901760
    %3223 = vmatpush.msra.mxu0 %v3222
    %v3224 = vand.u32 %v576, 4294901760
    %3225 = vmatpush.msra.mxu0 %v3224
    %v3226 = vand.u32 %v569, 4294901760
    %3227 = vmatpush.msra.mxu0 %v3226
    %v3228 = vand.u32 %v562, 4294901760
    %3229 = vmatpush.msra.mxu0 %v3228
    %v3230 = vand.u32 %v555, 4294901760
    %3231 = vmatpush.msra.mxu0 %v3230
    %v3232 = vand.u32 %v548, 4294901760
    %3233 = vmatpush.msra.mxu0 %v3232
    %v3234 = vand.u32 %v541, 4294901760
    %3235 = vmatpush.msra.mxu0 %v3234
    %v3236 = vand.u32 %v534, 4294901760
    %3237 = vmatpush.msra.mxu0 %v3236
    %v3238 = vand.u32 %v527, 4294901760
    %3239 = vmatpush.msra.mxu0 %v3238
    %v3240 = vand.u32 %v520, 4294901760
    %3241 = vmatpush.msra.mxu0 %v3240
    %v3242 = vand.u32 %v513, 4294901760
    %3243 = vmatpush.msra.mxu0 %v3242
    %v3244 = vand.u32 %v506, 4294901760
    %3245 = vmatpush.msra.mxu0 %v3244
    %v3246 = vand.u32 %v390, 4294901760
    %v3247 = vsub.f32 %v390, %v3246
    %v3248 = vand.u32 %v3247, 4294901760
    %3249 = vmatmul.f32.gmra.mxu0 %v3248
    %v3250 = vpop.f32.mrf.mxu0
    %v3251 = vadd.f32 %v3212, %v3250
    %3252 = vdwg.mxu0
    %v3253 = vand.u32 %v611, 4294901760
    %v3254 = vsub.f32 %v611, %v3253
    %v3255 = vand.u32 %v3254, 4294901760
    %3256 = vmatpush.msra.mxu0 %v3255
    %v3257 = vand.u32 %v604, 4294901760
    %v3258 = vsub.f32 %v604, %v3257
    %v3259 = vand.u32 %v3258, 4294901760
    %3260 = vmatpush.msra.mxu0 %v3259
    %v3261 = vand.u32 %v597, 4294901760
    %v3262 = vsub.f32 %v597, %v3261
    %v3263 = vand.u32 %v3262, 4294901760
    %3264 = vmatpush.msra.mxu0 %v3263
    %v3265 = vand.u32 %v590, 4294901760
    %v3266 = vsub.f32 %v590, %v3265
    %v3267 = vand.u32 %v3266, 4294901760
    %3268 = vmatpush.msra.mxu0 %v3267
    %v3269 = vand.u32 %v583, 4294901760
    %v3270 = vsub.f32 %v583, %v3269
    %v3271 = vand.u32 %v3270, 4294901760
    %3272 = vmatpush.msra.mxu0 %v3271
    %v3273 = vand.u32 %v576, 4294901760
    %v3274 = vsub.f32 %v576, %v3273
    %v3275 = vand.u32 %v3274, 4294901760
    %3276 = vmatpush.msra.mxu0 %v3275
    %v3277 = vand.u32 %v569, 4294901760
    %v3278 = vsub.f32 %v569, %v3277
    %v3279 = vand.u32 %v3278, 4294901760
    %3280 = vmatpush.msra.mxu0 %v3279
    %v3281 = vand.u32 %v562, 4294901760
    %v3282 = vsub.f32 %v562, %v3281
    %v3283 = vand.u32 %v3282, 4294901760
    %3284 = vmatpush.msra.mxu0 %v3283
    %v3285 = vand.u32 %v555, 4294901760
    %v3286 = vsub.f32 %v555, %v3285
    %v3287 = vand.u32 %v3286, 4294901760
    %3288 = vmatpush.msra.mxu0 %v3287
    %v3289 = vand.u32 %v548, 4294901760
    %v3290 = vsub.f32 %v548, %v3289
    %v3291 = vand.u32 %v3290, 4294901760
    %3292 = vmatpush.msra.mxu0 %v3291
    %v3293 = vand.u32 %v541, 4294901760
    %v3294 = vsub.f32 %v541, %v3293
    %v3295 = vand.u32 %v3294, 4294901760
    %3296 = vmatpush.msra.mxu0 %v3295
    %v3297 = vand.u32 %v534, 4294901760
    %v3298 = vsub.f32 %v534, %v3297
    %v3299 = vand.u32 %v3298, 4294901760
    %3300 = vmatpush.msra.mxu0 %v3299
    %v3301 = vand.u32 %v527, 4294901760
    %v3302 = vsub.f32 %v527, %v3301
    %v3303 = vand.u32 %v3302, 4294901760
    %3304 = vmatpush.msra.mxu0 %v3303
    %v3305 = vand.u32 %v520, 4294901760
    %v3306 = vsub.f32 %v520, %v3305
    %v3307 = vand.u32 %v3306, 4294901760
    %3308 = vmatpush.msra.mxu0 %v3307
    %v3309 = vand.u32 %v513, 4294901760
    %v3310 = vsub.f32 %v513, %v3309
    %v3311 = vand.u32 %v3310, 4294901760
    %3312 = vmatpush.msra.mxu0 %v3311
    %v3313 = vand.u32 %v506, 4294901760
    %v3314 = vsub.f32 %v506, %v3313
    %v3315 = vand.u32 %v3314, 4294901760
    %3316 = vmatpush.msra.mxu0 %v3315
    %v3317 = vand.u32 %v390, 4294901760
    %3318 = vmatmul.f32.gmra.mxu0 %v3317
    %v3319 = vpop.f32.mrf.mxu0
    %v3320 = vadd.f32 %v3251, %v3319
    %3321 = vdwg.mxu0
    %v3322 = vand.u32 %v611, 4294901760
    %3323 = vmatpush.msra.mxu0 %v3322
    %v3324 = vand.u32 %v604, 4294901760
    %3325 = vmatpush.msra.mxu0 %v3324
    %v3326 = vand.u32 %v597, 4294901760
    %3327 = vmatpush.msra.mxu0 %v3326
    %v3328 = vand.u32 %v590, 4294901760
    %3329 = vmatpush.msra.mxu0 %v3328
    %v3330 = vand.u32 %v583, 4294901760
    %3331 = vmatpush.msra.mxu0 %v3330
    %v3332 = vand.u32 %v576, 4294901760
    %3333 = vmatpush.msra.mxu0 %v3332
    %v3334 = vand.u32 %v569, 4294901760
    %3335 = vmatpush.msra.mxu0 %v3334
    %v3336 = vand.u32 %v562, 4294901760
    %3337 = vmatpush.msra.mxu0 %v3336
    %v3338 = vand.u32 %v555, 4294901760
    %3339 = vmatpush.msra.mxu0 %v3338
    %v3340 = vand.u32 %v548, 4294901760
    %3341 = vmatpush.msra.mxu0 %v3340
    %v3342 = vand.u32 %v541, 4294901760
    %3343 = vmatpush.msra.mxu0 %v3342
    %v3344 = vand.u32 %v534, 4294901760
    %3345 = vmatpush.msra.mxu0 %v3344
    %v3346 = vand.u32 %v527, 4294901760
    %3347 = vmatpush.msra.mxu0 %v3346
    %v3348 = vand.u32 %v520, 4294901760
    %3349 = vmatpush.msra.mxu0 %v3348
    %v3350 = vand.u32 %v513, 4294901760
    %3351 = vmatpush.msra.mxu0 %v3350
    %v3352 = vand.u32 %v506, 4294901760
    %3353 = vmatpush.msra.mxu0 %v3352
    %v3354 = vand.u32 %v390, 4294901760
    %3355 = vmatmul.f32.gmra.mxu0 %v3354
    %v3356 = vpop.f32.mrf.mxu0
    %v3357 = vadd.f32 %v3320, %v3356
    %3358 = vdwg.mxu0
    %v3359 = vand.u32 %v500, 4294901760
    %3360 = vmatpush.msra.mxu0 %v3359
    %v3361 = vand.u32 %v493, 4294901760
    %3362 = vmatpush.msra.mxu0 %v3361
    %v3363 = vand.u32 %v486, 4294901760
    %3364 = vmatpush.msra.mxu0 %v3363
    %v3365 = vand.u32 %v479, 4294901760
    %3366 = vmatpush.msra.mxu0 %v3365
    %v3367 = vand.u32 %v472, 4294901760
    %3368 = vmatpush.msra.mxu0 %v3367
    %v3369 = vand.u32 %v465, 4294901760
    %3370 = vmatpush.msra.mxu0 %v3369
    %v3371 = vand.u32 %v458, 4294901760
    %3372 = vmatpush.msra.mxu0 %v3371
    %v3373 = vand.u32 %v451, 4294901760
    %3374 = vmatpush.msra.mxu0 %v3373
    %v3375 = vand.u32 %v444, 4294901760
    %3376 = vmatpush.msra.mxu0 %v3375
    %v3377 = vand.u32 %v437, 4294901760
    %3378 = vmatpush.msra.mxu0 %v3377
    %v3379 = vand.u32 %v430, 4294901760
    %3380 = vmatpush.msra.mxu0 %v3379
    %v3381 = vand.u32 %v423, 4294901760
    %3382 = vmatpush.msra.mxu0 %v3381
    %v3383 = vand.u32 %v416, 4294901760
    %3384 = vmatpush.msra.mxu0 %v3383
    %v3385 = vand.u32 %v409, 4294901760
    %3386 = vmatpush.msra.mxu0 %v3385
    %v3387 = vand.u32 %v402, 4294901760
    %3388 = vmatpush.msra.mxu0 %v3387
    %v3389 = vand.u32 %v395, 4294901760
    %3390 = vmatpush.msra.mxu0 %v3389
    %v3391 = vand.u32 %v389, 4294901760
    %v3392 = vsub.f32 %v389, %v3391
    %v3393 = vand.u32 %v3392, 4294901760
    %v3394 = vsub.f32 %v3392, %v3393
    %v3395 = vand.u32 %v3394, 4294901760
    %3396 = vmatmul.f32.gmra.mxu0 %v3395
    %v3397 = vpop.f32.mrf.mxu0
    %v3398 = vadd.f32 %v621, %v3397
    %3399 = vdwg.mxu0
    %v3400 = vand.u32 %v500, 4294901760
    %v3401 = vsub.f32 %v500, %v3400
    %v3402 = vand.u32 %v3401, 4294901760
    %v3403 = vsub.f32 %v3401, %v3402
    %v3404 = vand.u32 %v3403, 4294901760
    %3405 = vmatpush.msra.mxu0 %v3404
    %v3406 = vand.u32 %v493, 4294901760
    %v3407 = vsub.f32 %v493, %v3406
    %v3408 = vand.u32 %v3407, 4294901760
    %v3409 = vsub.f32 %v3407, %v3408
    %v3410 = vand.u32 %v3409, 4294901760
    %3411 = vmatpush.msra.mxu0 %v3410
    %v3412 = vand.u32 %v486, 4294901760
    %v3413 = vsub.f32 %v486, %v3412
    %v3414 = vand.u32 %v3413, 4294901760
    %v3415 = vsub.f32 %v3413, %v3414
    %v3416 = vand.u32 %v3415, 4294901760
    %3417 = vmatpush.msra.mxu0 %v3416
    %v3418 = vand.u32 %v479, 4294901760
    %v3419 = vsub.f32 %v479, %v3418
    %v3420 = vand.u32 %v3419, 4294901760
    %v3421 = vsub.f32 %v3419, %v3420
    %v3422 = vand.u32 %v3421, 4294901760
    %3423 = vmatpush.msra.mxu0 %v3422
    %v3424 = vand.u32 %v472, 4294901760
    %v3425 = vsub.f32 %v472, %v3424
    %v3426 = vand.u32 %v3425, 4294901760
    %v3427 = vsub.f32 %v3425, %v3426
    %v3428 = vand.u32 %v3427, 4294901760
    %3429 = vmatpush.msra.mxu0 %v3428
    %v3430 = vand.u32 %v465, 4294901760
    %v3431 = vsub.f32 %v465, %v3430
    %v3432 = vand.u32 %v3431, 4294901760
    %v3433 = vsub.f32 %v3431, %v3432
    %v3434 = vand.u32 %v3433, 4294901760
    %3435 = vmatpush.msra.mxu0 %v3434
    %v3436 = vand.u32 %v458, 4294901760
    %v3437 = vsub.f32 %v458, %v3436
    %v3438 = vand.u32 %v3437, 4294901760
    %v3439 = vsub.f32 %v3437, %v3438
    %v3440 = vand.u32 %v3439, 4294901760
    %3441 = vmatpush.msra.mxu0 %v3440
    %v3442 = vand.u32 %v451, 4294901760
    %v3443 = vsub.f32 %v451, %v3442
    %v3444 = vand.u32 %v3443, 4294901760
    %v3445 = vsub.f32 %v3443, %v3444
    %v3446 = vand.u32 %v3445, 4294901760
    %3447 = vmatpush.msra.mxu0 %v3446
    %v3448 = vand.u32 %v444, 4294901760
    %v3449 = vsub.f32 %v444, %v3448
    %v3450 = vand.u32 %v3449, 4294901760
    %v3451 = vsub.f32 %v3449, %v3450
    %v3452 = vand.u32 %v3451, 4294901760
    %3453 = vmatpush.msra.mxu0 %v3452
    %v3454 = vand.u32 %v437, 4294901760
    %v3455 = vsub.f32 %v437, %v3454
    %v3456 = vand.u32 %v3455, 4294901760
    %v3457 = vsub.f32 %v3455, %v3456
    %v3458 = vand.u32 %v3457, 4294901760
    %3459 = vmatpush.msra.mxu0 %v3458
    %v3460 = vand.u32 %v430, 4294901760
    %v3461 = vsub.f32 %v430, %v3460
    %v3462 = vand.u32 %v3461, 4294901760
    %v3463 = vsub.f32 %v3461, %v3462
    %v3464 = vand.u32 %v3463, 4294901760
    %3465 = vmatpush.msra.mxu0 %v3464
    %v3466 = vand.u32 %v423, 4294901760
    %v3467 = vsub.f32 %v423, %v3466
    %v3468 = vand.u32 %v3467, 4294901760
    %v3469 = vsub.f32 %v3467, %v3468
    %v3470 = vand.u32 %v3469, 4294901760
    %3471 = vmatpush.msra.mxu0 %v3470
    %v3472 = vand.u32 %v416, 4294901760
    %v3473 = vsub.f32 %v416, %v3472
    %v3474 = vand.u32 %v3473, 4294901760
    %v3475 = vsub.f32 %v3473, %v3474
    %v3476 = vand.u32 %v3475, 4294901760
    %3477 = vmatpush.msra.mxu0 %v3476
    %v3478 = vand.u32 %v409, 4294901760
    %v3479 = vsub.f32 %v409, %v3478
    %v3480 = vand.u32 %v3479, 4294901760
    %v3481 = vsub.f32 %v3479, %v3480
    %v3482 = vand.u32 %v3481, 4294901760
    %3483 = vmatpush.msra.mxu0 %v3482
    %v3484 = vand.u32 %v402, 4294901760
    %v3485 = vsub.f32 %v402, %v3484
    %v3486 = vand.u32 %v3485, 4294901760
    %v3487 = vsub.f32 %v3485, %v3486
    %v3488 = vand.u32 %v3487, 4294901760
    %3489 = vmatpush.msra.mxu0 %v3488
    %v3490 = vand.u32 %v395, 4294901760
    %v3491 = vsub.f32 %v395, %v3490
    %v3492 = vand.u32 %v3491, 4294901760
    %v3493 = vsub.f32 %v3491, %v3492
    %v3494 = vand.u32 %v3493, 4294901760
    %3495 = vmatpush.msra.mxu0 %v3494
    %v3496 = vand.u32 %v389, 4294901760
    %3497 = vmatmul.f32.gmra.mxu0 %v3496
    %v3498 = vpop.f32.mrf.mxu0
    %v3499 = vadd.f32 %v3398, %v3498
    %3500 = vdwg.mxu0
    %v3501 = vand.u32 %v500, 4294901760
    %v3502 = vsub.f32 %v500, %v3501
    %3503 = vmatpush.msra.mxu0 %v3502
    %v3504 = vand.u32 %v493, 4294901760
    %v3505 = vsub.f32 %v493, %v3504
    %3506 = vmatpush.msra.mxu0 %v3505
    %v3507 = vand.u32 %v486, 4294901760
    %v3508 = vsub.f32 %v486, %v3507
    %3509 = vmatpush.msra.mxu0 %v3508
    %v3510 = vand.u32 %v479, 4294901760
    %v3511 = vsub.f32 %v479, %v3510
    %3512 = vmatpush.msra.mxu0 %v3511
    %v3513 = vand.u32 %v472, 4294901760
    %v3514 = vsub.f32 %v472, %v3513
    %3515 = vmatpush.msra.mxu0 %v3514
    %v3516 = vand.u32 %v465, 4294901760
    %v3517 = vsub.f32 %v465, %v3516
    %3518 = vmatpush.msra.mxu0 %v3517
    %v3519 = vand.u32 %v458, 4294901760
    %v3520 = vsub.f32 %v458, %v3519
    %3521 = vmatpush.msra.mxu0 %v3520
    %v3522 = vand.u32 %v451, 4294901760
    %v3523 = vsub.f32 %v451, %v3522
    %3524 = vmatpush.msra.mxu0 %v3523
    %v3525 = vand.u32 %v444, 4294901760
    %v3526 = vsub.f32 %v444, %v3525
    %3527 = vmatpush.msra.mxu0 %v3526
    %v3528 = vand.u32 %v437, 4294901760
    %v3529 = vsub.f32 %v437, %v3528
    %3530 = vmatpush.msra.mxu0 %v3529
    %v3531 = vand.u32 %v430, 4294901760
    %v3532 = vsub.f32 %v430, %v3531
    %3533 = vmatpush.msra.mxu0 %v3532
    %v3534 = vand.u32 %v423, 4294901760
    %v3535 = vsub.f32 %v423, %v3534
    %3536 = vmatpush.msra.mxu0 %v3535
    %v3537 = vand.u32 %v416, 4294901760
    %v3538 = vsub.f32 %v416, %v3537
    %3539 = vmatpush.msra.mxu0 %v3538
    %v3540 = vand.u32 %v409, 4294901760
    %v3541 = vsub.f32 %v409, %v3540
    %3542 = vmatpush.msra.mxu0 %v3541
    %v3543 = vand.u32 %v402, 4294901760
    %v3544 = vsub.f32 %v402, %v3543
    %3545 = vmatpush.msra.mxu0 %v3544
    %v3546 = vand.u32 %v395, 4294901760
    %v3547 = vsub.f32 %v395, %v3546
    %3548 = vmatpush.msra.mxu0 %v3547
    %v3549 = vand.u32 %v389, 4294901760
    %v3550 = vsub.f32 %v389, %v3549
    %3551 = vmatmul.f32.gmra.mxu0 %v3550
    %v3552 = vpop.f32.mrf.mxu0
    %v3553 = vadd.f32 %v3499, %v3552
    %3554 = vdwg.mxu0
    %v3555 = vand.u32 %v500, 4294901760
    %3556 = vmatpush.msra.mxu0 %v3555
    %v3557 = vand.u32 %v493, 4294901760
    %3558 = vmatpush.msra.mxu0 %v3557
    %v3559 = vand.u32 %v486, 4294901760
    %3560 = vmatpush.msra.mxu0 %v3559
    %v3561 = vand.u32 %v479, 4294901760
    %3562 = vmatpush.msra.mxu0 %v3561
    %v3563 = vand.u32 %v472, 4294901760
    %3564 = vmatpush.msra.mxu0 %v3563
    %v3565 = vand.u32 %v465, 4294901760
    %3566 = vmatpush.msra.mxu0 %v3565
    %v3567 = vand.u32 %v458, 4294901760
    %3568 = vmatpush.msra.mxu0 %v3567
    %v3569 = vand.u32 %v451, 4294901760
    %3570 = vmatpush.msra.mxu0 %v3569
    %v3571 = vand.u32 %v444, 4294901760
    %3572 = vmatpush.msra.mxu0 %v3571
    %v3573 = vand.u32 %v437, 4294901760
    %3574 = vmatpush.msra.mxu0 %v3573
    %v3575 = vand.u32 %v430, 4294901760
    %3576 = vmatpush.msra.mxu0 %v3575
    %v3577 = vand.u32 %v423, 4294901760
    %3578 = vmatpush.msra.mxu0 %v3577
    %v3579 = vand.u32 %v416, 4294901760
    %3580 = vmatpush.msra.mxu0 %v3579
    %v3581 = vand.u32 %v409, 4294901760
    %3582 = vmatpush.msra.mxu0 %v3581
    %v3583 = vand.u32 %v402, 4294901760
    %3584 = vmatpush.msra.mxu0 %v3583
    %v3585 = vand.u32 %v395, 4294901760
    %3586 = vmatpush.msra.mxu0 %v3585
    %v3587 = vand.u32 %v389, 4294901760
    %v3588 = vsub.f32 %v389, %v3587
    %v3589 = vand.u32 %v3588, 4294901760
    %3590 = vmatmul.f32.gmra.mxu0 %v3589
    %v3591 = vpop.f32.mrf.mxu0
    %v3592 = vadd.f32 %v3553, %v3591
    %3593 = vdwg.mxu0
    %v3594 = vand.u32 %v500, 4294901760
    %v3595 = vsub.f32 %v500, %v3594
    %v3596 = vand.u32 %v3595, 4294901760
    %3597 = vmatpush.msra.mxu0 %v3596
    %v3598 = vand.u32 %v493, 4294901760
    %v3599 = vsub.f32 %v493, %v3598
    %v3600 = vand.u32 %v3599, 4294901760
    %3601 = vmatpush.msra.mxu0 %v3600
    %v3602 = vand.u32 %v486, 4294901760
    %v3603 = vsub.f32 %v486, %v3602
    %v3604 = vand.u32 %v3603, 4294901760
    %3605 = vmatpush.msra.mxu0 %v3604
    %v3606 = vand.u32 %v479, 4294901760
    %v3607 = vsub.f32 %v479, %v3606
    %v3608 = vand.u32 %v3607, 4294901760
    %3609 = vmatpush.msra.mxu0 %v3608
    %v3610 = vand.u32 %v472, 4294901760
    %v3611 = vsub.f32 %v472, %v3610
    %v3612 = vand.u32 %v3611, 4294901760
    %3613 = vmatpush.msra.mxu0 %v3612
    %v3614 = vand.u32 %v465, 4294901760
    %v3615 = vsub.f32 %v465, %v3614
    %v3616 = vand.u32 %v3615, 4294901760
    %3617 = vmatpush.msra.mxu0 %v3616
    %v3618 = vand.u32 %v458, 4294901760
    %v3619 = vsub.f32 %v458, %v3618
    %v3620 = vand.u32 %v3619, 4294901760
    %3621 = vmatpush.msra.mxu0 %v3620
    %v3622 = vand.u32 %v451, 4294901760
    %v3623 = vsub.f32 %v451, %v3622
    %v3624 = vand.u32 %v3623, 4294901760
    %3625 = vmatpush.msra.mxu0 %v3624
    %v3626 = vand.u32 %v444, 4294901760
    %v3627 = vsub.f32 %v444, %v3626
    %v3628 = vand.u32 %v3627, 4294901760
    %3629 = vmatpush.msra.mxu0 %v3628
    %v3630 = vand.u32 %v437, 4294901760
    %v3631 = vsub.f32 %v437, %v3630
    %v3632 = vand.u32 %v3631, 4294901760
    %3633 = vmatpush.msra.mxu0 %v3632
    %v3634 = vand.u32 %v430, 4294901760
    %v3635 = vsub.f32 %v430, %v3634
    %v3636 = vand.u32 %v3635, 4294901760
    %3637 = vmatpush.msra.mxu0 %v3636
    %v3638 = vand.u32 %v423, 4294901760
    %v3639 = vsub.f32 %v423, %v3638
    %v3640 = vand.u32 %v3639, 4294901760
    %3641 = vmatpush.msra.mxu0 %v3640
    %v3642 = vand.u32 %v416, 4294901760
    %v3643 = vsub.f32 %v416, %v3642
    %v3644 = vand.u32 %v3643, 4294901760
    %3645 = vmatpush.msra.mxu0 %v3644
    %v3646 = vand.u32 %v409, 4294901760
    %v3647 = vsub.f32 %v409, %v3646
    %v3648 = vand.u32 %v3647, 4294901760
    %3649 = vmatpush.msra.mxu0 %v3648
    %v3650 = vand.u32 %v402, 4294901760
    %v3651 = vsub.f32 %v402, %v3650
    %v3652 = vand.u32 %v3651, 4294901760
    %3653 = vmatpush.msra.mxu0 %v3652
    %v3654 = vand.u32 %v395, 4294901760
    %v3655 = vsub.f32 %v395, %v3654
    %v3656 = vand.u32 %v3655, 4294901760
    %3657 = vmatpush.msra.mxu0 %v3656
    %v3658 = vand.u32 %v389, 4294901760
    %3659 = vmatmul.f32.gmra.mxu0 %v3658
    %v3660 = vpop.f32.mrf.mxu0
    %v3661 = vadd.f32 %v3592, %v3660
    %3662 = vdwg.mxu0
    %v3663 = vand.u32 %v500, 4294901760
    %3664 = vmatpush.msra.mxu0 %v3663
    %v3665 = vand.u32 %v493, 4294901760
    %3666 = vmatpush.msra.mxu0 %v3665
    %v3667 = vand.u32 %v486, 4294901760
    %3668 = vmatpush.msra.mxu0 %v3667
    %v3669 = vand.u32 %v479, 4294901760
    %3670 = vmatpush.msra.mxu0 %v3669
    %v3671 = vand.u32 %v472, 4294901760
    %3672 = vmatpush.msra.mxu0 %v3671
    %v3673 = vand.u32 %v465, 4294901760
    %3674 = vmatpush.msra.mxu0 %v3673
    %v3675 = vand.u32 %v458, 4294901760
    %3676 = vmatpush.msra.mxu0 %v3675
    %v3677 = vand.u32 %v451, 4294901760
    %3678 = vmatpush.msra.mxu0 %v3677
    %v3679 = vand.u32 %v444, 4294901760
    %3680 = vmatpush.msra.mxu0 %v3679
    %v3681 = vand.u32 %v437, 4294901760
    %3682 = vmatpush.msra.mxu0 %v3681
    %v3683 = vand.u32 %v430, 4294901760
    %3684 = vmatpush.msra.mxu0 %v3683
    %v3685 = vand.u32 %v423, 4294901760
    %3686 = vmatpush.msra.mxu0 %v3685
    %v3687 = vand.u32 %v416, 4294901760
    %3688 = vmatpush.msra.mxu0 %v3687
    %v3689 = vand.u32 %v409, 4294901760
    %3690 = vmatpush.msra.mxu0 %v3689
    %v3691 = vand.u32 %v402, 4294901760
    %3692 = vmatpush.msra.mxu0 %v3691
    %v3693 = vand.u32 %v395, 4294901760
    %3694 = vmatpush.msra.mxu0 %v3693
    %v3695 = vand.u32 %v389, 4294901760
    %3696 = vmatmul.f32.gmra.mxu0 %v3695
    %v3697 = vpop.f32.mrf.mxu0
    %v3698 = vadd.f32 %v3661, %v3697
    %3699 = vdwg.mxu0
    %v3700 = vand.u32 %v612, 4294901760
    %3701 = vmatpush.msra.mxu0 %v3700
    %v3702 = vand.u32 %v605, 4294901760
    %3703 = vmatpush.msra.mxu0 %v3702
    %v3704 = vand.u32 %v598, 4294901760
    %3705 = vmatpush.msra.mxu0 %v3704
    %v3706 = vand.u32 %v591, 4294901760
    %3707 = vmatpush.msra.mxu0 %v3706
    %v3708 = vand.u32 %v584, 4294901760
    %3709 = vmatpush.msra.mxu0 %v3708
    %v3710 = vand.u32 %v577, 4294901760
    %3711 = vmatpush.msra.mxu0 %v3710
    %v3712 = vand.u32 %v570, 4294901760
    %3713 = vmatpush.msra.mxu0 %v3712
    %v3714 = vand.u32 %v563, 4294901760
    %3715 = vmatpush.msra.mxu0 %v3714
    %v3716 = vand.u32 %v556, 4294901760
    %3717 = vmatpush.msra.mxu0 %v3716
    %v3718 = vand.u32 %v549, 4294901760
    %3719 = vmatpush.msra.mxu0 %v3718
    %v3720 = vand.u32 %v542, 4294901760
    %3721 = vmatpush.msra.mxu0 %v3720
    %v3722 = vand.u32 %v535, 4294901760
    %3723 = vmatpush.msra.mxu0 %v3722
    %v3724 = vand.u32 %v528, 4294901760
    %3725 = vmatpush.msra.mxu0 %v3724
    %v3726 = vand.u32 %v521, 4294901760
    %3727 = vmatpush.msra.mxu0 %v3726
    %v3728 = vand.u32 %v514, 4294901760
    %3729 = vmatpush.msra.mxu0 %v3728
    %v3730 = vand.u32 %v507, 4294901760
    %3731 = vmatpush.msra.mxu0 %v3730
    %v3732 = vand.u32 %v390, 4294901760
    %v3733 = vsub.f32 %v390, %v3732
    %v3734 = vand.u32 %v3733, 4294901760
    %v3735 = vsub.f32 %v3733, %v3734
    %v3736 = vand.u32 %v3735, 4294901760
    %3737 = vmatmul.f32.gmra.mxu0 %v3736
    %v3738 = vpop.f32.mrf.mxu0
    %v3739 = vadd.f32 %v3698, %v3738
    %3740 = vdwg.mxu0
    %v3741 = vand.u32 %v612, 4294901760
    %v3742 = vsub.f32 %v612, %v3741
    %v3743 = vand.u32 %v3742, 4294901760
    %v3744 = vsub.f32 %v3742, %v3743
    %v3745 = vand.u32 %v3744, 4294901760
    %3746 = vmatpush.msra.mxu0 %v3745
    %v3747 = vand.u32 %v605, 4294901760
    %v3748 = vsub.f32 %v605, %v3747
    %v3749 = vand.u32 %v3748, 4294901760
    %v3750 = vsub.f32 %v3748, %v3749
    %v3751 = vand.u32 %v3750, 4294901760
    %3752 = vmatpush.msra.mxu0 %v3751
    %v3753 = vand.u32 %v598, 4294901760
    %v3754 = vsub.f32 %v598, %v3753
    %v3755 = vand.u32 %v3754, 4294901760
    %v3756 = vsub.f32 %v3754, %v3755
    %v3757 = vand.u32 %v3756, 4294901760
    %3758 = vmatpush.msra.mxu0 %v3757
    %v3759 = vand.u32 %v591, 4294901760
    %v3760 = vsub.f32 %v591, %v3759
    %v3761 = vand.u32 %v3760, 4294901760
    %v3762 = vsub.f32 %v3760, %v3761
    %v3763 = vand.u32 %v3762, 4294901760
    %3764 = vmatpush.msra.mxu0 %v3763
    %v3765 = vand.u32 %v584, 4294901760
    %v3766 = vsub.f32 %v584, %v3765
    %v3767 = vand.u32 %v3766, 4294901760
    %v3768 = vsub.f32 %v3766, %v3767
    %v3769 = vand.u32 %v3768, 4294901760
    %3770 = vmatpush.msra.mxu0 %v3769
    %v3771 = vand.u32 %v577, 4294901760
    %v3772 = vsub.f32 %v577, %v3771
    %v3773 = vand.u32 %v3772, 4294901760
    %v3774 = vsub.f32 %v3772, %v3773
    %v3775 = vand.u32 %v3774, 4294901760
    %3776 = vmatpush.msra.mxu0 %v3775
    %v3777 = vand.u32 %v570, 4294901760
    %v3778 = vsub.f32 %v570, %v3777
    %v3779 = vand.u32 %v3778, 4294901760
    %v3780 = vsub.f32 %v3778, %v3779
    %v3781 = vand.u32 %v3780, 4294901760
    %3782 = vmatpush.msra.mxu0 %v3781
    %v3783 = vand.u32 %v563, 4294901760
    %v3784 = vsub.f32 %v563, %v3783
    %v3785 = vand.u32 %v3784, 4294901760
    %v3786 = vsub.f32 %v3784, %v3785
    %v3787 = vand.u32 %v3786, 4294901760
    %3788 = vmatpush.msra.mxu0 %v3787
    %v3789 = vand.u32 %v556, 4294901760
    %v3790 = vsub.f32 %v556, %v3789
    %v3791 = vand.u32 %v3790, 4294901760
    %v3792 = vsub.f32 %v3790, %v3791
    %v3793 = vand.u32 %v3792, 4294901760
    %3794 = vmatpush.msra.mxu0 %v3793
    %v3795 = vand.u32 %v549, 4294901760
    %v3796 = vsub.f32 %v549, %v3795
    %v3797 = vand.u32 %v3796, 4294901760
    %v3798 = vsub.f32 %v3796, %v3797
    %v3799 = vand.u32 %v3798, 4294901760
    %3800 = vmatpush.msra.mxu0 %v3799
    %v3801 = vand.u32 %v542, 4294901760
    %v3802 = vsub.f32 %v542, %v3801
    %v3803 = vand.u32 %v3802, 4294901760
    %v3804 = vsub.f32 %v3802, %v3803
    %v3805 = vand.u32 %v3804, 4294901760
    %3806 = vmatpush.msra.mxu0 %v3805
    %v3807 = vand.u32 %v535, 4294901760
    %v3808 = vsub.f32 %v535, %v3807
    %v3809 = vand.u32 %v3808, 4294901760
    %v3810 = vsub.f32 %v3808, %v3809
    %v3811 = vand.u32 %v3810, 4294901760
    %3812 = vmatpush.msra.mxu0 %v3811
    %v3813 = vand.u32 %v528, 4294901760
    %v3814 = vsub.f32 %v528, %v3813
    %v3815 = vand.u32 %v3814, 4294901760
    %v3816 = vsub.f32 %v3814, %v3815
    %v3817 = vand.u32 %v3816, 4294901760
    %3818 = vmatpush.msra.mxu0 %v3817
    %v3819 = vand.u32 %v521, 4294901760
    %v3820 = vsub.f32 %v521, %v3819
    %v3821 = vand.u32 %v3820, 4294901760
    %v3822 = vsub.f32 %v3820, %v3821
    %v3823 = vand.u32 %v3822, 4294901760
    %3824 = vmatpush.msra.mxu0 %v3823
    %v3825 = vand.u32 %v514, 4294901760
    %v3826 = vsub.f32 %v514, %v3825
    %v3827 = vand.u32 %v3826, 4294901760
    %v3828 = vsub.f32 %v3826, %v3827
    %v3829 = vand.u32 %v3828, 4294901760
    %3830 = vmatpush.msra.mxu0 %v3829
    %v3831 = vand.u32 %v507, 4294901760
    %v3832 = vsub.f32 %v507, %v3831
    %v3833 = vand.u32 %v3832, 4294901760
    %v3834 = vsub.f32 %v3832, %v3833
    %v3835 = vand.u32 %v3834, 4294901760
    %3836 = vmatpush.msra.mxu0 %v3835
    %v3837 = vand.u32 %v390, 4294901760
    %3838 = vmatmul.f32.gmra.mxu0 %v3837
    %v3839 = vpop.f32.mrf.mxu0
    %v3840 = vadd.f32 %v3739, %v3839
    %3841 = vdwg.mxu0
    %v3842 = vand.u32 %v612, 4294901760
    %v3843 = vsub.f32 %v612, %v3842
    %3844 = vmatpush.msra.mxu0 %v3843
    %v3845 = vand.u32 %v605, 4294901760
    %v3846 = vsub.f32 %v605, %v3845
    %3847 = vmatpush.msra.mxu0 %v3846
    %v3848 = vand.u32 %v598, 4294901760
    %v3849 = vsub.f32 %v598, %v3848
    %3850 = vmatpush.msra.mxu0 %v3849
    %v3851 = vand.u32 %v591, 4294901760
    %v3852 = vsub.f32 %v591, %v3851
    %3853 = vmatpush.msra.mxu0 %v3852
    %v3854 = vand.u32 %v584, 4294901760
    %v3855 = vsub.f32 %v584, %v3854
    %3856 = vmatpush.msra.mxu0 %v3855
    %v3857 = vand.u32 %v577, 4294901760
    %v3858 = vsub.f32 %v577, %v3857
    %3859 = vmatpush.msra.mxu0 %v3858
    %v3860 = vand.u32 %v570, 4294901760
    %v3861 = vsub.f32 %v570, %v3860
    %3862 = vmatpush.msra.mxu0 %v3861
    %v3863 = vand.u32 %v563, 4294901760
    %v3864 = vsub.f32 %v563, %v3863
    %3865 = vmatpush.msra.mxu0 %v3864
    %v3866 = vand.u32 %v556, 4294901760
    %v3867 = vsub.f32 %v556, %v3866
    %3868 = vmatpush.msra.mxu0 %v3867
    %v3869 = vand.u32 %v549, 4294901760
    %v3870 = vsub.f32 %v549, %v3869
    %3871 = vmatpush.msra.mxu0 %v3870
    %v3872 = vand.u32 %v542, 4294901760
    %v3873 = vsub.f32 %v542, %v3872
    %3874 = vmatpush.msra.mxu0 %v3873
    %v3875 = vand.u32 %v535, 4294901760
    %v3876 = vsub.f32 %v535, %v3875
    %3877 = vmatpush.msra.mxu0 %v3876
    %v3878 = vand.u32 %v528, 4294901760
    %v3879 = vsub.f32 %v528, %v3878
    %3880 = vmatpush.msra.mxu0 %v3879
    %v3881 = vand.u32 %v521, 4294901760
    %v3882 = vsub.f32 %v521, %v3881
    %3883 = vmatpush.msra.mxu0 %v3882
    %v3884 = vand.u32 %v514, 4294901760
    %v3885 = vsub.f32 %v514, %v3884
    %3886 = vmatpush.msra.mxu0 %v3885
    %v3887 = vand.u32 %v507, 4294901760
    %v3888 = vsub.f32 %v507, %v3887
    %3889 = vmatpush.msra.mxu0 %v3888
    %v3890 = vand.u32 %v390, 4294901760
    %v3891 = vsub.f32 %v390, %v3890
    %3892 = vmatmul.f32.gmra.mxu0 %v3891
    %v3893 = vpop.f32.mrf.mxu0
    %v3894 = vadd.f32 %v3840, %v3893
    %3895 = vdwg.mxu0
    %v3896 = vand.u32 %v612, 4294901760
    %3897 = vmatpush.msra.mxu0 %v3896
    %v3898 = vand.u32 %v605, 4294901760
    %3899 = vmatpush.msra.mxu0 %v3898
    %v3900 = vand.u32 %v598, 4294901760
    %3901 = vmatpush.msra.mxu0 %v3900
    %v3902 = vand.u32 %v591, 4294901760
    %3903 = vmatpush.msra.mxu0 %v3902
    %v3904 = vand.u32 %v584, 4294901760
    %3905 = vmatpush.msra.mxu0 %v3904
    %v3906 = vand.u32 %v577, 4294901760
    %3907 = vmatpush.msra.mxu0 %v3906
    %v3908 = vand.u32 %v570, 4294901760
    %3909 = vmatpush.msra.mxu0 %v3908
    %v3910 = vand.u32 %v563, 4294901760
    %3911 = vmatpush.msra.mxu0 %v3910
    %v3912 = vand.u32 %v556, 4294901760
    %3913 = vmatpush.msra.mxu0 %v3912
    %v3914 = vand.u32 %v549, 4294901760
    %3915 = vmatpush.msra.mxu0 %v3914
    %v3916 = vand.u32 %v542, 4294901760
    %3917 = vmatpush.msra.mxu0 %v3916
    %v3918 = vand.u32 %v535, 4294901760
    %3919 = vmatpush.msra.mxu0 %v3918
    %v3920 = vand.u32 %v528, 4294901760
    %3921 = vmatpush.msra.mxu0 %v3920
    %v3922 = vand.u32 %v521, 4294901760
    %3923 = vmatpush.msra.mxu0 %v3922
    %v3924 = vand.u32 %v514, 4294901760
    %3925 = vmatpush.msra.mxu0 %v3924
    %v3926 = vand.u32 %v507, 4294901760
    %3927 = vmatpush.msra.mxu0 %v3926
    %v3928 = vand.u32 %v390, 4294901760
    %v3929 = vsub.f32 %v390, %v3928
    %v3930 = vand.u32 %v3929, 4294901760
    %3931 = vmatmul.f32.gmra.mxu0 %v3930
    %v3932 = vpop.f32.mrf.mxu0
    %v3933 = vadd.f32 %v3894, %v3932
    %3934 = vdwg.mxu0
    %v3935 = vand.u32 %v612, 4294901760
    %v3936 = vsub.f32 %v612, %v3935
    %v3937 = vand.u32 %v3936, 4294901760
    %3938 = vmatpush.msra.mxu0 %v3937
    %v3939 = vand.u32 %v605, 4294901760
    %v3940 = vsub.f32 %v605, %v3939
    %v3941 = vand.u32 %v3940, 4294901760
    %3942 = vmatpush.msra.mxu0 %v3941
    %v3943 = vand.u32 %v598, 4294901760
    %v3944 = vsub.f32 %v598, %v3943
    %v3945 = vand.u32 %v3944, 4294901760
    %3946 = vmatpush.msra.mxu0 %v3945
    %v3947 = vand.u32 %v591, 4294901760
    %v3948 = vsub.f32 %v591, %v3947
    %v3949 = vand.u32 %v3948, 4294901760
    %3950 = vmatpush.msra.mxu0 %v3949
    %v3951 = vand.u32 %v584, 4294901760
    %v3952 = vsub.f32 %v584, %v3951
    %v3953 = vand.u32 %v3952, 4294901760
    %3954 = vmatpush.msra.mxu0 %v3953
    %v3955 = vand.u32 %v577, 4294901760
    %v3956 = vsub.f32 %v577, %v3955
    %v3957 = vand.u32 %v3956, 4294901760
    %3958 = vmatpush.msra.mxu0 %v3957
    %v3959 = vand.u32 %v570, 4294901760
    %v3960 = vsub.f32 %v570, %v3959
    %v3961 = vand.u32 %v3960, 4294901760
    %3962 = vmatpush.msra.mxu0 %v3961
    %v3963 = vand.u32 %v563, 4294901760
    %v3964 = vsub.f32 %v563, %v3963
    %v3965 = vand.u32 %v3964, 4294901760
    %3966 = vmatpush.msra.mxu0 %v3965
    %v3967 = vand.u32 %v556, 4294901760
    %v3968 = vsub.f32 %v556, %v3967
    %v3969 = vand.u32 %v3968, 4294901760
    %3970 = vmatpush.msra.mxu0 %v3969
    %v3971 = vand.u32 %v549, 4294901760
    %v3972 = vsub.f32 %v549, %v3971
    %v3973 = vand.u32 %v3972, 4294901760
    %3974 = vmatpush.msra.mxu0 %v3973
    %v3975 = vand.u32 %v542, 4294901760
    %v3976 = vsub.f32 %v542, %v3975
    %v3977 = vand.u32 %v3976, 4294901760
    %3978 = vmatpush.msra.mxu0 %v3977
    %v3979 = vand.u32 %v535, 4294901760
    %v3980 = vsub.f32 %v535, %v3979
    %v3981 = vand.u32 %v3980, 4294901760
    %3982 = vmatpush.msra.mxu0 %v3981
    %v3983 = vand.u32 %v528, 4294901760
    %v3984 = vsub.f32 %v528, %v3983
    %v3985 = vand.u32 %v3984, 4294901760
    %3986 = vmatpush.msra.mxu0 %v3985
    %v3987 = vand.u32 %v521, 4294901760
    %v3988 = vsub.f32 %v521, %v3987
    %v3989 = vand.u32 %v3988, 4294901760
    %3990 = vmatpush.msra.mxu0 %v3989
    %v3991 = vand.u32 %v514, 4294901760
    %v3992 = vsub.f32 %v514, %v3991
    %v3993 = vand.u32 %v3992, 4294901760
    %3994 = vmatpush.msra.mxu0 %v3993
    %v3995 = vand.u32 %v507, 4294901760
    %v3996 = vsub.f32 %v507, %v3995
    %v3997 = vand.u32 %v3996, 4294901760
    %3998 = vmatpush.msra.mxu0 %v3997
    %v3999 = vand.u32 %v390, 4294901760
    %4000 = vmatmul.f32.gmra.mxu0 %v3999
    %v4001 = vpop.f32.mrf.mxu0
    %v4002 = vadd.f32 %v3933, %v4001
    %4003 = vdwg.mxu0
    %v4004 = vand.u32 %v612, 4294901760
    %4005 = vmatpush.msra.mxu0 %v4004
    %v4006 = vand.u32 %v605, 4294901760
    %4007 = vmatpush.msra.mxu0 %v4006
    %v4008 = vand.u32 %v598, 4294901760
    %4009 = vmatpush.msra.mxu0 %v4008
    %v4010 = vand.u32 %v591, 4294901760
    %4011 = vmatpush.msra.mxu0 %v4010
    %v4012 = vand.u32 %v584, 4294901760
    %4013 = vmatpush.msra.mxu0 %v4012
    %v4014 = vand.u32 %v577, 4294901760
    %4015 = vmatpush.msra.mxu0 %v4014
    %v4016 = vand.u32 %v570, 4294901760
    %4017 = vmatpush.msra.mxu0 %v4016
    %v4018 = vand.u32 %v563, 4294901760
    %4019 = vmatpush.msra.mxu0 %v4018
    %v4020 = vand.u32 %v556, 4294901760
    %4021 = vmatpush.msra.mxu0 %v4020
    %v4022 = vand.u32 %v549, 4294901760
    %4023 = vmatpush.msra.mxu0 %v4022
    %v4024 = vand.u32 %v542, 4294901760
    %4025 = vmatpush.msra.mxu0 %v4024
    %v4026 = vand.u32 %v535, 4294901760
    %4027 = vmatpush.msra.mxu0 %v4026
    %v4028 = vand.u32 %v528, 4294901760
    %4029 = vmatpush.msra.mxu0 %v4028
    %v4030 = vand.u32 %v521, 4294901760
    %4031 = vmatpush.msra.mxu0 %v4030
    %v4032 = vand.u32 %v514, 4294901760
    %4033 = vmatpush.msra.mxu0 %v4032
    %v4034 = vand.u32 %v507, 4294901760
    %4035 = vmatpush.msra.mxu0 %v4034
    %v4036 = vand.u32 %v390, 4294901760
    %4037 = vmatmul.f32.gmra.mxu0 %v4036
    %v4038 = vpop.f32.mrf.mxu0
    %v4039 = vadd.f32 %v4002, %v4038
    %4040 = vdwg.mxu0
    %v4041 = vand.u32 %v501, 4294901760
    %4042 = vmatpush.msra.mxu0 %v4041
    %v4043 = vand.u32 %v494, 4294901760
    %4044 = vmatpush.msra.mxu0 %v4043
    %v4045 = vand.u32 %v487, 4294901760
    %4046 = vmatpush.msra.mxu0 %v4045
    %v4047 = vand.u32 %v480, 4294901760
    %4048 = vmatpush.msra.mxu0 %v4047
    %v4049 = vand.u32 %v473, 4294901760
    %4050 = vmatpush.msra.mxu0 %v4049
    %v4051 = vand.u32 %v466, 4294901760
    %4052 = vmatpush.msra.mxu0 %v4051
    %v4053 = vand.u32 %v459, 4294901760
    %4054 = vmatpush.msra.mxu0 %v4053
    %v4055 = vand.u32 %v452, 4294901760
    %4056 = vmatpush.msra.mxu0 %v4055
    %v4057 = vand.u32 %v445, 4294901760
    %4058 = vmatpush.msra.mxu0 %v4057
    %v4059 = vand.u32 %v438, 4294901760
    %4060 = vmatpush.msra.mxu0 %v4059
    %v4061 = vand.u32 %v431, 4294901760
    %4062 = vmatpush.msra.mxu0 %v4061
    %v4063 = vand.u32 %v424, 4294901760
    %4064 = vmatpush.msra.mxu0 %v4063
    %v4065 = vand.u32 %v417, 4294901760
    %4066 = vmatpush.msra.mxu0 %v4065
    %v4067 = vand.u32 %v410, 4294901760
    %4068 = vmatpush.msra.mxu0 %v4067
    %v4069 = vand.u32 %v403, 4294901760
    %4070 = vmatpush.msra.mxu0 %v4069
    %v4071 = vand.u32 %v396, 4294901760
    %4072 = vmatpush.msra.mxu0 %v4071
    %v4073 = vand.u32 %v389, 4294901760
    %v4074 = vsub.f32 %v389, %v4073
    %v4075 = vand.u32 %v4074, 4294901760
    %v4076 = vsub.f32 %v4074, %v4075
    %v4077 = vand.u32 %v4076, 4294901760
    %4078 = vmatmul.f32.gmra.mxu0 %v4077
    %v4079 = vpop.f32.mrf.mxu0
    %v4080 = vadd.f32 %v622, %v4079
    %4081 = vdwg.mxu0
    %v4082 = vand.u32 %v501, 4294901760
    %v4083 = vsub.f32 %v501, %v4082
    %v4084 = vand.u32 %v4083, 4294901760
    %v4085 = vsub.f32 %v4083, %v4084
    %v4086 = vand.u32 %v4085, 4294901760
    %4087 = vmatpush.msra.mxu0 %v4086
    %v4088 = vand.u32 %v494, 4294901760
    %v4089 = vsub.f32 %v494, %v4088
    %v4090 = vand.u32 %v4089, 4294901760
    %v4091 = vsub.f32 %v4089, %v4090
    %v4092 = vand.u32 %v4091, 4294901760
    %4093 = vmatpush.msra.mxu0 %v4092
    %v4094 = vand.u32 %v487, 4294901760
    %v4095 = vsub.f32 %v487, %v4094
    %v4096 = vand.u32 %v4095, 4294901760
    %v4097 = vsub.f32 %v4095, %v4096
    %v4098 = vand.u32 %v4097, 4294901760
    %4099 = vmatpush.msra.mxu0 %v4098
    %v4100 = vand.u32 %v480, 4294901760
    %v4101 = vsub.f32 %v480, %v4100
    %v4102 = vand.u32 %v4101, 4294901760
    %v4103 = vsub.f32 %v4101, %v4102
    %v4104 = vand.u32 %v4103, 4294901760
    %4105 = vmatpush.msra.mxu0 %v4104
    %v4106 = vand.u32 %v473, 4294901760
    %v4107 = vsub.f32 %v473, %v4106
    %v4108 = vand.u32 %v4107, 4294901760
    %v4109 = vsub.f32 %v4107, %v4108
    %v4110 = vand.u32 %v4109, 4294901760
    %4111 = vmatpush.msra.mxu0 %v4110
    %v4112 = vand.u32 %v466, 4294901760
    %v4113 = vsub.f32 %v466, %v4112
    %v4114 = vand.u32 %v4113, 4294901760
    %v4115 = vsub.f32 %v4113, %v4114
    %v4116 = vand.u32 %v4115, 4294901760
    %4117 = vmatpush.msra.mxu0 %v4116
    %v4118 = vand.u32 %v459, 4294901760
    %v4119 = vsub.f32 %v459, %v4118
    %v4120 = vand.u32 %v4119, 4294901760
    %v4121 = vsub.f32 %v4119, %v4120
    %v4122 = vand.u32 %v4121, 4294901760
    %4123 = vmatpush.msra.mxu0 %v4122
    %v4124 = vand.u32 %v452, 4294901760
    %v4125 = vsub.f32 %v452, %v4124
    %v4126 = vand.u32 %v4125, 4294901760
    %v4127 = vsub.f32 %v4125, %v4126
    %v4128 = vand.u32 %v4127, 4294901760
    %4129 = vmatpush.msra.mxu0 %v4128
    %v4130 = vand.u32 %v445, 4294901760
    %v4131 = vsub.f32 %v445, %v4130
    %v4132 = vand.u32 %v4131, 4294901760
    %v4133 = vsub.f32 %v4131, %v4132
    %v4134 = vand.u32 %v4133, 4294901760
    %4135 = vmatpush.msra.mxu0 %v4134
    %v4136 = vand.u32 %v438, 4294901760
    %v4137 = vsub.f32 %v438, %v4136
    %v4138 = vand.u32 %v4137, 4294901760
    %v4139 = vsub.f32 %v4137, %v4138
    %v4140 = vand.u32 %v4139, 4294901760
    %4141 = vmatpush.msra.mxu0 %v4140
    %v4142 = vand.u32 %v431, 4294901760
    %v4143 = vsub.f32 %v431, %v4142
    %v4144 = vand.u32 %v4143, 4294901760
    %v4145 = vsub.f32 %v4143, %v4144
    %v4146 = vand.u32 %v4145, 4294901760
    %4147 = vmatpush.msra.mxu0 %v4146
    %v4148 = vand.u32 %v424, 4294901760
    %v4149 = vsub.f32 %v424, %v4148
    %v4150 = vand.u32 %v4149, 4294901760
    %v4151 = vsub.f32 %v4149, %v4150
    %v4152 = vand.u32 %v4151, 4294901760
    %4153 = vmatpush.msra.mxu0 %v4152
    %v4154 = vand.u32 %v417, 4294901760
    %v4155 = vsub.f32 %v417, %v4154
    %v4156 = vand.u32 %v4155, 4294901760
    %v4157 = vsub.f32 %v4155, %v4156
    %v4158 = vand.u32 %v4157, 4294901760
    %4159 = vmatpush.msra.mxu0 %v4158
    %v4160 = vand.u32 %v410, 4294901760
    %v4161 = vsub.f32 %v410, %v4160
    %v4162 = vand.u32 %v4161, 4294901760
    %v4163 = vsub.f32 %v4161, %v4162
    %v4164 = vand.u32 %v4163, 4294901760
    %4165 = vmatpush.msra.mxu0 %v4164
    %v4166 = vand.u32 %v403, 4294901760
    %v4167 = vsub.f32 %v403, %v4166
    %v4168 = vand.u32 %v4167, 4294901760
    %v4169 = vsub.f32 %v4167, %v4168
    %v4170 = vand.u32 %v4169, 4294901760
    %4171 = vmatpush.msra.mxu0 %v4170
    %v4172 = vand.u32 %v396, 4294901760
    %v4173 = vsub.f32 %v396, %v4172
    %v4174 = vand.u32 %v4173, 4294901760
    %v4175 = vsub.f32 %v4173, %v4174
    %v4176 = vand.u32 %v4175, 4294901760
    %4177 = vmatpush.msra.mxu0 %v4176
    %v4178 = vand.u32 %v389, 4294901760
    %4179 = vmatmul.f32.gmra.mxu0 %v4178
    %v4180 = vpop.f32.mrf.mxu0
    %v4181 = vadd.f32 %v4080, %v4180
    %4182 = vdwg.mxu0
    %v4183 = vand.u32 %v501, 4294901760
    %v4184 = vsub.f32 %v501, %v4183
    %4185 = vmatpush.msra.mxu0 %v4184
    %v4186 = vand.u32 %v494, 4294901760
    %v4187 = vsub.f32 %v494, %v4186
    %4188 = vmatpush.msra.mxu0 %v4187
    %v4189 = vand.u32 %v487, 4294901760
    %v4190 = vsub.f32 %v487, %v4189
    %4191 = vmatpush.msra.mxu0 %v4190
    %v4192 = vand.u32 %v480, 4294901760
    %v4193 = vsub.f32 %v480, %v4192
    %4194 = vmatpush.msra.mxu0 %v4193
    %v4195 = vand.u32 %v473, 4294901760
    %v4196 = vsub.f32 %v473, %v4195
    %4197 = vmatpush.msra.mxu0 %v4196
    %v4198 = vand.u32 %v466, 4294901760
    %v4199 = vsub.f32 %v466, %v4198
    %4200 = vmatpush.msra.mxu0 %v4199
    %v4201 = vand.u32 %v459, 4294901760
    %v4202 = vsub.f32 %v459, %v4201
    %4203 = vmatpush.msra.mxu0 %v4202
    %v4204 = vand.u32 %v452, 4294901760
    %v4205 = vsub.f32 %v452, %v4204
    %4206 = vmatpush.msra.mxu0 %v4205
    %v4207 = vand.u32 %v445, 4294901760
    %v4208 = vsub.f32 %v445, %v4207
    %4209 = vmatpush.msra.mxu0 %v4208
    %v4210 = vand.u32 %v438, 4294901760
    %v4211 = vsub.f32 %v438, %v4210
    %4212 = vmatpush.msra.mxu0 %v4211
    %v4213 = vand.u32 %v431, 4294901760
    %v4214 = vsub.f32 %v431, %v4213
    %4215 = vmatpush.msra.mxu0 %v4214
    %v4216 = vand.u32 %v424, 4294901760
    %v4217 = vsub.f32 %v424, %v4216
    %4218 = vmatpush.msra.mxu0 %v4217
    %v4219 = vand.u32 %v417, 4294901760
    %v4220 = vsub.f32 %v417, %v4219
    %4221 = vmatpush.msra.mxu0 %v4220
    %v4222 = vand.u32 %v410, 4294901760
    %v4223 = vsub.f32 %v410, %v4222
    %4224 = vmatpush.msra.mxu0 %v4223
    %v4225 = vand.u32 %v403, 4294901760
    %v4226 = vsub.f32 %v403, %v4225
    %4227 = vmatpush.msra.mxu0 %v4226
    %v4228 = vand.u32 %v396, 4294901760
    %v4229 = vsub.f32 %v396, %v4228
    %4230 = vmatpush.msra.mxu0 %v4229
    %v4231 = vand.u32 %v389, 4294901760
    %v4232 = vsub.f32 %v389, %v4231
    %4233 = vmatmul.f32.gmra.mxu0 %v4232
    %v4234 = vpop.f32.mrf.mxu0
    %v4235 = vadd.f32 %v4181, %v4234
    %4236 = vdwg.mxu0
    %v4237 = vand.u32 %v501, 4294901760
    %4238 = vmatpush.msra.mxu0 %v4237
    %v4239 = vand.u32 %v494, 4294901760
    %4240 = vmatpush.msra.mxu0 %v4239
    %v4241 = vand.u32 %v487, 4294901760
    %4242 = vmatpush.msra.mxu0 %v4241
    %v4243 = vand.u32 %v480, 4294901760
    %4244 = vmatpush.msra.mxu0 %v4243
    %v4245 = vand.u32 %v473, 4294901760
    %4246 = vmatpush.msra.mxu0 %v4245
    %v4247 = vand.u32 %v466, 4294901760
    %4248 = vmatpush.msra.mxu0 %v4247
    %v4249 = vand.u32 %v459, 4294901760
    %4250 = vmatpush.msra.mxu0 %v4249
    %v4251 = vand.u32 %v452, 4294901760
    %4252 = vmatpush.msra.mxu0 %v4251
    %v4253 = vand.u32 %v445, 4294901760
    %4254 = vmatpush.msra.mxu0 %v4253
    %v4255 = vand.u32 %v438, 4294901760
    %4256 = vmatpush.msra.mxu0 %v4255
    %v4257 = vand.u32 %v431, 4294901760
    %4258 = vmatpush.msra.mxu0 %v4257
    %v4259 = vand.u32 %v424, 4294901760
    %4260 = vmatpush.msra.mxu0 %v4259
    %v4261 = vand.u32 %v417, 4294901760
    %4262 = vmatpush.msra.mxu0 %v4261
    %v4263 = vand.u32 %v410, 4294901760
    %4264 = vmatpush.msra.mxu0 %v4263
    %v4265 = vand.u32 %v403, 4294901760
    %4266 = vmatpush.msra.mxu0 %v4265
    %v4267 = vand.u32 %v396, 4294901760
    %4268 = vmatpush.msra.mxu0 %v4267
    %v4269 = vand.u32 %v389, 4294901760
    %v4270 = vsub.f32 %v389, %v4269
    %v4271 = vand.u32 %v4270, 4294901760
    %4272 = vmatmul.f32.gmra.mxu0 %v4271
    %v4273 = vpop.f32.mrf.mxu0
    %v4274 = vadd.f32 %v4235, %v4273
    %4275 = vdwg.mxu0
    %v4276 = vand.u32 %v501, 4294901760
    %v4277 = vsub.f32 %v501, %v4276
    %v4278 = vand.u32 %v4277, 4294901760
    %4279 = vmatpush.msra.mxu0 %v4278
    %v4280 = vand.u32 %v494, 4294901760
    %v4281 = vsub.f32 %v494, %v4280
    %v4282 = vand.u32 %v4281, 4294901760
    %4283 = vmatpush.msra.mxu0 %v4282
    %v4284 = vand.u32 %v487, 4294901760
    %v4285 = vsub.f32 %v487, %v4284
    %v4286 = vand.u32 %v4285, 4294901760
    %4287 = vmatpush.msra.mxu0 %v4286
    %v4288 = vand.u32 %v480, 4294901760
    %v4289 = vsub.f32 %v480, %v4288
    %v4290 = vand.u32 %v4289, 4294901760
    %4291 = vmatpush.msra.mxu0 %v4290
    %v4292 = vand.u32 %v473, 4294901760
    %v4293 = vsub.f32 %v473, %v4292
    %v4294 = vand.u32 %v4293, 4294901760
    %4295 = vmatpush.msra.mxu0 %v4294
    %v4296 = vand.u32 %v466, 4294901760
    %v4297 = vsub.f32 %v466, %v4296
    %v4298 = vand.u32 %v4297, 4294901760
    %4299 = vmatpush.msra.mxu0 %v4298
    %v4300 = vand.u32 %v459, 4294901760
    %v4301 = vsub.f32 %v459, %v4300
    %v4302 = vand.u32 %v4301, 4294901760
    %4303 = vmatpush.msra.mxu0 %v4302
    %v4304 = vand.u32 %v452, 4294901760
    %v4305 = vsub.f32 %v452, %v4304
    %v4306 = vand.u32 %v4305, 4294901760
    %4307 = vmatpush.msra.mxu0 %v4306
    %v4308 = vand.u32 %v445, 4294901760
    %v4309 = vsub.f32 %v445, %v4308
    %v4310 = vand.u32 %v4309, 4294901760
    %4311 = vmatpush.msra.mxu0 %v4310
    %v4312 = vand.u32 %v438, 4294901760
    %v4313 = vsub.f32 %v438, %v4312
    %v4314 = vand.u32 %v4313, 4294901760
    %4315 = vmatpush.msra.mxu0 %v4314
    %v4316 = vand.u32 %v431, 4294901760
    %v4317 = vsub.f32 %v431, %v4316
    %v4318 = vand.u32 %v4317, 4294901760
    %4319 = vmatpush.msra.mxu0 %v4318
    %v4320 = vand.u32 %v424, 4294901760
    %v4321 = vsub.f32 %v424, %v4320
    %v4322 = vand.u32 %v4321, 4294901760
    %4323 = vmatpush.msra.mxu0 %v4322
    %v4324 = vand.u32 %v417, 4294901760
    %v4325 = vsub.f32 %v417, %v4324
    %v4326 = vand.u32 %v4325, 4294901760
    %4327 = vmatpush.msra.mxu0 %v4326
    %v4328 = vand.u32 %v410, 4294901760
    %v4329 = vsub.f32 %v410, %v4328
    %v4330 = vand.u32 %v4329, 4294901760
    %4331 = vmatpush.msra.mxu0 %v4330
    %v4332 = vand.u32 %v403, 4294901760
    %v4333 = vsub.f32 %v403, %v4332
    %v4334 = vand.u32 %v4333, 4294901760
    %4335 = vmatpush.msra.mxu0 %v4334
    %v4336 = vand.u32 %v396, 4294901760
    %v4337 = vsub.f32 %v396, %v4336
    %v4338 = vand.u32 %v4337, 4294901760
    %4339 = vmatpush.msra.mxu0 %v4338
    %v4340 = vand.u32 %v389, 4294901760
    %4341 = vmatmul.f32.gmra.mxu0 %v4340
    %v4342 = vpop.f32.mrf.mxu0
    %v4343 = vadd.f32 %v4274, %v4342
    %4344 = vdwg.mxu0
    %v4345 = vand.u32 %v501, 4294901760
    %4346 = vmatpush.msra.mxu0 %v4345
    %v4347 = vand.u32 %v494, 4294901760
    %4348 = vmatpush.msra.mxu0 %v4347
    %v4349 = vand.u32 %v487, 4294901760
    %4350 = vmatpush.msra.mxu0 %v4349
    %v4351 = vand.u32 %v480, 4294901760
    %4352 = vmatpush.msra.mxu0 %v4351
    %v4353 = vand.u32 %v473, 4294901760
    %4354 = vmatpush.msra.mxu0 %v4353
    %v4355 = vand.u32 %v466, 4294901760
    %4356 = vmatpush.msra.mxu0 %v4355
    %v4357 = vand.u32 %v459, 4294901760
    %4358 = vmatpush.msra.mxu0 %v4357
    %v4359 = vand.u32 %v452, 4294901760
    %4360 = vmatpush.msra.mxu0 %v4359
    %v4361 = vand.u32 %v445, 4294901760
    %4362 = vmatpush.msra.mxu0 %v4361
    %v4363 = vand.u32 %v438, 4294901760
    %4364 = vmatpush.msra.mxu0 %v4363
    %v4365 = vand.u32 %v431, 4294901760
    %4366 = vmatpush.msra.mxu0 %v4365
    %v4367 = vand.u32 %v424, 4294901760
    %4368 = vmatpush.msra.mxu0 %v4367
    %v4369 = vand.u32 %v417, 4294901760
    %4370 = vmatpush.msra.mxu0 %v4369
    %v4371 = vand.u32 %v410, 4294901760
    %4372 = vmatpush.msra.mxu0 %v4371
    %v4373 = vand.u32 %v403, 4294901760
    %4374 = vmatpush.msra.mxu0 %v4373
    %v4375 = vand.u32 %v396, 4294901760
    %4376 = vmatpush.msra.mxu0 %v4375
    %v4377 = vand.u32 %v389, 4294901760
    %4378 = vmatmul.f32.gmra.mxu0 %v4377
    %v4379 = vpop.f32.mrf.mxu0
    %v4380 = vadd.f32 %v4343, %v4379
    %4381 = vdwg.mxu0
    %v4382 = vand.u32 %v613, 4294901760
    %4383 = vmatpush.msra.mxu0 %v4382
    %v4384 = vand.u32 %v606, 4294901760
    %4385 = vmatpush.msra.mxu0 %v4384
    %v4386 = vand.u32 %v599, 4294901760
    %4387 = vmatpush.msra.mxu0 %v4386
    %v4388 = vand.u32 %v592, 4294901760
    %4389 = vmatpush.msra.mxu0 %v4388
    %v4390 = vand.u32 %v585, 4294901760
    %4391 = vmatpush.msra.mxu0 %v4390
    %v4392 = vand.u32 %v578, 4294901760
    %4393 = vmatpush.msra.mxu0 %v4392
    %v4394 = vand.u32 %v571, 4294901760
    %4395 = vmatpush.msra.mxu0 %v4394
    %v4396 = vand.u32 %v564, 4294901760
    %4397 = vmatpush.msra.mxu0 %v4396
    %v4398 = vand.u32 %v557, 4294901760
    %4399 = vmatpush.msra.mxu0 %v4398
    %v4400 = vand.u32 %v550, 4294901760
    %4401 = vmatpush.msra.mxu0 %v4400
    %v4402 = vand.u32 %v543, 4294901760
    %4403 = vmatpush.msra.mxu0 %v4402
    %v4404 = vand.u32 %v536, 4294901760
    %4405 = vmatpush.msra.mxu0 %v4404
    %v4406 = vand.u32 %v529, 4294901760
    %4407 = vmatpush.msra.mxu0 %v4406
    %v4408 = vand.u32 %v522, 4294901760
    %4409 = vmatpush.msra.mxu0 %v4408
    %v4410 = vand.u32 %v515, 4294901760
    %4411 = vmatpush.msra.mxu0 %v4410
    %v4412 = vand.u32 %v508, 4294901760
    %4413 = vmatpush.msra.mxu0 %v4412
    %v4414 = vand.u32 %v390, 4294901760
    %v4415 = vsub.f32 %v390, %v4414
    %v4416 = vand.u32 %v4415, 4294901760
    %v4417 = vsub.f32 %v4415, %v4416
    %v4418 = vand.u32 %v4417, 4294901760
    %4419 = vmatmul.f32.gmra.mxu0 %v4418
    %v4420 = vpop.f32.mrf.mxu0
    %v4421 = vadd.f32 %v4380, %v4420
    %4422 = vdwg.mxu0
    %v4423 = vand.u32 %v613, 4294901760
    %v4424 = vsub.f32 %v613, %v4423
    %v4425 = vand.u32 %v4424, 4294901760
    %v4426 = vsub.f32 %v4424, %v4425
    %v4427 = vand.u32 %v4426, 4294901760
    %4428 = vmatpush.msra.mxu0 %v4427
    %v4429 = vand.u32 %v606, 4294901760
    %v4430 = vsub.f32 %v606, %v4429
    %v4431 = vand.u32 %v4430, 4294901760
    %v4432 = vsub.f32 %v4430, %v4431
    %v4433 = vand.u32 %v4432, 4294901760
    %4434 = vmatpush.msra.mxu0 %v4433
    %v4435 = vand.u32 %v599, 4294901760
    %v4436 = vsub.f32 %v599, %v4435
    %v4437 = vand.u32 %v4436, 4294901760
    %v4438 = vsub.f32 %v4436, %v4437
    %v4439 = vand.u32 %v4438, 4294901760
    %4440 = vmatpush.msra.mxu0 %v4439
    %v4441 = vand.u32 %v592, 4294901760
    %v4442 = vsub.f32 %v592, %v4441
    %v4443 = vand.u32 %v4442, 4294901760
    %v4444 = vsub.f32 %v4442, %v4443
    %v4445 = vand.u32 %v4444, 4294901760
    %4446 = vmatpush.msra.mxu0 %v4445
    %v4447 = vand.u32 %v585, 4294901760
    %v4448 = vsub.f32 %v585, %v4447
    %v4449 = vand.u32 %v4448, 4294901760
    %v4450 = vsub.f32 %v4448, %v4449
    %v4451 = vand.u32 %v4450, 4294901760
    %4452 = vmatpush.msra.mxu0 %v4451
    %v4453 = vand.u32 %v578, 4294901760
    %v4454 = vsub.f32 %v578, %v4453
    %v4455 = vand.u32 %v4454, 4294901760
    %v4456 = vsub.f32 %v4454, %v4455
    %v4457 = vand.u32 %v4456, 4294901760
    %4458 = vmatpush.msra.mxu0 %v4457
    %v4459 = vand.u32 %v571, 4294901760
    %v4460 = vsub.f32 %v571, %v4459
    %v4461 = vand.u32 %v4460, 4294901760
    %v4462 = vsub.f32 %v4460, %v4461
    %v4463 = vand.u32 %v4462, 4294901760
    %4464 = vmatpush.msra.mxu0 %v4463
    %v4465 = vand.u32 %v564, 4294901760
    %v4466 = vsub.f32 %v564, %v4465
    %v4467 = vand.u32 %v4466, 4294901760
    %v4468 = vsub.f32 %v4466, %v4467
    %v4469 = vand.u32 %v4468, 4294901760
    %4470 = vmatpush.msra.mxu0 %v4469
    %v4471 = vand.u32 %v557, 4294901760
    %v4472 = vsub.f32 %v557, %v4471
    %v4473 = vand.u32 %v4472, 4294901760
    %v4474 = vsub.f32 %v4472, %v4473
    %v4475 = vand.u32 %v4474, 4294901760
    %4476 = vmatpush.msra.mxu0 %v4475
    %v4477 = vand.u32 %v550, 4294901760
    %v4478 = vsub.f32 %v550, %v4477
    %v4479 = vand.u32 %v4478, 4294901760
    %v4480 = vsub.f32 %v4478, %v4479
    %v4481 = vand.u32 %v4480, 4294901760
    %4482 = vmatpush.msra.mxu0 %v4481
    %v4483 = vand.u32 %v543, 4294901760
    %v4484 = vsub.f32 %v543, %v4483
    %v4485 = vand.u32 %v4484, 4294901760
    %v4486 = vsub.f32 %v4484, %v4485
    %v4487 = vand.u32 %v4486, 4294901760
    %4488 = vmatpush.msra.mxu0 %v4487
    %v4489 = vand.u32 %v536, 4294901760
    %v4490 = vsub.f32 %v536, %v4489
    %v4491 = vand.u32 %v4490, 4294901760
    %v4492 = vsub.f32 %v4490, %v4491
    %v4493 = vand.u32 %v4492, 4294901760
    %4494 = vmatpush.msra.mxu0 %v4493
    %v4495 = vand.u32 %v529, 4294901760
    %v4496 = vsub.f32 %v529, %v4495
    %v4497 = vand.u32 %v4496, 4294901760
    %v4498 = vsub.f32 %v4496, %v4497
    %v4499 = vand.u32 %v4498, 4294901760
    %4500 = vmatpush.msra.mxu0 %v4499
    %v4501 = vand.u32 %v522, 4294901760
    %v4502 = vsub.f32 %v522, %v4501
    %v4503 = vand.u32 %v4502, 4294901760
    %v4504 = vsub.f32 %v4502, %v4503
    %v4505 = vand.u32 %v4504, 4294901760
    %4506 = vmatpush.msra.mxu0 %v4505
    %v4507 = vand.u32 %v515, 4294901760
    %v4508 = vsub.f32 %v515, %v4507
    %v4509 = vand.u32 %v4508, 4294901760
    %v4510 = vsub.f32 %v4508, %v4509
    %v4511 = vand.u32 %v4510, 4294901760
    %4512 = vmatpush.msra.mxu0 %v4511
    %v4513 = vand.u32 %v508, 4294901760
    %v4514 = vsub.f32 %v508, %v4513
    %v4515 = vand.u32 %v4514, 4294901760
    %v4516 = vsub.f32 %v4514, %v4515
    %v4517 = vand.u32 %v4516, 4294901760
    %4518 = vmatpush.msra.mxu0 %v4517
    %v4519 = vand.u32 %v390, 4294901760
    %4520 = vmatmul.f32.gmra.mxu0 %v4519
    %v4521 = vpop.f32.mrf.mxu0
    %v4522 = vadd.f32 %v4421, %v4521
    %4523 = vdwg.mxu0
    %v4524 = vand.u32 %v613, 4294901760
    %v4525 = vsub.f32 %v613, %v4524
    %4526 = vmatpush.msra.mxu0 %v4525
    %v4527 = vand.u32 %v606, 4294901760
    %v4528 = vsub.f32 %v606, %v4527
    %4529 = vmatpush.msra.mxu0 %v4528
    %v4530 = vand.u32 %v599, 4294901760
    %v4531 = vsub.f32 %v599, %v4530
    %4532 = vmatpush.msra.mxu0 %v4531
    %v4533 = vand.u32 %v592, 4294901760
    %v4534 = vsub.f32 %v592, %v4533
    %4535 = vmatpush.msra.mxu0 %v4534
    %v4536 = vand.u32 %v585, 4294901760
    %v4537 = vsub.f32 %v585, %v4536
    %4538 = vmatpush.msra.mxu0 %v4537
    %v4539 = vand.u32 %v578, 4294901760
    %v4540 = vsub.f32 %v578, %v4539
    %4541 = vmatpush.msra.mxu0 %v4540
    %v4542 = vand.u32 %v571, 4294901760
    %v4543 = vsub.f32 %v571, %v4542
    %4544 = vmatpush.msra.mxu0 %v4543
    %v4545 = vand.u32 %v564, 4294901760
    %v4546 = vsub.f32 %v564, %v4545
    %4547 = vmatpush.msra.mxu0 %v4546
    %v4548 = vand.u32 %v557, 4294901760
    %v4549 = vsub.f32 %v557, %v4548
    %4550 = vmatpush.msra.mxu0 %v4549
    %v4551 = vand.u32 %v550, 4294901760
    %v4552 = vsub.f32 %v550, %v4551
    %4553 = vmatpush.msra.mxu0 %v4552
    %v4554 = vand.u32 %v543, 4294901760
    %v4555 = vsub.f32 %v543, %v4554
    %4556 = vmatpush.msra.mxu0 %v4555
    %v4557 = vand.u32 %v536, 4294901760
    %v4558 = vsub.f32 %v536, %v4557
    %4559 = vmatpush.msra.mxu0 %v4558
    %v4560 = vand.u32 %v529, 4294901760
    %v4561 = vsub.f32 %v529, %v4560
    %4562 = vmatpush.msra.mxu0 %v4561
    %v4563 = vand.u32 %v522, 4294901760
    %v4564 = vsub.f32 %v522, %v4563
    %4565 = vmatpush.msra.mxu0 %v4564
    %v4566 = vand.u32 %v515, 4294901760
    %v4567 = vsub.f32 %v515, %v4566
    %4568 = vmatpush.msra.mxu0 %v4567
    %v4569 = vand.u32 %v508, 4294901760
    %v4570 = vsub.f32 %v508, %v4569
    %4571 = vmatpush.msra.mxu0 %v4570
    %v4572 = vand.u32 %v390, 4294901760
    %v4573 = vsub.f32 %v390, %v4572
    %4574 = vmatmul.f32.gmra.mxu0 %v4573
    %v4575 = vpop.f32.mrf.mxu0
    %v4576 = vadd.f32 %v4522, %v4575
    %4577 = vdwg.mxu0
    %v4578 = vand.u32 %v613, 4294901760
    %4579 = vmatpush.msra.mxu0 %v4578
    %v4580 = vand.u32 %v606, 4294901760
    %4581 = vmatpush.msra.mxu0 %v4580
    %v4582 = vand.u32 %v599, 4294901760
    %4583 = vmatpush.msra.mxu0 %v4582
    %v4584 = vand.u32 %v592, 4294901760
    %4585 = vmatpush.msra.mxu0 %v4584
    %v4586 = vand.u32 %v585, 4294901760
    %4587 = vmatpush.msra.mxu0 %v4586
    %v4588 = vand.u32 %v578, 4294901760
    %4589 = vmatpush.msra.mxu0 %v4588
    %v4590 = vand.u32 %v571, 4294901760
    %4591 = vmatpush.msra.mxu0 %v4590
    %v4592 = vand.u32 %v564, 4294901760
    %4593 = vmatpush.msra.mxu0 %v4592
    %v4594 = vand.u32 %v557, 4294901760
    %4595 = vmatpush.msra.mxu0 %v4594
    %v4596 = vand.u32 %v550, 4294901760
    %4597 = vmatpush.msra.mxu0 %v4596
    %v4598 = vand.u32 %v543, 4294901760
    %4599 = vmatpush.msra.mxu0 %v4598
    %v4600 = vand.u32 %v536, 4294901760
    %4601 = vmatpush.msra.mxu0 %v4600
    %v4602 = vand.u32 %v529, 4294901760
    %4603 = vmatpush.msra.mxu0 %v4602
    %v4604 = vand.u32 %v522, 4294901760
    %4605 = vmatpush.msra.mxu0 %v4604
    %v4606 = vand.u32 %v515, 4294901760
    %4607 = vmatpush.msra.mxu0 %v4606
    %v4608 = vand.u32 %v508, 4294901760
    %4609 = vmatpush.msra.mxu0 %v4608
    %v4610 = vand.u32 %v390, 4294901760
    %v4611 = vsub.f32 %v390, %v4610
    %v4612 = vand.u32 %v4611, 4294901760
    %4613 = vmatmul.f32.gmra.mxu0 %v4612
    %v4614 = vpop.f32.mrf.mxu0
    %v4615 = vadd.f32 %v4576, %v4614
    %4616 = vdwg.mxu0
    %v4617 = vand.u32 %v613, 4294901760
    %v4618 = vsub.f32 %v613, %v4617
    %v4619 = vand.u32 %v4618, 4294901760
    %4620 = vmatpush.msra.mxu0 %v4619
    %v4621 = vand.u32 %v606, 4294901760
    %v4622 = vsub.f32 %v606, %v4621
    %v4623 = vand.u32 %v4622, 4294901760
    %4624 = vmatpush.msra.mxu0 %v4623
    %v4625 = vand.u32 %v599, 4294901760
    %v4626 = vsub.f32 %v599, %v4625
    %v4627 = vand.u32 %v4626, 4294901760
    %4628 = vmatpush.msra.mxu0 %v4627
    %v4629 = vand.u32 %v592, 4294901760
    %v4630 = vsub.f32 %v592, %v4629
    %v4631 = vand.u32 %v4630, 4294901760
    %4632 = vmatpush.msra.mxu0 %v4631
    %v4633 = vand.u32 %v585, 4294901760
    %v4634 = vsub.f32 %v585, %v4633
    %v4635 = vand.u32 %v4634, 4294901760
    %4636 = vmatpush.msra.mxu0 %v4635
    %v4637 = vand.u32 %v578, 4294901760
    %v4638 = vsub.f32 %v578, %v4637
    %v4639 = vand.u32 %v4638, 4294901760
    %4640 = vmatpush.msra.mxu0 %v4639
    %v4641 = vand.u32 %v571, 4294901760
    %v4642 = vsub.f32 %v571, %v4641
    %v4643 = vand.u32 %v4642, 4294901760
    %4644 = vmatpush.msra.mxu0 %v4643
    %v4645 = vand.u32 %v564, 4294901760
    %v4646 = vsub.f32 %v564, %v4645
    %v4647 = vand.u32 %v4646, 4294901760
    %4648 = vmatpush.msra.mxu0 %v4647
    %v4649 = vand.u32 %v557, 4294901760
    %v4650 = vsub.f32 %v557, %v4649
    %v4651 = vand.u32 %v4650, 4294901760
    %4652 = vmatpush.msra.mxu0 %v4651
    %v4653 = vand.u32 %v550, 4294901760
    %v4654 = vsub.f32 %v550, %v4653
    %v4655 = vand.u32 %v4654, 4294901760
    %4656 = vmatpush.msra.mxu0 %v4655
    %v4657 = vand.u32 %v543, 4294901760
    %v4658 = vsub.f32 %v543, %v4657
    %v4659 = vand.u32 %v4658, 4294901760
    %4660 = vmatpush.msra.mxu0 %v4659
    %v4661 = vand.u32 %v536, 4294901760
    %v4662 = vsub.f32 %v536, %v4661
    %v4663 = vand.u32 %v4662, 4294901760
    %4664 = vmatpush.msra.mxu0 %v4663
    %v4665 = vand.u32 %v529, 4294901760
    %v4666 = vsub.f32 %v529, %v4665
    %v4667 = vand.u32 %v4666, 4294901760
    %4668 = vmatpush.msra.mxu0 %v4667
    %v4669 = vand.u32 %v522, 4294901760
    %v4670 = vsub.f32 %v522, %v4669
    %v4671 = vand.u32 %v4670, 4294901760
    %4672 = vmatpush.msra.mxu0 %v4671
    %v4673 = vand.u32 %v515, 4294901760
    %v4674 = vsub.f32 %v515, %v4673
    %v4675 = vand.u32 %v4674, 4294901760
    %4676 = vmatpush.msra.mxu0 %v4675
    %v4677 = vand.u32 %v508, 4294901760
    %v4678 = vsub.f32 %v508, %v4677
    %v4679 = vand.u32 %v4678, 4294901760
    %4680 = vmatpush.msra.mxu0 %v4679
    %v4681 = vand.u32 %v390, 4294901760
    %4682 = vmatmul.f32.gmra.mxu0 %v4681
    %v4683 = vpop.f32.mrf.mxu0
    %v4684 = vadd.f32 %v4615, %v4683
    %4685 = vdwg.mxu0
    %v4686 = vand.u32 %v613, 4294901760
    %4687 = vmatpush.msra.mxu0 %v4686
    %v4688 = vand.u32 %v606, 4294901760
    %4689 = vmatpush.msra.mxu0 %v4688
    %v4690 = vand.u32 %v599, 4294901760
    %4691 = vmatpush.msra.mxu0 %v4690
    %v4692 = vand.u32 %v592, 4294901760
    %4693 = vmatpush.msra.mxu0 %v4692
    %v4694 = vand.u32 %v585, 4294901760
    %4695 = vmatpush.msra.mxu0 %v4694
    %v4696 = vand.u32 %v578, 4294901760
    %4697 = vmatpush.msra.mxu0 %v4696
    %v4698 = vand.u32 %v571, 4294901760
    %4699 = vmatpush.msra.mxu0 %v4698
    %v4700 = vand.u32 %v564, 4294901760
    %4701 = vmatpush.msra.mxu0 %v4700
    %v4702 = vand.u32 %v557, 4294901760
    %4703 = vmatpush.msra.mxu0 %v4702
    %v4704 = vand.u32 %v550, 4294901760
    %4705 = vmatpush.msra.mxu0 %v4704
    %v4706 = vand.u32 %v543, 4294901760
    %4707 = vmatpush.msra.mxu0 %v4706
    %v4708 = vand.u32 %v536, 4294901760
    %4709 = vmatpush.msra.mxu0 %v4708
    %v4710 = vand.u32 %v529, 4294901760
    %4711 = vmatpush.msra.mxu0 %v4710
    %v4712 = vand.u32 %v522, 4294901760
    %4713 = vmatpush.msra.mxu0 %v4712
    %v4714 = vand.u32 %v515, 4294901760
    %4715 = vmatpush.msra.mxu0 %v4714
    %v4716 = vand.u32 %v508, 4294901760
    %4717 = vmatpush.msra.mxu0 %v4716
    %v4718 = vand.u32 %v390, 4294901760
    %4719 = vmatmul.f32.gmra.mxu0 %v4718
    %v4720 = vpop.f32.mrf.mxu0
    %v4721 = vadd.f32 %v4684, %v4720
    %4722 = vdwg.mxu0
    %v4723 = vand.u32 %v502, 4294901760
    %4724 = vmatpush.msra.mxu0 %v4723
    %v4725 = vand.u32 %v495, 4294901760
    %4726 = vmatpush.msra.mxu0 %v4725
    %v4727 = vand.u32 %v488, 4294901760
    %4728 = vmatpush.msra.mxu0 %v4727
    %v4729 = vand.u32 %v481, 4294901760
    %4730 = vmatpush.msra.mxu0 %v4729
    %v4731 = vand.u32 %v474, 4294901760
    %4732 = vmatpush.msra.mxu0 %v4731
    %v4733 = vand.u32 %v467, 4294901760
    %4734 = vmatpush.msra.mxu0 %v4733
    %v4735 = vand.u32 %v460, 4294901760
    %4736 = vmatpush.msra.mxu0 %v4735
    %v4737 = vand.u32 %v453, 4294901760
    %4738 = vmatpush.msra.mxu0 %v4737
    %v4739 = vand.u32 %v446, 4294901760
    %4740 = vmatpush.msra.mxu0 %v4739
    %v4741 = vand.u32 %v439, 4294901760
    %4742 = vmatpush.msra.mxu0 %v4741
    %v4743 = vand.u32 %v432, 4294901760
    %4744 = vmatpush.msra.mxu0 %v4743
    %v4745 = vand.u32 %v425, 4294901760
    %4746 = vmatpush.msra.mxu0 %v4745
    %v4747 = vand.u32 %v418, 4294901760
    %4748 = vmatpush.msra.mxu0 %v4747
    %v4749 = vand.u32 %v411, 4294901760
    %4750 = vmatpush.msra.mxu0 %v4749
    %v4751 = vand.u32 %v404, 4294901760
    %4752 = vmatpush.msra.mxu0 %v4751
    %v4753 = vand.u32 %v397, 4294901760
    %4754 = vmatpush.msra.mxu0 %v4753
    %v4755 = vand.u32 %v389, 4294901760
    %v4756 = vsub.f32 %v389, %v4755
    %v4757 = vand.u32 %v4756, 4294901760
    %v4758 = vsub.f32 %v4756, %v4757
    %v4759 = vand.u32 %v4758, 4294901760
    %4760 = vmatmul.f32.gmra.mxu0 %v4759
    %v4761 = vpop.f32.mrf.mxu0
    %v4762 = vadd.f32 %v623, %v4761
    %4763 = vdwg.mxu0
    %v4764 = vand.u32 %v502, 4294901760
    %v4765 = vsub.f32 %v502, %v4764
    %v4766 = vand.u32 %v4765, 4294901760
    %v4767 = vsub.f32 %v4765, %v4766
    %v4768 = vand.u32 %v4767, 4294901760
    %4769 = vmatpush.msra.mxu0 %v4768
    %v4770 = vand.u32 %v495, 4294901760
    %v4771 = vsub.f32 %v495, %v4770
    %v4772 = vand.u32 %v4771, 4294901760
    %v4773 = vsub.f32 %v4771, %v4772
    %v4774 = vand.u32 %v4773, 4294901760
    %4775 = vmatpush.msra.mxu0 %v4774
    %v4776 = vand.u32 %v488, 4294901760
    %v4777 = vsub.f32 %v488, %v4776
    %v4778 = vand.u32 %v4777, 4294901760
    %v4779 = vsub.f32 %v4777, %v4778
    %v4780 = vand.u32 %v4779, 4294901760
    %4781 = vmatpush.msra.mxu0 %v4780
    %v4782 = vand.u32 %v481, 4294901760
    %v4783 = vsub.f32 %v481, %v4782
    %v4784 = vand.u32 %v4783, 4294901760
    %v4785 = vsub.f32 %v4783, %v4784
    %v4786 = vand.u32 %v4785, 4294901760
    %4787 = vmatpush.msra.mxu0 %v4786
    %v4788 = vand.u32 %v474, 4294901760
    %v4789 = vsub.f32 %v474, %v4788
    %v4790 = vand.u32 %v4789, 4294901760
    %v4791 = vsub.f32 %v4789, %v4790
    %v4792 = vand.u32 %v4791, 4294901760
    %4793 = vmatpush.msra.mxu0 %v4792
    %v4794 = vand.u32 %v467, 4294901760
    %v4795 = vsub.f32 %v467, %v4794
    %v4796 = vand.u32 %v4795, 4294901760
    %v4797 = vsub.f32 %v4795, %v4796
    %v4798 = vand.u32 %v4797, 4294901760
    %4799 = vmatpush.msra.mxu0 %v4798
    %v4800 = vand.u32 %v460, 4294901760
    %v4801 = vsub.f32 %v460, %v4800
    %v4802 = vand.u32 %v4801, 4294901760
    %v4803 = vsub.f32 %v4801, %v4802
    %v4804 = vand.u32 %v4803, 4294901760
    %4805 = vmatpush.msra.mxu0 %v4804
    %v4806 = vand.u32 %v453, 4294901760
    %v4807 = vsub.f32 %v453, %v4806
    %v4808 = vand.u32 %v4807, 4294901760
    %v4809 = vsub.f32 %v4807, %v4808
    %v4810 = vand.u32 %v4809, 4294901760
    %4811 = vmatpush.msra.mxu0 %v4810
    %v4812 = vand.u32 %v446, 4294901760
    %v4813 = vsub.f32 %v446, %v4812
    %v4814 = vand.u32 %v4813, 4294901760
    %v4815 = vsub.f32 %v4813, %v4814
    %v4816 = vand.u32 %v4815, 4294901760
    %4817 = vmatpush.msra.mxu0 %v4816
    %v4818 = vand.u32 %v439, 4294901760
    %v4819 = vsub.f32 %v439, %v4818
    %v4820 = vand.u32 %v4819, 4294901760
    %v4821 = vsub.f32 %v4819, %v4820
    %v4822 = vand.u32 %v4821, 4294901760
    %4823 = vmatpush.msra.mxu0 %v4822
    %v4824 = vand.u32 %v432, 4294901760
    %v4825 = vsub.f32 %v432, %v4824
    %v4826 = vand.u32 %v4825, 4294901760
    %v4827 = vsub.f32 %v4825, %v4826
    %v4828 = vand.u32 %v4827, 4294901760
    %4829 = vmatpush.msra.mxu0 %v4828
    %v4830 = vand.u32 %v425, 4294901760
    %v4831 = vsub.f32 %v425, %v4830
    %v4832 = vand.u32 %v4831, 4294901760
    %v4833 = vsub.f32 %v4831, %v4832
    %v4834 = vand.u32 %v4833, 4294901760
    %4835 = vmatpush.msra.mxu0 %v4834
    %v4836 = vand.u32 %v418, 4294901760
    %v4837 = vsub.f32 %v418, %v4836
    %v4838 = vand.u32 %v4837, 4294901760
    %v4839 = vsub.f32 %v4837, %v4838
    %v4840 = vand.u32 %v4839, 4294901760
    %4841 = vmatpush.msra.mxu0 %v4840
    %v4842 = vand.u32 %v411, 4294901760
    %v4843 = vsub.f32 %v411, %v4842
    %v4844 = vand.u32 %v4843, 4294901760
    %v4845 = vsub.f32 %v4843, %v4844
    %v4846 = vand.u32 %v4845, 4294901760
    %4847 = vmatpush.msra.mxu0 %v4846
    %v4848 = vand.u32 %v404, 4294901760
    %v4849 = vsub.f32 %v404, %v4848
    %v4850 = vand.u32 %v4849, 4294901760
    %v4851 = vsub.f32 %v4849, %v4850
    %v4852 = vand.u32 %v4851, 4294901760
    %4853 = vmatpush.msra.mxu0 %v4852
    %v4854 = vand.u32 %v397, 4294901760
    %v4855 = vsub.f32 %v397, %v4854
    %v4856 = vand.u32 %v4855, 4294901760
    %v4857 = vsub.f32 %v4855, %v4856
    %v4858 = vand.u32 %v4857, 4294901760
    %4859 = vmatpush.msra.mxu0 %v4858
    %v4860 = vand.u32 %v389, 4294901760
    %4861 = vmatmul.f32.gmra.mxu0 %v4860
    %v4862 = vpop.f32.mrf.mxu0
    %v4863 = vadd.f32 %v4762, %v4862
    %4864 = vdwg.mxu0
    %v4865 = vand.u32 %v502, 4294901760
    %v4866 = vsub.f32 %v502, %v4865
    %4867 = vmatpush.msra.mxu0 %v4866
    %v4868 = vand.u32 %v495, 4294901760
    %v4869 = vsub.f32 %v495, %v4868
    %4870 = vmatpush.msra.mxu0 %v4869
    %v4871 = vand.u32 %v488, 4294901760
    %v4872 = vsub.f32 %v488, %v4871
    %4873 = vmatpush.msra.mxu0 %v4872
    %v4874 = vand.u32 %v481, 4294901760
    %v4875 = vsub.f32 %v481, %v4874
    %4876 = vmatpush.msra.mxu0 %v4875
    %v4877 = vand.u32 %v474, 4294901760
    %v4878 = vsub.f32 %v474, %v4877
    %4879 = vmatpush.msra.mxu0 %v4878
    %v4880 = vand.u32 %v467, 4294901760
    %v4881 = vsub.f32 %v467, %v4880
    %4882 = vmatpush.msra.mxu0 %v4881
    %v4883 = vand.u32 %v460, 4294901760
    %v4884 = vsub.f32 %v460, %v4883
    %4885 = vmatpush.msra.mxu0 %v4884
    %v4886 = vand.u32 %v453, 4294901760
    %v4887 = vsub.f32 %v453, %v4886
    %4888 = vmatpush.msra.mxu0 %v4887
    %v4889 = vand.u32 %v446, 4294901760
    %v4890 = vsub.f32 %v446, %v4889
    %4891 = vmatpush.msra.mxu0 %v4890
    %v4892 = vand.u32 %v439, 4294901760
    %v4893 = vsub.f32 %v439, %v4892
    %4894 = vmatpush.msra.mxu0 %v4893
    %v4895 = vand.u32 %v432, 4294901760
    %v4896 = vsub.f32 %v432, %v4895
    %4897 = vmatpush.msra.mxu0 %v4896
    %v4898 = vand.u32 %v425, 4294901760
    %v4899 = vsub.f32 %v425, %v4898
    %4900 = vmatpush.msra.mxu0 %v4899
    %v4901 = vand.u32 %v418, 4294901760
    %v4902 = vsub.f32 %v418, %v4901
    %4903 = vmatpush.msra.mxu0 %v4902
    %v4904 = vand.u32 %v411, 4294901760
    %v4905 = vsub.f32 %v411, %v4904
    %4906 = vmatpush.msra.mxu0 %v4905
    %v4907 = vand.u32 %v404, 4294901760
    %v4908 = vsub.f32 %v404, %v4907
    %4909 = vmatpush.msra.mxu0 %v4908
    %v4910 = vand.u32 %v397, 4294901760
    %v4911 = vsub.f32 %v397, %v4910
    %4912 = vmatpush.msra.mxu0 %v4911
    %v4913 = vand.u32 %v389, 4294901760
    %v4914 = vsub.f32 %v389, %v4913
    %4915 = vmatmul.f32.gmra.mxu0 %v4914
    %v4916 = vpop.f32.mrf.mxu0
    %v4917 = vadd.f32 %v4863, %v4916
    %4918 = vdwg.mxu0
    %v4919 = vand.u32 %v502, 4294901760
    %4920 = vmatpush.msra.mxu0 %v4919
    %v4921 = vand.u32 %v495, 4294901760
    %4922 = vmatpush.msra.mxu0 %v4921
    %v4923 = vand.u32 %v488, 4294901760
    %4924 = vmatpush.msra.mxu0 %v4923
    %v4925 = vand.u32 %v481, 4294901760
    %4926 = vmatpush.msra.mxu0 %v4925
    %v4927 = vand.u32 %v474, 4294901760
    %4928 = vmatpush.msra.mxu0 %v4927
    %v4929 = vand.u32 %v467, 4294901760
    %4930 = vmatpush.msra.mxu0 %v4929
    %v4931 = vand.u32 %v460, 4294901760
    %4932 = vmatpush.msra.mxu0 %v4931
    %v4933 = vand.u32 %v453, 4294901760
    %4934 = vmatpush.msra.mxu0 %v4933
    %v4935 = vand.u32 %v446, 4294901760
    %4936 = vmatpush.msra.mxu0 %v4935
    %v4937 = vand.u32 %v439, 4294901760
    %4938 = vmatpush.msra.mxu0 %v4937
    %v4939 = vand.u32 %v432, 4294901760
    %4940 = vmatpush.msra.mxu0 %v4939
    %v4941 = vand.u32 %v425, 4294901760
    %4942 = vmatpush.msra.mxu0 %v4941
    %v4943 = vand.u32 %v418, 4294901760
    %4944 = vmatpush.msra.mxu0 %v4943
    %v4945 = vand.u32 %v411, 4294901760
    %4946 = vmatpush.msra.mxu0 %v4945
    %v4947 = vand.u32 %v404, 4294901760
    %4948 = vmatpush.msra.mxu0 %v4947
    %v4949 = vand.u32 %v397, 4294901760
    %4950 = vmatpush.msra.mxu0 %v4949
    %v4951 = vand.u32 %v389, 4294901760
    %v4952 = vsub.f32 %v389, %v4951
    %v4953 = vand.u32 %v4952, 4294901760
    %4954 = vmatmul.f32.gmra.mxu0 %v4953
    %v4955 = vpop.f32.mrf.mxu0
    %v4956 = vadd.f32 %v4917, %v4955
    %4957 = vdwg.mxu0
    %v4958 = vand.u32 %v502, 4294901760
    %v4959 = vsub.f32 %v502, %v4958
    %v4960 = vand.u32 %v4959, 4294901760
    %4961 = vmatpush.msra.mxu0 %v4960
    %v4962 = vand.u32 %v495, 4294901760
    %v4963 = vsub.f32 %v495, %v4962
    %v4964 = vand.u32 %v4963, 4294901760
    %4965 = vmatpush.msra.mxu0 %v4964
    %v4966 = vand.u32 %v488, 4294901760
    %v4967 = vsub.f32 %v488, %v4966
    %v4968 = vand.u32 %v4967, 4294901760
    %4969 = vmatpush.msra.mxu0 %v4968
    %v4970 = vand.u32 %v481, 4294901760
    %v4971 = vsub.f32 %v481, %v4970
    %v4972 = vand.u32 %v4971, 4294901760
    %4973 = vmatpush.msra.mxu0 %v4972
    %v4974 = vand.u32 %v474, 4294901760
    %v4975 = vsub.f32 %v474, %v4974
    %v4976 = vand.u32 %v4975, 4294901760
    %4977 = vmatpush.msra.mxu0 %v4976
    %v4978 = vand.u32 %v467, 4294901760
    %v4979 = vsub.f32 %v467, %v4978
    %v4980 = vand.u32 %v4979, 4294901760
    %4981 = vmatpush.msra.mxu0 %v4980
    %v4982 = vand.u32 %v460, 4294901760
    %v4983 = vsub.f32 %v460, %v4982
    %v4984 = vand.u32 %v4983, 4294901760
    %4985 = vmatpush.msra.mxu0 %v4984
    %v4986 = vand.u32 %v453, 4294901760
    %v4987 = vsub.f32 %v453, %v4986
    %v4988 = vand.u32 %v4987, 4294901760
    %4989 = vmatpush.msra.mxu0 %v4988
    %v4990 = vand.u32 %v446, 4294901760
    %v4991 = vsub.f32 %v446, %v4990
    %v4992 = vand.u32 %v4991, 4294901760
    %4993 = vmatpush.msra.mxu0 %v4992
    %v4994 = vand.u32 %v439, 4294901760
    %v4995 = vsub.f32 %v439, %v4994
    %v4996 = vand.u32 %v4995, 4294901760
    %4997 = vmatpush.msra.mxu0 %v4996
    %v4998 = vand.u32 %v432, 4294901760
    %v4999 = vsub.f32 %v432, %v4998
    %v5000 = vand.u32 %v4999, 4294901760
    %5001 = vmatpush.msra.mxu0 %v5000
    %v5002 = vand.u32 %v425, 4294901760
    %v5003 = vsub.f32 %v425, %v5002
    %v5004 = vand.u32 %v5003, 4294901760
    %5005 = vmatpush.msra.mxu0 %v5004
    %v5006 = vand.u32 %v418, 4294901760
    %v5007 = vsub.f32 %v418, %v5006
    %v5008 = vand.u32 %v5007, 4294901760
    %5009 = vmatpush.msra.mxu0 %v5008
    %v5010 = vand.u32 %v411, 4294901760
    %v5011 = vsub.f32 %v411, %v5010
    %v5012 = vand.u32 %v5011, 4294901760
    %5013 = vmatpush.msra.mxu0 %v5012
    %v5014 = vand.u32 %v404, 4294901760
    %v5015 = vsub.f32 %v404, %v5014
    %v5016 = vand.u32 %v5015, 4294901760
    %5017 = vmatpush.msra.mxu0 %v5016
    %v5018 = vand.u32 %v397, 4294901760
    %v5019 = vsub.f32 %v397, %v5018
    %v5020 = vand.u32 %v5019, 4294901760
    %5021 = vmatpush.msra.mxu0 %v5020
    %v5022 = vand.u32 %v389, 4294901760
    %5023 = vmatmul.f32.gmra.mxu0 %v5022
    %v5024 = vpop.f32.mrf.mxu0
    %v5025 = vadd.f32 %v4956, %v5024
    %5026 = vdwg.mxu0
    %v5027 = vand.u32 %v502, 4294901760
    %5028 = vmatpush.msra.mxu0 %v5027
    %v5029 = vand.u32 %v495, 4294901760
    %5030 = vmatpush.msra.mxu0 %v5029
    %v5031 = vand.u32 %v488, 4294901760
    %5032 = vmatpush.msra.mxu0 %v5031
    %v5033 = vand.u32 %v481, 4294901760
    %5034 = vmatpush.msra.mxu0 %v5033
    %v5035 = vand.u32 %v474, 4294901760
    %5036 = vmatpush.msra.mxu0 %v5035
    %v5037 = vand.u32 %v467, 4294901760
    %5038 = vmatpush.msra.mxu0 %v5037
    %v5039 = vand.u32 %v460, 4294901760
    %5040 = vmatpush.msra.mxu0 %v5039
    %v5041 = vand.u32 %v453, 4294901760
    %5042 = vmatpush.msra.mxu0 %v5041
    %v5043 = vand.u32 %v446, 4294901760
    %5044 = vmatpush.msra.mxu0 %v5043
    %v5045 = vand.u32 %v439, 4294901760
    %5046 = vmatpush.msra.mxu0 %v5045
    %v5047 = vand.u32 %v432, 4294901760
    %5048 = vmatpush.msra.mxu0 %v5047
    %v5049 = vand.u32 %v425, 4294901760
    %5050 = vmatpush.msra.mxu0 %v5049
    %v5051 = vand.u32 %v418, 4294901760
    %5052 = vmatpush.msra.mxu0 %v5051
    %v5053 = vand.u32 %v411, 4294901760
    %5054 = vmatpush.msra.mxu0 %v5053
    %v5055 = vand.u32 %v404, 4294901760
    %5056 = vmatpush.msra.mxu0 %v5055
    %v5057 = vand.u32 %v397, 4294901760
    %5058 = vmatpush.msra.mxu0 %v5057
    %v5059 = vand.u32 %v389, 4294901760
    %5060 = vmatmul.f32.gmra.mxu0 %v5059
    %v5061 = vpop.f32.mrf.mxu0
    %v5062 = vadd.f32 %v5025, %v5061
    %5063 = vdwg.mxu0
    %v5064 = vand.u32 %v614, 4294901760
    %5065 = vmatpush.msra.mxu0 %v5064
    %v5066 = vand.u32 %v607, 4294901760
    %5067 = vmatpush.msra.mxu0 %v5066
    %v5068 = vand.u32 %v600, 4294901760
    %5069 = vmatpush.msra.mxu0 %v5068
    %v5070 = vand.u32 %v593, 4294901760
    %5071 = vmatpush.msra.mxu0 %v5070
    %v5072 = vand.u32 %v586, 4294901760
    %5073 = vmatpush.msra.mxu0 %v5072
    %v5074 = vand.u32 %v579, 4294901760
    %5075 = vmatpush.msra.mxu0 %v5074
    %v5076 = vand.u32 %v572, 4294901760
    %5077 = vmatpush.msra.mxu0 %v5076
    %v5078 = vand.u32 %v565, 4294901760
    %5079 = vmatpush.msra.mxu0 %v5078
    %v5080 = vand.u32 %v558, 4294901760
    %5081 = vmatpush.msra.mxu0 %v5080
    %v5082 = vand.u32 %v551, 4294901760
    %5083 = vmatpush.msra.mxu0 %v5082
    %v5084 = vand.u32 %v544, 4294901760
    %5085 = vmatpush.msra.mxu0 %v5084
    %v5086 = vand.u32 %v537, 4294901760
    %5087 = vmatpush.msra.mxu0 %v5086
    %v5088 = vand.u32 %v530, 4294901760
    %5089 = vmatpush.msra.mxu0 %v5088
    %v5090 = vand.u32 %v523, 4294901760
    %5091 = vmatpush.msra.mxu0 %v5090
    %v5092 = vand.u32 %v516, 4294901760
    %5093 = vmatpush.msra.mxu0 %v5092
    %v5094 = vand.u32 %v509, 4294901760
    %5095 = vmatpush.msra.mxu0 %v5094
    %v5096 = vand.u32 %v390, 4294901760
    %v5097 = vsub.f32 %v390, %v5096
    %v5098 = vand.u32 %v5097, 4294901760
    %v5099 = vsub.f32 %v5097, %v5098
    %v5100 = vand.u32 %v5099, 4294901760
    %5101 = vmatmul.f32.gmra.mxu0 %v5100
    %v5102 = vpop.f32.mrf.mxu0
    %v5103 = vadd.f32 %v5062, %v5102
    %5104 = vdwg.mxu0
    %v5105 = vand.u32 %v614, 4294901760
    %v5106 = vsub.f32 %v614, %v5105
    %v5107 = vand.u32 %v5106, 4294901760
    %v5108 = vsub.f32 %v5106, %v5107
    %v5109 = vand.u32 %v5108, 4294901760
    %5110 = vmatpush.msra.mxu0 %v5109
    %v5111 = vand.u32 %v607, 4294901760
    %v5112 = vsub.f32 %v607, %v5111
    %v5113 = vand.u32 %v5112, 4294901760
    %v5114 = vsub.f32 %v5112, %v5113
    %v5115 = vand.u32 %v5114, 4294901760
    %5116 = vmatpush.msra.mxu0 %v5115
    %v5117 = vand.u32 %v600, 4294901760
    %v5118 = vsub.f32 %v600, %v5117
    %v5119 = vand.u32 %v5118, 4294901760
    %v5120 = vsub.f32 %v5118, %v5119
    %v5121 = vand.u32 %v5120, 4294901760
    %5122 = vmatpush.msra.mxu0 %v5121
    %v5123 = vand.u32 %v593, 4294901760
    %v5124 = vsub.f32 %v593, %v5123
    %v5125 = vand.u32 %v5124, 4294901760
    %v5126 = vsub.f32 %v5124, %v5125
    %v5127 = vand.u32 %v5126, 4294901760
    %5128 = vmatpush.msra.mxu0 %v5127
    %v5129 = vand.u32 %v586, 4294901760
    %v5130 = vsub.f32 %v586, %v5129
    %v5131 = vand.u32 %v5130, 4294901760
    %v5132 = vsub.f32 %v5130, %v5131
    %v5133 = vand.u32 %v5132, 4294901760
    %5134 = vmatpush.msra.mxu0 %v5133
    %v5135 = vand.u32 %v579, 4294901760
    %v5136 = vsub.f32 %v579, %v5135
    %v5137 = vand.u32 %v5136, 4294901760
    %v5138 = vsub.f32 %v5136, %v5137
    %v5139 = vand.u32 %v5138, 4294901760
    %5140 = vmatpush.msra.mxu0 %v5139
    %v5141 = vand.u32 %v572, 4294901760
    %v5142 = vsub.f32 %v572, %v5141
    %v5143 = vand.u32 %v5142, 4294901760
    %v5144 = vsub.f32 %v5142, %v5143
    %v5145 = vand.u32 %v5144, 4294901760
    %5146 = vmatpush.msra.mxu0 %v5145
    %v5147 = vand.u32 %v565, 4294901760
    %v5148 = vsub.f32 %v565, %v5147
    %v5149 = vand.u32 %v5148, 4294901760
    %v5150 = vsub.f32 %v5148, %v5149
    %v5151 = vand.u32 %v5150, 4294901760
    %5152 = vmatpush.msra.mxu0 %v5151
    %v5153 = vand.u32 %v558, 4294901760
    %v5154 = vsub.f32 %v558, %v5153
    %v5155 = vand.u32 %v5154, 4294901760
    %v5156 = vsub.f32 %v5154, %v5155
    %v5157 = vand.u32 %v5156, 4294901760
    %5158 = vmatpush.msra.mxu0 %v5157
    %v5159 = vand.u32 %v551, 4294901760
    %v5160 = vsub.f32 %v551, %v5159
    %v5161 = vand.u32 %v5160, 4294901760
    %v5162 = vsub.f32 %v5160, %v5161
    %v5163 = vand.u32 %v5162, 4294901760
    %5164 = vmatpush.msra.mxu0 %v5163
    %v5165 = vand.u32 %v544, 4294901760
    %v5166 = vsub.f32 %v544, %v5165
    %v5167 = vand.u32 %v5166, 4294901760
    %v5168 = vsub.f32 %v5166, %v5167
    %v5169 = vand.u32 %v5168, 4294901760
    %5170 = vmatpush.msra.mxu0 %v5169
    %v5171 = vand.u32 %v537, 4294901760
    %v5172 = vsub.f32 %v537, %v5171
    %v5173 = vand.u32 %v5172, 4294901760
    %v5174 = vsub.f32 %v5172, %v5173
    %v5175 = vand.u32 %v5174, 4294901760
    %5176 = vmatpush.msra.mxu0 %v5175
    %v5177 = vand.u32 %v530, 4294901760
    %v5178 = vsub.f32 %v530, %v5177
    %v5179 = vand.u32 %v5178, 4294901760
    %v5180 = vsub.f32 %v5178, %v5179
    %v5181 = vand.u32 %v5180, 4294901760
    %5182 = vmatpush.msra.mxu0 %v5181
    %v5183 = vand.u32 %v523, 4294901760
    %v5184 = vsub.f32 %v523, %v5183
    %v5185 = vand.u32 %v5184, 4294901760
    %v5186 = vsub.f32 %v5184, %v5185
    %v5187 = vand.u32 %v5186, 4294901760
    %5188 = vmatpush.msra.mxu0 %v5187
    %v5189 = vand.u32 %v516, 4294901760
    %v5190 = vsub.f32 %v516, %v5189
    %v5191 = vand.u32 %v5190, 4294901760
    %v5192 = vsub.f32 %v5190, %v5191
    %v5193 = vand.u32 %v5192, 4294901760
    %5194 = vmatpush.msra.mxu0 %v5193
    %v5195 = vand.u32 %v509, 4294901760
    %v5196 = vsub.f32 %v509, %v5195
    %v5197 = vand.u32 %v5196, 4294901760
    %v5198 = vsub.f32 %v5196, %v5197
    %v5199 = vand.u32 %v5198, 4294901760
    %5200 = vmatpush.msra.mxu0 %v5199
    %v5201 = vand.u32 %v390, 4294901760
    %5202 = vmatmul.f32.gmra.mxu0 %v5201
    %v5203 = vpop.f32.mrf.mxu0
    %v5204 = vadd.f32 %v5103, %v5203
    %5205 = vdwg.mxu0
    %v5206 = vand.u32 %v614, 4294901760
    %v5207 = vsub.f32 %v614, %v5206
    %5208 = vmatpush.msra.mxu0 %v5207
    %v5209 = vand.u32 %v607, 4294901760
    %v5210 = vsub.f32 %v607, %v5209
    %5211 = vmatpush.msra.mxu0 %v5210
    %v5212 = vand.u32 %v600, 4294901760
    %v5213 = vsub.f32 %v600, %v5212
    %5214 = vmatpush.msra.mxu0 %v5213
    %v5215 = vand.u32 %v593, 4294901760
    %v5216 = vsub.f32 %v593, %v5215
    %5217 = vmatpush.msra.mxu0 %v5216
    %v5218 = vand.u32 %v586, 4294901760
    %v5219 = vsub.f32 %v586, %v5218
    %5220 = vmatpush.msra.mxu0 %v5219
    %v5221 = vand.u32 %v579, 4294901760
    %v5222 = vsub.f32 %v579, %v5221
    %5223 = vmatpush.msra.mxu0 %v5222
    %v5224 = vand.u32 %v572, 4294901760
    %v5225 = vsub.f32 %v572, %v5224
    %5226 = vmatpush.msra.mxu0 %v5225
    %v5227 = vand.u32 %v565, 4294901760
    %v5228 = vsub.f32 %v565, %v5227
    %5229 = vmatpush.msra.mxu0 %v5228
    %v5230 = vand.u32 %v558, 4294901760
    %v5231 = vsub.f32 %v558, %v5230
    %5232 = vmatpush.msra.mxu0 %v5231
    %v5233 = vand.u32 %v551, 4294901760
    %v5234 = vsub.f32 %v551, %v5233
    %5235 = vmatpush.msra.mxu0 %v5234
    %v5236 = vand.u32 %v544, 4294901760
    %v5237 = vsub.f32 %v544, %v5236
    %5238 = vmatpush.msra.mxu0 %v5237
    %v5239 = vand.u32 %v537, 4294901760
    %v5240 = vsub.f32 %v537, %v5239
    %5241 = vmatpush.msra.mxu0 %v5240
    %v5242 = vand.u32 %v530, 4294901760
    %v5243 = vsub.f32 %v530, %v5242
    %5244 = vmatpush.msra.mxu0 %v5243
    %v5245 = vand.u32 %v523, 4294901760
    %v5246 = vsub.f32 %v523, %v5245
    %5247 = vmatpush.msra.mxu0 %v5246
    %v5248 = vand.u32 %v516, 4294901760
    %v5249 = vsub.f32 %v516, %v5248
    %5250 = vmatpush.msra.mxu0 %v5249
    %v5251 = vand.u32 %v509, 4294901760
    %v5252 = vsub.f32 %v509, %v5251
    %5253 = vmatpush.msra.mxu0 %v5252
    %v5254 = vand.u32 %v390, 4294901760
    %v5255 = vsub.f32 %v390, %v5254
    %5256 = vmatmul.f32.gmra.mxu0 %v5255
    %v5257 = vpop.f32.mrf.mxu0
    %v5258 = vadd.f32 %v5204, %v5257
    %5259 = vdwg.mxu0
    %v5260 = vand.u32 %v614, 4294901760
    %5261 = vmatpush.msra.mxu0 %v5260
    %v5262 = vand.u32 %v607, 4294901760
    %5263 = vmatpush.msra.mxu0 %v5262
    %v5264 = vand.u32 %v600, 4294901760
    %5265 = vmatpush.msra.mxu0 %v5264
    %v5266 = vand.u32 %v593, 4294901760
    %5267 = vmatpush.msra.mxu0 %v5266
    %v5268 = vand.u32 %v586, 4294901760
    %5269 = vmatpush.msra.mxu0 %v5268
    %v5270 = vand.u32 %v579, 4294901760
    %5271 = vmatpush.msra.mxu0 %v5270
    %v5272 = vand.u32 %v572, 4294901760
    %5273 = vmatpush.msra.mxu0 %v5272
    %v5274 = vand.u32 %v565, 4294901760
    %5275 = vmatpush.msra.mxu0 %v5274
    %v5276 = vand.u32 %v558, 4294901760
    %5277 = vmatpush.msra.mxu0 %v5276
    %v5278 = vand.u32 %v551, 4294901760
    %5279 = vmatpush.msra.mxu0 %v5278
    %v5280 = vand.u32 %v544, 4294901760
    %5281 = vmatpush.msra.mxu0 %v5280
    %v5282 = vand.u32 %v537, 4294901760
    %5283 = vmatpush.msra.mxu0 %v5282
    %v5284 = vand.u32 %v530, 4294901760
    %5285 = vmatpush.msra.mxu0 %v5284
    %v5286 = vand.u32 %v523, 4294901760
    %5287 = vmatpush.msra.mxu0 %v5286
    %v5288 = vand.u32 %v516, 4294901760
    %5289 = vmatpush.msra.mxu0 %v5288
    %v5290 = vand.u32 %v509, 4294901760
    %5291 = vmatpush.msra.mxu0 %v5290
    %v5292 = vand.u32 %v390, 4294901760
    %v5293 = vsub.f32 %v390, %v5292
    %v5294 = vand.u32 %v5293, 4294901760
    %5295 = vmatmul.f32.gmra.mxu0 %v5294
    %v5296 = vpop.f32.mrf.mxu0
    %v5297 = vadd.f32 %v5258, %v5296
    %5298 = vdwg.mxu0
    %v5299 = vand.u32 %v614, 4294901760
    %v5300 = vsub.f32 %v614, %v5299
    %v5301 = vand.u32 %v5300, 4294901760
    %5302 = vmatpush.msra.mxu0 %v5301
    %v5303 = vand.u32 %v607, 4294901760
    %v5304 = vsub.f32 %v607, %v5303
    %v5305 = vand.u32 %v5304, 4294901760
    %5306 = vmatpush.msra.mxu0 %v5305
    %v5307 = vand.u32 %v600, 4294901760
    %v5308 = vsub.f32 %v600, %v5307
    %v5309 = vand.u32 %v5308, 4294901760
    %5310 = vmatpush.msra.mxu0 %v5309
    %v5311 = vand.u32 %v593, 4294901760
    %v5312 = vsub.f32 %v593, %v5311
    %v5313 = vand.u32 %v5312, 4294901760
    %5314 = vmatpush.msra.mxu0 %v5313
    %v5315 = vand.u32 %v586, 4294901760
    %v5316 = vsub.f32 %v586, %v5315
    %v5317 = vand.u32 %v5316, 4294901760
    %5318 = vmatpush.msra.mxu0 %v5317
    %v5319 = vand.u32 %v579, 4294901760
    %v5320 = vsub.f32 %v579, %v5319
    %v5321 = vand.u32 %v5320, 4294901760
    %5322 = vmatpush.msra.mxu0 %v5321
    %v5323 = vand.u32 %v572, 4294901760
    %v5324 = vsub.f32 %v572, %v5323
    %v5325 = vand.u32 %v5324, 4294901760
    %5326 = vmatpush.msra.mxu0 %v5325
    %v5327 = vand.u32 %v565, 4294901760
    %v5328 = vsub.f32 %v565, %v5327
    %v5329 = vand.u32 %v5328, 4294901760
    %5330 = vmatpush.msra.mxu0 %v5329
    %v5331 = vand.u32 %v558, 4294901760
    %v5332 = vsub.f32 %v558, %v5331
    %v5333 = vand.u32 %v5332, 4294901760
    %5334 = vmatpush.msra.mxu0 %v5333
    %v5335 = vand.u32 %v551, 4294901760
    %v5336 = vsub.f32 %v551, %v5335
    %v5337 = vand.u32 %v5336, 4294901760
    %5338 = vmatpush.msra.mxu0 %v5337
    %v5339 = vand.u32 %v544, 4294901760
    %v5340 = vsub.f32 %v544, %v5339
    %v5341 = vand.u32 %v5340, 4294901760
    %5342 = vmatpush.msra.mxu0 %v5341
    %v5343 = vand.u32 %v537, 4294901760
    %v5344 = vsub.f32 %v537, %v5343
    %v5345 = vand.u32 %v5344, 4294901760
    %5346 = vmatpush.msra.mxu0 %v5345
    %v5347 = vand.u32 %v530, 4294901760
    %v5348 = vsub.f32 %v530, %v5347
    %v5349 = vand.u32 %v5348, 4294901760
    %5350 = vmatpush.msra.mxu0 %v5349
    %v5351 = vand.u32 %v523, 4294901760
    %v5352 = vsub.f32 %v523, %v5351
    %v5353 = vand.u32 %v5352, 4294901760
    %5354 = vmatpush.msra.mxu0 %v5353
    %v5355 = vand.u32 %v516, 4294901760
    %v5356 = vsub.f32 %v516, %v5355
    %v5357 = vand.u32 %v5356, 4294901760
    %5358 = vmatpush.msra.mxu0 %v5357
    %v5359 = vand.u32 %v509, 4294901760
    %v5360 = vsub.f32 %v509, %v5359
    %v5361 = vand.u32 %v5360, 4294901760
    %5362 = vmatpush.msra.mxu0 %v5361
    %v5363 = vand.u32 %v390, 4294901760
    %5364 = vmatmul.f32.gmra.mxu0 %v5363
    %v5365 = vpop.f32.mrf.mxu0
    %v5366 = vadd.f32 %v5297, %v5365
    %5367 = vdwg.mxu0
    %v5368 = vand.u32 %v614, 4294901760
    %5369 = vmatpush.msra.mxu0 %v5368
    %v5370 = vand.u32 %v607, 4294901760
    %5371 = vmatpush.msra.mxu0 %v5370
    %v5372 = vand.u32 %v600, 4294901760
    %5373 = vmatpush.msra.mxu0 %v5372
    %v5374 = vand.u32 %v593, 4294901760
    %5375 = vmatpush.msra.mxu0 %v5374
    %v5376 = vand.u32 %v586, 4294901760
    %5377 = vmatpush.msra.mxu0 %v5376
    %v5378 = vand.u32 %v579, 4294901760
    %5379 = vmatpush.msra.mxu0 %v5378
    %v5380 = vand.u32 %v572, 4294901760
    %5381 = vmatpush.msra.mxu0 %v5380
    %v5382 = vand.u32 %v565, 4294901760
    %5383 = vmatpush.msra.mxu0 %v5382
    %v5384 = vand.u32 %v558, 4294901760
    %5385 = vmatpush.msra.mxu0 %v5384
    %v5386 = vand.u32 %v551, 4294901760
    %5387 = vmatpush.msra.mxu0 %v5386
    %v5388 = vand.u32 %v544, 4294901760
    %5389 = vmatpush.msra.mxu0 %v5388
    %v5390 = vand.u32 %v537, 4294901760
    %5391 = vmatpush.msra.mxu0 %v5390
    %v5392 = vand.u32 %v530, 4294901760
    %5393 = vmatpush.msra.mxu0 %v5392
    %v5394 = vand.u32 %v523, 4294901760
    %5395 = vmatpush.msra.mxu0 %v5394
    %v5396 = vand.u32 %v516, 4294901760
    %5397 = vmatpush.msra.mxu0 %v5396
    %v5398 = vand.u32 %v509, 4294901760
    %5399 = vmatpush.msra.mxu0 %v5398
    %v5400 = vand.u32 %v390, 4294901760
    %5401 = vmatmul.f32.gmra.mxu0 %v5400
    %v5402 = vpop.f32.mrf.mxu0
    %v5403 = vadd.f32 %v5366, %v5402
    %5404 = vdwg.mxu0
    %v5405 = vxor.u32 %v1311, 2147483648
    %v5406 = vxor.u32 %v1993, 2147483648
    %v5407 = vxor.u32 %v2675, 2147483648
    %v5408 = vxor.u32 %v3357, 2147483648
    %v5409 = vxor.u32 %v4039, 2147483648
    %v5410 = vxor.u32 %v4721, 2147483648
    %v5411 = vxor.u32 %v5403, 2147483648
    %v5412 = vmul.f32 %v5405, 1.442695
    %v5413 = vpow.pop %v5412
    %v5414 = vmul.f32 %v5406, 1.442695
    %v5415 = vpow.pop %v5414
    %v5416 = vmul.f32 %v5407, 1.442695
    %v5417 = vpow.pop %v5416
    %v5418 = vmul.f32 %v5408, 1.442695
    %v5419 = vpow.pop %v5418
    %v5420 = vmul.f32 %v5409, 1.442695
    %v5421 = vpow.pop %v5420
    %v5422 = vmul.f32 %v5410, 1.442695
    %v5423 = vpow.pop %v5422
    %v5424 = vmul.f32 %v5411, 1.442695
    %v5425 = vpow.pop %v5424
    %v5426 = vadd.f32 %v5413, 1.0
    %v5427 = vadd.f32 %v5415, 1.0
    %v5428 = vadd.f32 %v5417, 1.0
    %v5429 = vadd.f32 %v5419, 1.0
    %v5430 = vadd.f32 %v5421, 1.0
    %v5431 = vadd.f32 %v5423, 1.0
    %v5432 = vadd.f32 %v5425, 1.0
    %v5433 = vrcp.pop %v5426
    %v5434 = vmul.f32 %v5426, %v5433
    %v5435 = vsub.f32 1.0, %v5434
    %v5436 = vmul.f32 %v5433, %v5435
    %v5437 = vadd.f32 %v5433, %v5436
    %vm5438 = vweird.f32 %v5426
    %vm5439 = vweird.f32 %v5433
    %vm5440 = vmor %vm5438, %vm5439
    %v5441 = vsel %vm5440, %v5433, %v5437
    %v5442 = vand.u32 2147483647, %v5426
    %vm5443 = vcmp.eq.f32.partialorder %v5442, 8.507059e+37
    %v5444 = vand.u32 %v5426, 2147483648
    %v5445 = vor.u32 1.1754944e-38, %v5444
    %v5446 = vsel %vm5443, %v5445, %v5441
    %v5447 = vmul.f32 1.0, %v5446
    %v5448 = vrcp.pop %v5427
    %v5449 = vmul.f32 %v5427, %v5448
    %v5450 = vsub.f32 1.0, %v5449
    %v5451 = vmul.f32 %v5448, %v5450
    %v5452 = vadd.f32 %v5448, %v5451
    %vm5453 = vweird.f32 %v5427
    %vm5454 = vweird.f32 %v5448
    %vm5455 = vmor %vm5453, %vm5454
    %v5456 = vsel %vm5455, %v5448, %v5452
    %v5457 = vand.u32 2147483647, %v5427
    %vm5458 = vcmp.eq.f32.partialorder %v5457, 8.507059e+37
    %v5459 = vand.u32 %v5427, 2147483648
    %v5460 = vor.u32 1.1754944e-38, %v5459
    %v5461 = vsel %vm5458, %v5460, %v5456
    %v5462 = vmul.f32 1.0, %v5461
    %v5463 = vrcp.pop %v5428
    %v5464 = vmul.f32 %v5428, %v5463
    %v5465 = vsub.f32 1.0, %v5464
    %v5466 = vmul.f32 %v5463, %v5465
    %v5467 = vadd.f32 %v5463, %v5466
    %vm5468 = vweird.f32 %v5428
    %vm5469 = vweird.f32 %v5463
    %vm5470 = vmor %vm5468, %vm5469
    %v5471 = vsel %vm5470, %v5463, %v5467
    %v5472 = vand.u32 2147483647, %v5428
    %vm5473 = vcmp.eq.f32.partialorder %v5472, 8.507059e+37
    %v5474 = vand.u32 %v5428, 2147483648
    %v5475 = vor.u32 1.1754944e-38, %v5474
    %v5476 = vsel %vm5473, %v5475, %v5471
    %v5477 = vmul.f32 1.0, %v5476
    %v5478 = vrcp.pop %v5429
    %v5479 = vmul.f32 %v5429, %v5478
    %v5480 = vsub.f32 1.0, %v5479
    %v5481 = vmul.f32 %v5478, %v5480
    %v5482 = vadd.f32 %v5478, %v5481
    %vm5483 = vweird.f32 %v5429
    %vm5484 = vweird.f32 %v5478
    %vm5485 = vmor %vm5483, %vm5484
    %v5486 = vsel %vm5485, %v5478, %v5482
    %v5487 = vand.u32 2147483647, %v5429
    %vm5488 = vcmp.eq.f32.partialorder %v5487, 8.507059e+37
    %v5489 = vand.u32 %v5429, 2147483648
    %v5490 = vor.u32 1.1754944e-38, %v5489
    %v5491 = vsel %vm5488, %v5490, %v5486
    %v5492 = vmul.f32 1.0, %v5491
    %v5493 = vrcp.pop %v5430
    %v5494 = vmul.f32 %v5430, %v5493
    %v5495 = vsub.f32 1.0, %v5494
    %v5496 = vmul.f32 %v5493, %v5495
    %v5497 = vadd.f32 %v5493, %v5496
    %vm5498 = vweird.f32 %v5430
    %vm5499 = vweird.f32 %v5493
    %vm5500 = vmor %vm5498, %vm5499
    %v5501 = vsel %vm5500, %v5493, %v5497
    %v5502 = vand.u32 2147483647, %v5430
    %vm5503 = vcmp.eq.f32.partialorder %v5502, 8.507059e+37
    %v5504 = vand.u32 %v5430, 2147483648
    %v5505 = vor.u32 1.1754944e-38, %v5504
    %v5506 = vsel %vm5503, %v5505, %v5501
    %v5507 = vmul.f32 1.0, %v5506
    %v5508 = vrcp.pop %v5431
    %v5509 = vmul.f32 %v5431, %v5508
    %v5510 = vsub.f32 1.0, %v5509
    %v5511 = vmul.f32 %v5508, %v5510
    %v5512 = vadd.f32 %v5508, %v5511
    %vm5513 = vweird.f32 %v5431
    %vm5514 = vweird.f32 %v5508
    %vm5515 = vmor %vm5513, %vm5514
    %v5516 = vsel %vm5515, %v5508, %v5512
    %v5517 = vand.u32 2147483647, %v5431
    %vm5518 = vcmp.eq.f32.partialorder %v5517, 8.507059e+37
    %v5519 = vand.u32 %v5431, 2147483648
    %v5520 = vor.u32 1.1754944e-38, %v5519
    %v5521 = vsel %vm5518, %v5520, %v5516
    %v5522 = vmul.f32 1.0, %v5521
    %v5523 = vrcp.pop %v5432
    %v5524 = vmul.f32 %v5432, %v5523
    %v5525 = vsub.f32 1.0, %v5524
    %v5526 = vmul.f32 %v5523, %v5525
    %v5527 = vadd.f32 %v5523, %v5526
    %vm5528 = vweird.f32 %v5432
    %vm5529 = vweird.f32 %v5523
    %vm5530 = vmor %vm5528, %vm5529
    %v5531 = vsel %vm5530, %v5523, %v5527
    %v5532 = vand.u32 2147483647, %v5432
    %vm5533 = vcmp.eq.f32.partialorder %v5532, 8.507059e+37
    %v5534 = vand.u32 %v5432, 2147483648
    %v5535 = vor.u32 1.1754944e-38, %v5534
    %v5536 = vsel %vm5533, %v5535, %v5531
    %v5537 = vmul.f32 1.0, %v5536
    %5538 = vst [vmem:[#allocation2] sm:$0xff] %v5447
    %5539 = vst [vmem:[#allocation2 + $0x8] sm:$0xff] %v5462
    %5540 = vst [vmem:[#allocation2 + $0x10] sm:$0xff] %v5477
    %5541 = vst [vmem:[#allocation2 + $0x18] sm:$0xff] %v5492
    %5542 = vst [vmem:[#allocation2 + $0x20] sm:$0xff] %v5507
    %5543 = vst [vmem:[#allocation2 + $0x28] sm:$0xff] %v5522
    %vm5544 = vcmask 130048
    %5545 = vst.msk [vmem:[#allocation2 + $0x30] sm:$0xff] %vm5544, %v5537
    // Predicated region
    $region22: #{tpu_custom_call.1} parent=1 // pred_check
      _
    $region23: #{tpu_custom_call.1} parent=1 // pred_check_branch
      %5547 = sbr.rel (0) target = $region25
    $region24: #{tpu_custom_call.1} parent=1 // pred_region
      %5549 = vsyncadd [#allocation3], 0
      %s5551 = sshll.u32 [#allocation2], 4
      %s5552 = int_to_ptr.vmem [resolvable:$true] %s5551
      %s5553 = sshll.u32 %s5, 4
      %s5554 = int_to_ptr.hbm [resolvable:$true] %s5553
      %5556 = dma.vmem_to_hbm [thread:$0]  %s5552, 896, %s5554, [#allocation3]
    $region25: #{tpu_custom_call.1} parent=1 // pred_fallthru
      _
    // Predicated region
    $region26: #{tpu_custom_call.1} parent=1 // pred_check
      _
    $region27: #{tpu_custom_call.1} parent=1 // pred_check_branch
      %5558 = sbr.rel (0) target = $region29
    $region28: #{tpu_custom_call.1} parent=1 // pred_region
      %5560 = dma.done [#allocation3], 896
    $region29: #{tpu_custom_call.1} parent=1 // pred_fallthru
      _
    %5561 = vsyncpa [#allocation3], 1

</llo_original>
